<compile_context>
chip_gen: v7x
topology: tpu7x:2x2x1
jax: 0.10.0
libtpu: 0.0.40
codegen_flags: <defaults>
</compile_context>

<pallas_src>
import functools

import jax
import jax.numpy as jnp
import numpy as np
from jax.experimental import pallas as pl
from jax.experimental.pallas import tpu as pltpu

NEG_INF = -1000000.0  # MultiHeadAttention.NEG_INF
EPSILON = 1e-7        # SimpleTransformer.EPISLON


def _swish(x):
    return x * jax.nn.sigmoid(x)  # ml-agents Swish = x * sigmoid(x)


# ---------------------------------------------------------------------------
# Fused forward kernel: one grid step processes BT batch elements end-to-end.
# ---------------------------------------------------------------------------
def _fused_kernel(*refs, num_groups, num_heads):
    # ---- unpack refs: inputs..., output, scratch ----
    idx = 0
    x_self_ref = refs[idx]; idx += 1
    ent_refs = refs[idx:idx + num_groups]; idx += num_groups
    mask_ref = refs[idx]; idx += 1
    enc_refs = []
    for _ in range(num_groups):
        enc_refs.append(refs[idx:idx + 5]); idx += 5
    (w_qkv_ref, b_qkv_ref, wo_ref, bo_ref, wr_ref, br_ref,
     wxp_ref, wxs_ref, bx_ref) = refs[idx:idx + 9]; idx += 9
    out_ref = refs[idx]; idx += 1
    qkv_scratch = refs[idx]                      # VMEM (BT, N, E)

    bt = x_self_ref.shape[0]
    he, emb = wo_ref.shape                       # he = num_heads * emb
    n_total = mask_ref.shape[1]
    inv_scale = 1.0 / (emb ** 0.5)

    x_self = x_self_ref[...]                     # (BT, S)
    mask = mask_ref[...]                         # (BT, N)   1.0 = masked key

    # ---- entity encoders: LinearEncoder(self+ent, 2, emb) with split matmul ----
    off = 0
    for g in range(num_groups):                  # static unrolled loop over groups
        w1s_ref, w1e_ref, b1_ref, w2_ref, b2_ref = enc_refs[g]
        ent = ent_refs[g][...]                   # (BT, n_g, es_g)
        n_g = ent.shape[1]
        ent2d = ent.reshape(bt * n_g, ent.shape[2])
        s_proj = jnp.dot(x_self, w1s_ref[...], preferred_element_type=jnp.float32)   # (BT, E)
        e_proj = jnp.dot(ent2d, w1e_ref[...], preferred_element_type=jnp.float32)    # (BT*n_g, E)
        h1 = _swish(e_proj.reshape(bt, n_g, emb) + s_proj[:, None, :] + b1_ref[...])
        h2 = _swish(jnp.dot(h1.reshape(bt * n_g, emb), w2_ref[...],
                            preferred_element_type=jnp.float32) + b2_ref[...])
        qkv_scratch[:, off:off + n_g, :] = h2.reshape(bt, n_g, emb)
        off += n_g

    qkv3 = qkv_scratch[...]                      # (BT, N, E)
    x2d = qkv3.reshape(bt * n_total, emb)        # (BT*N, E)

    # ---- fused Q/K/V projection: one (BT*N, E) x (E, 3*H*E) matmul ----
    qkvp = jnp.dot(x2d, w_qkv_ref[...], preferred_element_type=jnp.float32) + b_qkv_ref[...]

    km = mask[:, None, :]                        # (BT, 1, N)
    keep3 = 1.0 - km

    # ---- per-head scores / softmax (tiny (N,N) matmuls), outputs lane-packed ----
    o_heads = []
    for h in range(num_heads):                   # static unrolled loop over heads
        qh = qkvp[:, h * emb:(h + 1) * emb].reshape(bt, n_total, emb)
        kh = qkvp[:, he + h * emb: he + (h + 1) * emb].reshape(bt, n_total, emb)
        vh = qkvp[:, 2 * he + h * emb: 2 * he + (h + 1) * emb].reshape(bt, n_total, emb)
        s = jnp.einsum("bqe,bke->bqk", qh, kh, preferred_element_type=jnp.float32)
        s = keep3 * s * inv_scale + km * NEG_INF
        m = jnp.max(s, axis=-1, keepdims=True)
        p = jnp.exp(s - m)
        att = p / jnp.sum(p, axis=-1, keepdims=True)
        o_heads.append(jnp.einsum("bqk,bke->bqe", att, vh,
                                  preferred_element_type=jnp.float32))
    o_cat = jnp.concatenate(o_heads, axis=-1).reshape(bt * n_total, he)   # (BT*N, H*E)

    # ---- output projection: single (BT*N, H*E) x (H*E, E) matmul ----
    attn_out = jnp.dot(o_cat, wo_ref[...], preferred_element_type=jnp.float32) + bo_ref[...]

    # ---- residual LinearEncoder + skip ----
    r = _swish(jnp.dot(attn_out, wr_ref[...], preferred_element_type=jnp.float32)
               + br_ref[...]) + x2d
    r3 = r.reshape(bt, n_total, emb)

    # ---- masked mean pooling over entities ----
    num = jnp.einsum("bqn,bne->bqe", keep3, r3,
                     preferred_element_type=jnp.float32).reshape(bt, emb)   # (BT, E)
    den = jnp.sum(1.0 - mask, axis=1, keepdims=True) + EPSILON              # (BT, 1)
    pooled = num / den

    # ---- final x_self residual layer, concat avoided via split matmul ----
    fin = (jnp.dot(pooled, wxp_ref[...], preferred_element_type=jnp.float32)
           + jnp.dot(x_self, wxs_ref[...], preferred_element_type=jnp.float32)
           + bx_ref[...])
    out_ref[...] = _swish(fin)


# ---------------------------------------------------------------------------
# Wrapper: packs weights, blocks the batch, issues ONE pallas_call.
# ---------------------------------------------------------------------------
def simple_transformer_forward(params, x_self, entities, key_masks, *,
                               num_heads, emb, batch_tile=16):
    B, self_size = x_self.shape
    num_groups = len(entities)
    N = sum(int(e.shape[1]) for e in entities)
    out_size = params["w_xres"].shape[1]

    # Pick the batch block: whole batch if small, else a sublane-aligned tile.
    if B <= batch_tile:
        BT = B
    else:
        BT = batch_tile                     # multiple of 8 -> (8,128)-friendly blocks
    pad = (-B) % BT
    if pad:
        x_self = jnp.pad(x_self, ((0, pad), (0, 0)))
        entities = [jnp.pad(e, ((0, pad), (0, 0), (0, 0))) for e in entities]
        key_masks = [jnp.pad(m, ((0, pad), (0, 0)), constant_values=1.0)
                     for m in key_masks]
    Bp = B + pad

    mask = jnp.concatenate(key_masks, axis=1)          # (Bp, N)

    # ---- pack weights: per-head (H,E,E) -> lane-packed slabs ----
    def pack_w(w):   # (H, E, E) -> (E, H*E), head h in columns [h*E:(h+1)*E]
        return jnp.transpose(w, (1, 0, 2)).reshape(emb, num_heads * emb)

    def pack_b(b):   # (H, 1, E) -> (1, H*E)
        return jnp.transpose(b, (1, 0, 2)).reshape(1, num_heads * emb)

    w_qkv = jnp.concatenate([pack_w(params["wq"]), pack_w(params["wk"]),
                             pack_w(params["wv"])], axis=1)      # (E, 3*H*E)
    b_qkv = jnp.concatenate([pack_b(params["bq"]), pack_b(params["bk"]),
                             pack_b(params["bv"])], axis=1)      # (1, 3*H*E)
    wo = params["wo"].reshape(num_heads * emb, emb)              # (H*E, E)
    bo, wr, br = params["bo"], params["wr"], params["br"]
    wx_pool = params["w_xres"][:emb]                             # (E, out)
    wx_self = params["w_xres"][emb:]                             # (S, out)
    bx = params["b_xres"]

    enc_weights = []
    for (w1, b1, w2, b2) in params["ent_encoders"]:
        enc_weights.append((w1[:self_size], w1[self_size:], b1, w2, b2))

    # ---- build inputs / BlockSpecs ----
    def _rep(shape):                       # weight replicated across grid steps
        n = len(shape)
        return pl.BlockSpec(shape, lambda b, _n=n: (0,) * _n)

    inputs = [x_self] + list(entities) + [mask]
    in_specs = [pl.BlockSpec((BT, self_size), lambda b: (b, 0))]
    for e in entities:
        in_specs.append(pl.BlockSpec((BT, e.shape[1], e.shape[2]),
                                     lambda b: (b, 0, 0)))
    in_specs.append(pl.BlockSpec((BT, N), lambda b: (b, 0)))

    for tup in enc_weights:
        for w in tup:
            inputs.append(w)
            in_specs.append(_rep(w.shape))
    for w in (w_qkv, b_qkv, wo, bo, wr, br, wx_pool, wx_self, bx):
        inputs.append(w)
        in_specs.append(_rep(w.shape))

    out = pl.pallas_call(
        functools.partial(_fused_kernel, num_groups=num_groups, num_heads=num_heads),
        out_shape=jax.ShapeDtypeStruct((Bp, out_size), jnp.float32),
        grid=(Bp // BT,),
        in_specs=in_specs,
        out_specs=pl.BlockSpec((BT, out_size), lambda b: (b, 0)),
        scratch_shapes=[pltpu.VMEM((BT, N, emb), jnp.float32)],
        compiler_params=pltpu.CompilerParams(dimension_semantics=("parallel",)),
    )(*inputs)
    return out[:B]


# ---------------------------------------------------------------------------
# Parameters (deterministic, in-script)
# ---------------------------------------------------------------------------
def init_params(key, self_size, entities_sizes, emb, num_heads, out_size):
    keys = iter(jax.random.split(key, 4 * len(entities_sizes) + 24))

    def lin(fan_in, fan_out, prefix=()):
        w = jax.random.normal(next(keys), prefix + (fan_in, fan_out),
                              jnp.float32) / np.sqrt(fan_in)
        b = 0.01 * jax.random.normal(next(keys), prefix + (1, fan_out), jnp.float32)
        return w, b

    params = {}
    ent_encoders = []
    for es in entities_sizes:                 # LinearEncoder(self+ent, 2, emb)
        w1, b1 = lin(self_size + es, emb)
        w2, b2 = lin(emb, emb)
        ent_encoders.append((w1, b1, w2, b2))
    params["ent_encoders"] = ent_encoders

    # MultiHeadAttention(emb, emb, emb, emb, num_heads=4, embedding_size=emb)
    params["wq"], params["bq"] = lin(emb, emb, (num_heads,))
    params["wk"], params["bk"] = lin(emb, emb, (num_heads,))
    params["wv"], params["bv"] = lin(emb, emb, (num_heads,))
    params["wo"] = jax.random.normal(next(keys), (num_heads, emb, emb),
                                     jnp.float32) / np.sqrt(num_heads * emb)
    params["bo"] = 0.01 * jax.random.normal(next(keys), (1, emb), jnp.float32)

    params["wr"], params["br"] = lin(emb, emb)                       # residual_layer
    params["w_xres"], params["b_xres"] = lin(emb + self_size, out_size)
    return params


# ---------------------------------------------------------------------------
# Pure-JAX reference (mirrors the PyTorch code line-by-line)
# ---------------------------------------------------------------------------
def reference_forward(params, x_self, entities, key_masks, *, num_heads, emb):
    def swish(x):
        return x * jax.nn.sigmoid(x)

    B, self_size = x_self.shape
    enc = []
    for (w1, b1, w2, b2), ent in zip(params["ent_encoders"], entities):
        n = ent.shape[1]
        expanded = jnp.broadcast_to(x_self[:, None, :], (B, n, self_size))
        x = jnp.concatenate([expanded, ent], axis=2)
        enc.append(swish(swish(x @ w1 + b1[0]) @ w2 + b2[0]))
    qkv = jnp.concatenate(enc, axis=1)
    mask = jnp.concatenate(key_masks, axis=1)

    q = jnp.stack([qkv @ params["wq"][h] + params["bq"][h][0] for h in range(num_heads)], 1)
    k = jnp.stack([qkv @ params["wk"][h] + params["bk"][h][0] for h in range(num_heads)], 1)
    v = jnp.stack([qkv @ params["wv"][h] + params["bv"][h][0] for h in range(num_heads)], 1)
    qk = jnp.einsum("bhqe,bhke->bhqk", q, k)
    km = mask[:, None, None, :]
    qk = (1 - km) * qk / (emb ** 0.5) + km * NEG_INF
    att = jax.nn.softmax(qk, axis=3)
    va = jnp.einsum("bhqk,bhke->bhqe", att, v)
    out = sum(va[:, h] @ params["wo"][h] for h in range(num_heads)) + params["bo"][0]

    res = swish(out @ params["wr"] + params["br"][0]) + qkv
    numerator = jnp.sum(res * (1 - mask)[:, :, None], axis=1)
    denominator = jnp.sum(1 - mask, axis=1, keepdims=True) + EPSILON
    pooled = numerator / denominator
    return swish(jnp.concatenate([pooled, x_self], axis=1) @ params["w_xres"]
                 + params["b_xres"][0])


if __name__ == "__main__":
    B = 2
    self_size = 8
    entities_sizes = [6, 4]
    nums_entities = [5, 3]
    emb = 32
    num_heads = 4
    out_size = emb

    key = jax.random.PRNGKey(0)
    k_params, k_self, k_e0, k_e1 = jax.random.split(key, 4)
    params = init_params(k_params, self_size, entities_sizes, emb, num_heads, out_size)

    x_self = jax.random.normal(k_self, (B, self_size), jnp.float32)
    entities = [
        jax.random.normal(k_e0, (B, nums_entities[0], entities_sizes[0]), jnp.float32),
        jax.random.normal(k_e1, (B, nums_entities[1], entities_sizes[1]), jnp.float32),
    ]
    # Zero out one entity per group to exercise the masking path (get_masks semantics).
    entities[0] = entities[0].at[:, -1, :].set(0.0)
    entities[1] = entities[1].at[:, -1, :].set(0.0)
    key_masks = [(jnp.sum(e ** 2, axis=2) < 0.01).astype(jnp.float32) for e in entities]

    out = simple_transformer_forward(params, x_self, entities, key_masks,
                                     num_heads=num_heads, emb=emb)
    out = jax.block_until_ready(out)

    ref = reference_forward(params, x_self, entities, key_masks,
                            num_heads=num_heads, emb=emb)
    np.testing.assert_allclose(np.asarray(out), np.asarray(ref), rtol=2e-3, atol=2e-3)
    print("KERNEL_OK")
</pallas_src>

<mosaic_0001>
module attributes {stable_mosaic.version = 11 : i64} {
  func.func @_fused_kernel(%arg0: i32, %arg1: memref<2x8xf32, #tpu.memory_space<vmem>>, %arg2: memref<2x5x6xf32, #tpu.memory_space<vmem>>, %arg3: memref<2x3x4xf32, #tpu.memory_space<vmem>>, %arg4: memref<2x8xf32, #tpu.memory_space<vmem>>, %arg5: memref<8x32xf32, #tpu.memory_space<vmem>>, %arg6: memref<6x32xf32, #tpu.memory_space<vmem>>, %arg7: memref<1x32xf32, #tpu.memory_space<vmem>>, %arg8: memref<32x32xf32, #tpu.memory_space<vmem>>, %arg9: memref<1x32xf32, #tpu.memory_space<vmem>>, %arg10: memref<8x32xf32, #tpu.memory_space<vmem>>, %arg11: memref<4x32xf32, #tpu.memory_space<vmem>>, %arg12: memref<1x32xf32, #tpu.memory_space<vmem>>, %arg13: memref<32x32xf32, #tpu.memory_space<vmem>>, %arg14: memref<1x32xf32, #tpu.memory_space<vmem>>, %arg15: memref<32x384xf32, #tpu.memory_space<vmem>>, %arg16: memref<1x384xf32, #tpu.memory_space<vmem>>, %arg17: memref<128x32xf32, #tpu.memory_space<vmem>>, %arg18: memref<1x32xf32, #tpu.memory_space<vmem>>, %arg19: memref<32x32xf32, #tpu.memory_space<vmem>>, %arg20: memref<1x32xf32, #tpu.memory_space<vmem>>, %arg21: memref<32x32xf32, #tpu.memory_space<vmem>>, %arg22: memref<8x32xf32, #tpu.memory_space<vmem>>, %arg23: memref<1x32xf32, #tpu.memory_space<vmem>>, %arg24: memref<2x32xf32, #tpu.memory_space<vmem>>, %arg25: memref<2x8x32xf32, #tpu.memory_space<vmem>>) attributes {dimension_semantics = [#tpu.dimension_semantics<parallel>], iteration_bounds = array<i64: 1>, scalar_prefetch = 0 : i64, scratch_operands = 1 : i64, tpu.core_type = #tpu.core_type<tc>, window_params = [{transform_indices = @transform_0, window_bounds = array<i64: 2, 8>}, {transform_indices = @transform_1, window_bounds = array<i64: 2, 5, 6>}, {transform_indices = @transform_2, window_bounds = array<i64: 2, 3, 4>}, {transform_indices = @transform_3, window_bounds = array<i64: 2, 8>}, {pipeline_mode = #tpu.pipeline_mode<synchronous>, transform_indices = @transform_4, window_bounds = array<i64: 8, 32>}, {pipeline_mode = #tpu.pipeline_mode<synchronous>, transform_indices = @transform_5, window_bounds = array<i64: 6, 32>}, {pipeline_mode = #tpu.pipeline_mode<synchronous>, transform_indices = @transform_6, window_bounds = array<i64: 1, 32>}, {pipeline_mode = #tpu.pipeline_mode<synchronous>, transform_indices = @transform_7, window_bounds = array<i64: 32, 32>}, {pipeline_mode = #tpu.pipeline_mode<synchronous>, transform_indices = @transform_8, window_bounds = array<i64: 1, 32>}, {pipeline_mode = #tpu.pipeline_mode<synchronous>, transform_indices = @transform_9, window_bounds = array<i64: 8, 32>}, {pipeline_mode = #tpu.pipeline_mode<synchronous>, transform_indices = @transform_10, window_bounds = array<i64: 4, 32>}, {pipeline_mode = #tpu.pipeline_mode<synchronous>, transform_indices = @transform_11, window_bounds = array<i64: 1, 32>}, {pipeline_mode = #tpu.pipeline_mode<synchronous>, transform_indices = @transform_12, window_bounds = array<i64: 32, 32>}, {pipeline_mode = #tpu.pipeline_mode<synchronous>, transform_indices = @transform_13, window_bounds = array<i64: 1, 32>}, {pipeline_mode = #tpu.pipeline_mode<synchronous>, transform_indices = @transform_14, window_bounds = array<i64: 32, 384>}, {pipeline_mode = #tpu.pipeline_mode<synchronous>, transform_indices = @transform_15, window_bounds = array<i64: 1, 384>}, {pipeline_mode = #tpu.pipeline_mode<synchronous>, transform_indices = @transform_16, window_bounds = array<i64: 128, 32>}, {pipeline_mode = #tpu.pipeline_mode<synchronous>, transform_indices = @transform_17, window_bounds = array<i64: 1, 32>}, {pipeline_mode = #tpu.pipeline_mode<synchronous>, transform_indices = @transform_18, window_bounds = array<i64: 32, 32>}, {pipeline_mode = #tpu.pipeline_mode<synchronous>, transform_indices = @transform_19, window_bounds = array<i64: 1, 32>}, {pipeline_mode = #tpu.pipeline_mode<synchronous>, transform_indices = @transform_20, window_bounds = array<i64: 32, 32>}, {pipeline_mode = #tpu.pipeline_mode<synchronous>, transform_indices = @transform_21, window_bounds = array<i64: 8, 32>}, {pipeline_mode = #tpu.pipeline_mode<synchronous>, transform_indices = @transform_22, window_bounds = array<i64: 1, 32>}, {transform_indices = @transform_23, window_bounds = array<i64: 2, 32>}]} {
    %c0 = arith.constant 0 : index
    %c0_0 = arith.constant 0 : index
    %0 = vector.load %arg1[%c0, %c0_0] : memref<2x8xf32, #tpu.memory_space<vmem>>, vector<2x8xf32>
    %c0_1 = arith.constant 0 : index
    %c0_2 = arith.constant 0 : index
    %1 = vector.load %arg4[%c0_1, %c0_2] : memref<2x8xf32, #tpu.memory_space<vmem>>, vector<2x8xf32>
    %c0_3 = arith.constant 0 : index
    %c0_4 = arith.constant 0 : index
    %c0_5 = arith.constant 0 : index
    %2 = vector.load %arg2[%c0_3, %c0_4, %c0_5] : memref<2x5x6xf32, #tpu.memory_space<vmem>>, vector<2x5x6xf32>
    %3 = vector.shape_cast %2 : vector<2x5x6xf32> to vector<10x6xf32>
    %c0_6 = arith.constant 0 : index
    %c0_7 = arith.constant 0 : index
    %4 = vector.load %arg5[%c0_6, %c0_7] : memref<8x32xf32, #tpu.memory_space<vmem>>, vector<8x32xf32>
    %cst = arith.constant dense<0.000000e+00> : vector<2x32xf32>
    %5 = tpu.matmul %0, %4, %cst {dimension_numbers = #tpu.dot_dimension_numbers<[1], [0], [0], [1], [0, 0, 1, 1], [], []>} : vector<2x8xf32>, vector<8x32xf32>, vector<2x32xf32> -> vector<2x32xf32>
    %c0_8 = arith.constant 0 : index
    %c0_9 = arith.constant 0 : index
    %6 = vector.load %arg6[%c0_8, %c0_9] : memref<6x32xf32, #tpu.memory_space<vmem>>, vector<6x32xf32>
    %cst_10 = arith.constant dense<0.000000e+00> : vector<10x32xf32>
    %7 = tpu.matmul %3, %6, %cst_10 {dimension_numbers = #tpu.dot_dimension_numbers<[1], [0], [0], [1], [0, 0, 1, 1], [], []>} : vector<10x6xf32>, vector<6x32xf32>, vector<10x32xf32> -> vector<10x32xf32>
    %8 = vector.shape_cast %7 : vector<10x32xf32> to vector<2x5x32xf32>
    %9 = vector.shape_cast %5 : vector<2x32xf32> to vector<2x1x32xf32>
    %10 = vector.broadcast %9 : vector<2x1x32xf32> to vector<2x5x32xf32>
    %11 = arith.addf %8, %10 : vector<2x5x32xf32>
    %c0_11 = arith.constant 0 : index
    %c0_12 = arith.constant 0 : index
    %12 = vector.load %arg7[%c0_11, %c0_12] : memref<1x32xf32, #tpu.memory_space<vmem>>, vector<1x32xf32>
    %13 = vector.shape_cast %12 : vector<1x32xf32> to vector<1x1x32xf32>
    %14 = vector.broadcast %13 : vector<1x1x32xf32> to vector<2x5x32xf32>
    %15 = arith.addf %11, %14 : vector<2x5x32xf32>
    %16 = arith.negf %15 : vector<2x5x32xf32>
    %17 = math.exp %16 : vector<2x5x32xf32>
    %cst_13 = arith.constant 1.000000e+00 : f32
    %18 = vector.broadcast %cst_13 : f32 to vector<2x5x32xf32>
    %19 = arith.addf %18, %17 : vector<2x5x32xf32>
    %20 = arith.divf %18, %19 : vector<2x5x32xf32>
    %21 = arith.mulf %15, %20 : vector<2x5x32xf32>
    %22 = vector.shape_cast %21 : vector<2x5x32xf32> to vector<10x32xf32>
    %c0_14 = arith.constant 0 : index
    %c0_15 = arith.constant 0 : index
    %23 = vector.load %arg8[%c0_14, %c0_15] : memref<32x32xf32, #tpu.memory_space<vmem>>, vector<32x32xf32>
    %cst_16 = arith.constant dense<0.000000e+00> : vector<10x32xf32>
    %24 = tpu.matmul %22, %23, %cst_16 {dimension_numbers = #tpu.dot_dimension_numbers<[1], [0], [0], [1], [0, 0, 1, 1], [], []>} : vector<10x32xf32>, vector<32x32xf32>, vector<10x32xf32> -> vector<10x32xf32>
    %c0_17 = arith.constant 0 : index
    %c0_18 = arith.constant 0 : index
    %25 = vector.load %arg9[%c0_17, %c0_18] : memref<1x32xf32, #tpu.memory_space<vmem>>, vector<1x32xf32>
    %26 = vector.broadcast %25 : vector<1x32xf32> to vector<10x32xf32>
    %27 = arith.addf %24, %26 : vector<10x32xf32>
    %28 = arith.negf %27 : vector<10x32xf32>
    %29 = math.exp %28 : vector<10x32xf32>
    %cst_19 = arith.constant 1.000000e+00 : f32
    %30 = vector.broadcast %cst_19 : f32 to vector<10x32xf32>
    %31 = arith.addf %30, %29 : vector<10x32xf32>
    %32 = arith.divf %30, %31 : vector<10x32xf32>
    %33 = arith.mulf %27, %32 : vector<10x32xf32>
    %34 = vector.shape_cast %33 : vector<10x32xf32> to vector<2x5x32xf32>
    %c0_20 = arith.constant 0 : index
    %c0_21 = arith.constant 0 : index
    %c0_22 = arith.constant 0 : index
    %35 = vector.load %arg25[%c0_20, %c0_21, %c0_22] : memref<2x8x32xf32, #tpu.memory_space<vmem>>, vector<2x5x32xf32>
    tpu.vector_store %arg25[%c0_20, %c0_21, %c0_22], %34 {strides = array<i32>} : memref<2x8x32xf32, #tpu.memory_space<vmem>>, vector<2x5x32xf32>,
    %c0_23 = arith.constant 0 : index
    %c0_24 = arith.constant 0 : index
    %c0_25 = arith.constant 0 : index
    %36 = vector.load %arg3[%c0_23, %c0_24, %c0_25] : memref<2x3x4xf32, #tpu.memory_space<vmem>>, vector<2x3x4xf32>
    %37 = vector.shape_cast %36 : vector<2x3x4xf32> to vector<6x4xf32>
    %c0_26 = arith.constant 0 : index
    %c0_27 = arith.constant 0 : index
    %38 = vector.load %arg10[%c0_26, %c0_27] : memref<8x32xf32, #tpu.memory_space<vmem>>, vector<8x32xf32>
    %cst_28 = arith.constant dense<0.000000e+00> : vector<2x32xf32>
    %39 = tpu.matmul %0, %38, %cst_28 {dimension_numbers = #tpu.dot_dimension_numbers<[1], [0], [0], [1], [0, 0, 1, 1], [], []>} : vector<2x8xf32>, vector<8x32xf32>, vector<2x32xf32> -> vector<2x32xf32>
    %c0_29 = arith.constant 0 : index
    %c0_30 = arith.constant 0 : index
    %40 = vector.load %arg11[%c0_29, %c0_30] : memref<4x32xf32, #tpu.memory_space<vmem>>, vector<4x32xf32>
    %cst_31 = arith.constant dense<0.000000e+00> : vector<6x32xf32>
    %41 = tpu.matmul %37, %40, %cst_31 {dimension_numbers = #tpu.dot_dimension_numbers<[1], [0], [0], [1], [0, 0, 1, 1], [], []>} : vector<6x4xf32>, vector<4x32xf32>, vector<6x32xf32> -> vector<6x32xf32>
    %42 = vector.shape_cast %41 : vector<6x32xf32> to vector<2x3x32xf32>
    %43 = vector.shape_cast %39 : vector<2x32xf32> to vector<2x1x32xf32>
    %44 = vector.broadcast %43 : vector<2x1x32xf32> to vector<2x3x32xf32>
    %45 = arith.addf %42, %44 : vector<2x3x32xf32>
    %c0_32 = arith.constant 0 : index
    %c0_33 = arith.constant 0 : index
    %46 = vector.load %arg12[%c0_32, %c0_33] : memref<1x32xf32, #tpu.memory_space<vmem>>, vector<1x32xf32>
    %47 = vector.shape_cast %46 : vector<1x32xf32> to vector<1x1x32xf32>
    %48 = vector.broadcast %47 : vector<1x1x32xf32> to vector<2x3x32xf32>
    %49 = arith.addf %45, %48 : vector<2x3x32xf32>
    %50 = arith.negf %49 : vector<2x3x32xf32>
    %51 = math.exp %50 : vector<2x3x32xf32>
    %cst_34 = arith.constant 1.000000e+00 : f32
    %52 = vector.broadcast %cst_34 : f32 to vector<2x3x32xf32>
    %53 = arith.addf %52, %51 : vector<2x3x32xf32>
    %54 = arith.divf %52, %53 : vector<2x3x32xf32>
    %55 = arith.mulf %49, %54 : vector<2x3x32xf32>
    %56 = vector.shape_cast %55 : vector<2x3x32xf32> to vector<6x32xf32>
    %c0_35 = arith.constant 0 : index
    %c0_36 = arith.constant 0 : index
    %57 = vector.load %arg13[%c0_35, %c0_36] : memref<32x32xf32, #tpu.memory_space<vmem>>, vector<32x32xf32>
    %cst_37 = arith.constant dense<0.000000e+00> : vector<6x32xf32>
    %58 = tpu.matmul %56, %57, %cst_37 {dimension_numbers = #tpu.dot_dimension_numbers<[1], [0], [0], [1], [0, 0, 1, 1], [], []>} : vector<6x32xf32>, vector<32x32xf32>, vector<6x32xf32> -> vector<6x32xf32>
    %c0_38 = arith.constant 0 : index
    %c0_39 = arith.constant 0 : index
    %59 = vector.load %arg14[%c0_38, %c0_39] : memref<1x32xf32, #tpu.memory_space<vmem>>, vector<1x32xf32>
    %60 = vector.broadcast %59 : vector<1x32xf32> to vector<6x32xf32>
    %61 = arith.addf %58, %60 : vector<6x32xf32>
    %62 = arith.negf %61 : vector<6x32xf32>
    %63 = math.exp %62 : vector<6x32xf32>
    %cst_40 = arith.constant 1.000000e+00 : f32
    %64 = vector.broadcast %cst_40 : f32 to vector<6x32xf32>
    %65 = arith.addf %64, %63 : vector<6x32xf32>
    %66 = arith.divf %64, %65 : vector<6x32xf32>
    %67 = arith.mulf %61, %66 : vector<6x32xf32>
    %68 = vector.shape_cast %67 : vector<6x32xf32> to vector<2x3x32xf32>
    %c0_41 = arith.constant 0 : index
    %c5 = arith.constant 5 : index
    %c0_42 = arith.constant 0 : index
    %69 = vector.load %arg25[%c0_41, %c5, %c0_42] : memref<2x8x32xf32, #tpu.memory_space<vmem>>, vector<2x3x32xf32>
    tpu.vector_store %arg25[%c0_41, %c5, %c0_42], %68 {strides = array<i32>} : memref<2x8x32xf32, #tpu.memory_space<vmem>>, vector<2x3x32xf32>,
    %c0_43 = arith.constant 0 : index
    %c0_44 = arith.constant 0 : index
    %c0_45 = arith.constant 0 : index
    %70 = vector.load %arg25[%c0_43, %c0_44, %c0_45] : memref<2x8x32xf32, #tpu.memory_space<vmem>>, vector<2x8x32xf32>
    %71 = vector.shape_cast %70 : vector<2x8x32xf32> to vector<16x32xf32>
    %c0_46 = arith.constant 0 : index
    %c0_47 = arith.constant 0 : index
    %72 = vector.load %arg15[%c0_46, %c0_47] : memref<32x384xf32, #tpu.memory_space<vmem>>, vector<32x384xf32>
    %cst_48 = arith.constant dense<0.000000e+00> : vector<16x384xf32>
    %73 = tpu.matmul %71, %72, %cst_48 {dimension_numbers = #tpu.dot_dimension_numbers<[1], [0], [0], [1], [0, 0, 1, 1], [], []>} : vector<16x32xf32>, vector<32x384xf32>, vector<16x384xf32> -> vector<16x384xf32>
    %c0_49 = arith.constant 0 : index
    %c0_50 = arith.constant 0 : index
    %74 = vector.load %arg16[%c0_49, %c0_50] : memref<1x384xf32, #tpu.memory_space<vmem>>, vector<1x384xf32>
    %75 = vector.broadcast %74 : vector<1x384xf32> to vector<16x384xf32>
    %76 = arith.addf %73, %75 : vector<16x384xf32>
    %77 = vector.shape_cast %1 : vector<2x8xf32> to vector<2x1x8xf32>
    %cst_51 = arith.constant 1.000000e+00 : f32
    %78 = vector.broadcast %cst_51 : f32 to vector<2x1x8xf32>
    %79 = arith.subf %78, %77 : vector<2x1x8xf32>
    %80 = vector.extract_strided_slice %76 {offsets = [0, 0], sizes = [16, 32], strides = [1, 1]} : vector<16x384xf32> to vector<16x32xf32>
    %81 = vector.shape_cast %80 : vector<16x32xf32> to vector<2x8x32xf32>
    %82 = vector.extract_strided_slice %76 {offsets = [0, 128], sizes = [16, 32], strides = [1, 1]} : vector<16x384xf32> to vector<16x32xf32>
    %83 = vector.shape_cast %82 : vector<16x32xf32> to vector<2x8x32xf32>
    %84 = vector.extract_strided_slice %76 {offsets = [0, 256], sizes = [16, 32], strides = [1, 1]} : vector<16x384xf32> to vector<16x32xf32>
    %85 = vector.shape_cast %84 : vector<16x32xf32> to vector<2x8x32xf32>
    "tpu.trace_start"() <{level = 10 : i32, message = "bqe,bke->bqk"}> : () -> ()
    %cst_52 = arith.constant dense<0.000000e+00> : vector<2x8x8xf32>
    %86 = tpu.matmul %81, %83, %cst_52 {dimension_numbers = #tpu.dot_dimension_numbers<[2], [2], [1], [1], [0, 0, 0, 1, 1, 1], [0], [0]>} : vector<2x8x32xf32>, vector<2x8x32xf32>, vector<2x8x8xf32> -> vector<2x8x8xf32>
    "tpu.trace_stop"() : () -> ()
    %87 = vector.broadcast %79 : vector<2x1x8xf32> to vector<2x8x8xf32>
    %88 = arith.mulf %87, %86 : vector<2x8x8xf32>
    %cst_53 = arith.constant 0.176776692 : f32
    %89 = vector.broadcast %cst_53 : f32 to vector<2x8x8xf32>
    %90 = arith.mulf %88, %89 : vector<2x8x8xf32>
    %cst_54 = arith.constant -1.000000e+06 : f32
    %91 = vector.broadcast %cst_54 : f32 to vector<2x1x8xf32>
    %92 = arith.mulf %77, %91 : vector<2x1x8xf32>
    %93 = vector.broadcast %92 : vector<2x1x8xf32> to vector<2x8x8xf32>
    %94 = arith.addf %90, %93 : vector<2x8x8xf32>
    %cst_55 = arith.constant dense<0xFF800000> : vector<2x8xf32>
    %95 = vector.multi_reduction <maximumf>, %94, %cst_55 [2] : vector<2x8x8xf32> to vector<2x8xf32>
    %96 = vector.shape_cast %95 : vector<2x8xf32> to vector<2x8x1xf32>
    %97 = vector.broadcast %96 : vector<2x8x1xf32> to vector<2x8x8xf32>
    %98 = arith.subf %94, %97 : vector<2x8x8xf32>
    %99 = math.exp %98 : vector<2x8x8xf32>
    %cst_56 = arith.constant dense<0.000000e+00> : vector<2x8xf32>
    %100 = vector.multi_reduction <add>, %99, %cst_56 [2] : vector<2x8x8xf32> to vector<2x8xf32>
    %101 = vector.shape_cast %100 : vector<2x8xf32> to vector<2x8x1xf32>
    %102 = vector.broadcast %101 : vector<2x8x1xf32> to vector<2x8x8xf32>
    %103 = arith.divf %99, %102 : vector<2x8x8xf32>
    "tpu.trace_start"() <{level = 10 : i32, message = "bqk,bke->bqe"}> : () -> ()
    %cst_57 = arith.constant dense<0.000000e+00> : vector<2x8x32xf32>
    %104 = tpu.matmul %103, %85, %cst_57 {dimension_numbers = #tpu.dot_dimension_numbers<[2], [1], [1], [2], [0, 0, 0, 1, 1, 2], [0], [0]>} : vector<2x8x8xf32>, vector<2x8x32xf32>, vector<2x8x32xf32> -> vector<2x8x32xf32>
    "tpu.trace_stop"() : () -> ()
    %105 = vector.extract_strided_slice %76 {offsets = [0, 32], sizes = [16, 32], strides = [1, 1]} : vector<16x384xf32> to vector<16x32xf32>
    %106 = vector.shape_cast %105 : vector<16x32xf32> to vector<2x8x32xf32>
    %107 = vector.extract_strided_slice %76 {offsets = [0, 160], sizes = [16, 32], strides = [1, 1]} : vector<16x384xf32> to vector<16x32xf32>
    %108 = vector.shape_cast %107 : vector<16x32xf32> to vector<2x8x32xf32>
    %109 = vector.extract_strided_slice %76 {offsets = [0, 288], sizes = [16, 32], strides = [1, 1]} : vector<16x384xf32> to vector<16x32xf32>
    %110 = vector.shape_cast %109 : vector<16x32xf32> to vector<2x8x32xf32>
    "tpu.trace_start"() <{level = 10 : i32, message = "bqe,bke->bqk"}> : () -> ()
    %cst_58 = arith.constant dense<0.000000e+00> : vector<2x8x8xf32>
    %111 = tpu.matmul %106, %108, %cst_58 {dimension_numbers = #tpu.dot_dimension_numbers<[2], [2], [1], [1], [0, 0, 0, 1, 1, 1], [0], [0]>} : vector<2x8x32xf32>, vector<2x8x32xf32>, vector<2x8x8xf32> -> vector<2x8x8xf32>
    "tpu.trace_stop"() : () -> ()
    %112 = vector.broadcast %79 : vector<2x1x8xf32> to vector<2x8x8xf32>
    %113 = arith.mulf %112, %111 : vector<2x8x8xf32>
    %cst_59 = arith.constant 0.176776692 : f32
    %114 = vector.broadcast %cst_59 : f32 to vector<2x8x8xf32>
    %115 = arith.mulf %113, %114 : vector<2x8x8xf32>
    %cst_60 = arith.constant -1.000000e+06 : f32
    %116 = vector.broadcast %cst_60 : f32 to vector<2x1x8xf32>
    %117 = arith.mulf %77, %116 : vector<2x1x8xf32>
    %118 = vector.broadcast %117 : vector<2x1x8xf32> to vector<2x8x8xf32>
    %119 = arith.addf %115, %118 : vector<2x8x8xf32>
    %cst_61 = arith.constant dense<0xFF800000> : vector<2x8xf32>
    %120 = vector.multi_reduction <maximumf>, %119, %cst_61 [2] : vector<2x8x8xf32> to vector<2x8xf32>
    %121 = vector.shape_cast %120 : vector<2x8xf32> to vector<2x8x1xf32>
    %122 = vector.broadcast %121 : vector<2x8x1xf32> to vector<2x8x8xf32>
    %123 = arith.subf %119, %122 : vector<2x8x8xf32>
    %124 = math.exp %123 : vector<2x8x8xf32>
    %cst_62 = arith.constant dense<0.000000e+00> : vector<2x8xf32>
    %125 = vector.multi_reduction <add>, %124, %cst_62 [2] : vector<2x8x8xf32> to vector<2x8xf32>
    %126 = vector.shape_cast %125 : vector<2x8xf32> to vector<2x8x1xf32>
    %127 = vector.broadcast %126 : vector<2x8x1xf32> to vector<2x8x8xf32>
    %128 = arith.divf %124, %127 : vector<2x8x8xf32>
    "tpu.trace_start"() <{level = 10 : i32, message = "bqk,bke->bqe"}> : () -> ()
    %cst_63 = arith.constant dense<0.000000e+00> : vector<2x8x32xf32>
    %129 = tpu.matmul %128, %110, %cst_63 {dimension_numbers = #tpu.dot_dimension_numbers<[2], [1], [1], [2], [0, 0, 0, 1, 1, 2], [0], [0]>} : vector<2x8x8xf32>, vector<2x8x32xf32>, vector<2x8x32xf32> -> vector<2x8x32xf32>
    "tpu.trace_stop"() : () -> ()
    %130 = vector.extract_strided_slice %76 {offsets = [0, 64], sizes = [16, 32], strides = [1, 1]} : vector<16x384xf32> to vector<16x32xf32>
    %131 = vector.shape_cast %130 : vector<16x32xf32> to vector<2x8x32xf32>
    %132 = vector.extract_strided_slice %76 {offsets = [0, 192], sizes = [16, 32], strides = [1, 1]} : vector<16x384xf32> to vector<16x32xf32>
    %133 = vector.shape_cast %132 : vector<16x32xf32> to vector<2x8x32xf32>
    %134 = vector.extract_strided_slice %76 {offsets = [0, 320], sizes = [16, 32], strides = [1, 1]} : vector<16x384xf32> to vector<16x32xf32>
    %135 = vector.shape_cast %134 : vector<16x32xf32> to vector<2x8x32xf32>
    "tpu.trace_start"() <{level = 10 : i32, message = "bqe,bke->bqk"}> : () -> ()
    %cst_64 = arith.constant dense<0.000000e+00> : vector<2x8x8xf32>
    %136 = tpu.matmul %131, %133, %cst_64 {dimension_numbers = #tpu.dot_dimension_numbers<[2], [2], [1], [1], [0, 0, 0, 1, 1, 1], [0], [0]>} : vector<2x8x32xf32>, vector<2x8x32xf32>, vector<2x8x8xf32> -> vector<2x8x8xf32>
    "tpu.trace_stop"() : () -> ()
    %137 = vector.broadcast %79 : vector<2x1x8xf32> to vector<2x8x8xf32>
    %138 = arith.mulf %137, %136 : vector<2x8x8xf32>
    %cst_65 = arith.constant 0.176776692 : f32
    %139 = vector.broadcast %cst_65 : f32 to vector<2x8x8xf32>
    %140 = arith.mulf %138, %139 : vector<2x8x8xf32>
    %cst_66 = arith.constant -1.000000e+06 : f32
    %141 = vector.broadcast %cst_66 : f32 to vector<2x1x8xf32>
    %142 = arith.mulf %77, %141 : vector<2x1x8xf32>
    %143 = vector.broadcast %142 : vector<2x1x8xf32> to vector<2x8x8xf32>
    %144 = arith.addf %140, %143 : vector<2x8x8xf32>
    %cst_67 = arith.constant dense<0xFF800000> : vector<2x8xf32>
    %145 = vector.multi_reduction <maximumf>, %144, %cst_67 [2] : vector<2x8x8xf32> to vector<2x8xf32>
    %146 = vector.shape_cast %145 : vector<2x8xf32> to vector<2x8x1xf32>
    %147 = vector.broadcast %146 : vector<2x8x1xf32> to vector<2x8x8xf32>
    %148 = arith.subf %144, %147 : vector<2x8x8xf32>
    %149 = math.exp %148 : vector<2x8x8xf32>
    %cst_68 = arith.constant dense<0.000000e+00> : vector<2x8xf32>
    %150 = vector.multi_reduction <add>, %149, %cst_68 [2] : vector<2x8x8xf32> to vector<2x8xf32>
    %151 = vector.shape_cast %150 : vector<2x8xf32> to vector<2x8x1xf32>
    %152 = vector.broadcast %151 : vector<2x8x1xf32> to vector<2x8x8xf32>
    %153 = arith.divf %149, %152 : vector<2x8x8xf32>
    "tpu.trace_start"() <{level = 10 : i32, message = "bqk,bke->bqe"}> : () -> ()
    %cst_69 = arith.constant dense<0.000000e+00> : vector<2x8x32xf32>
    %154 = tpu.matmul %153, %135, %cst_69 {dimension_numbers = #tpu.dot_dimension_numbers<[2], [1], [1], [2], [0, 0, 0, 1, 1, 2], [0], [0]>} : vector<2x8x8xf32>, vector<2x8x32xf32>, vector<2x8x32xf32> -> vector<2x8x32xf32>
    "tpu.trace_stop"() : () -> ()
    %155 = vector.extract_strided_slice %76 {offsets = [0, 96], sizes = [16, 32], strides = [1, 1]} : vector<16x384xf32> to vector<16x32xf32>
    %156 = vector.shape_cast %155 : vector<16x32xf32> to vector<2x8x32xf32>
    %157 = vector.extract_strided_slice %76 {offsets = [0, 224], sizes = [16, 32], strides = [1, 1]} : vector<16x384xf32> to vector<16x32xf32>
    %158 = vector.shape_cast %157 : vector<16x32xf32> to vector<2x8x32xf32>
    %159 = vector.extract_strided_slice %76 {offsets = [0, 352], sizes = [16, 32], strides = [1, 1]} : vector<16x384xf32> to vector<16x32xf32>
    %160 = vector.shape_cast %159 : vector<16x32xf32> to vector<2x8x32xf32>
    "tpu.trace_start"() <{level = 10 : i32, message = "bqe,bke->bqk"}> : () -> ()
    %cst_70 = arith.constant dense<0.000000e+00> : vector<2x8x8xf32>
    %161 = tpu.matmul %156, %158, %cst_70 {dimension_numbers = #tpu.dot_dimension_numbers<[2], [2], [1], [1], [0, 0, 0, 1, 1, 1], [0], [0]>} : vector<2x8x32xf32>, vector<2x8x32xf32>, vector<2x8x8xf32> -> vector<2x8x8xf32>
    "tpu.trace_stop"() : () -> ()
    %162 = vector.broadcast %79 : vector<2x1x8xf32> to vector<2x8x8xf32>
    %163 = arith.mulf %162, %161 : vector<2x8x8xf32>
    %cst_71 = arith.constant 0.176776692 : f32
    %164 = vector.broadcast %cst_71 : f32 to vector<2x8x8xf32>
    %165 = arith.mulf %163, %164 : vector<2x8x8xf32>
    %cst_72 = arith.constant -1.000000e+06 : f32
    %166 = vector.broadcast %cst_72 : f32 to vector<2x1x8xf32>
    %167 = arith.mulf %77, %166 : vector<2x1x8xf32>
    %168 = vector.broadcast %167 : vector<2x1x8xf32> to vector<2x8x8xf32>
    %169 = arith.addf %165, %168 : vector<2x8x8xf32>
    %cst_73 = arith.constant dense<0xFF800000> : vector<2x8xf32>
    %170 = vector.multi_reduction <maximumf>, %169, %cst_73 [2] : vector<2x8x8xf32> to vector<2x8xf32>
    %171 = vector.shape_cast %170 : vector<2x8xf32> to vector<2x8x1xf32>
    %172 = vector.broadcast %171 : vector<2x8x1xf32> to vector<2x8x8xf32>
    %173 = arith.subf %169, %172 : vector<2x8x8xf32>
    %174 = math.exp %173 : vector<2x8x8xf32>
    %cst_74 = arith.constant dense<0.000000e+00> : vector<2x8xf32>
    %175 = vector.multi_reduction <add>, %174, %cst_74 [2] : vector<2x8x8xf32> to vector<2x8xf32>
    %176 = vector.shape_cast %175 : vector<2x8xf32> to vector<2x8x1xf32>
    %177 = vector.broadcast %176 : vector<2x8x1xf32> to vector<2x8x8xf32>
    %178 = arith.divf %174, %177 : vector<2x8x8xf32>
    "tpu.trace_start"() <{level = 10 : i32, message = "bqk,bke->bqe"}> : () -> ()
    %cst_75 = arith.constant dense<0.000000e+00> : vector<2x8x32xf32>
    %179 = tpu.matmul %178, %160, %cst_75 {dimension_numbers = #tpu.dot_dimension_numbers<[2], [1], [1], [2], [0, 0, 0, 1, 1, 2], [0], [0]>} : vector<2x8x8xf32>, vector<2x8x32xf32>, vector<2x8x32xf32> -> vector<2x8x32xf32>
    "tpu.trace_stop"() : () -> ()
    %180 = tpu.concatenate %104, %129, %154, %179 in 2 : vector<2x8x32xf32>, vector<2x8x32xf32>, vector<2x8x32xf32>, vector<2x8x32xf32> -> vector<2x8x128xf32>
    %181 = vector.shape_cast %180 : vector<2x8x128xf32> to vector<16x128xf32>
    %c0_76 = arith.constant 0 : index
    %c0_77 = arith.constant 0 : index
    %182 = vector.load %arg17[%c0_76, %c0_77] : memref<128x32xf32, #tpu.memory_space<vmem>>, vector<128x32xf32>
    %cst_78 = arith.constant dense<0.000000e+00> : vector<16x32xf32>
    %183 = tpu.matmul %181, %182, %cst_78 {dimension_numbers = #tpu.dot_dimension_numbers<[1], [0], [0], [1], [0, 0, 1, 1], [], []>} : vector<16x128xf32>, vector<128x32xf32>, vector<16x32xf32> -> vector<16x32xf32>
    %c0_79 = arith.constant 0 : index
    %c0_80 = arith.constant 0 : index
    %184 = vector.load %arg18[%c0_79, %c0_80] : memref<1x32xf32, #tpu.memory_space<vmem>>, vector<1x32xf32>
    %185 = vector.broadcast %184 : vector<1x32xf32> to vector<16x32xf32>
    %186 = arith.addf %183, %185 : vector<16x32xf32>
    %c0_81 = arith.constant 0 : index
    %c0_82 = arith.constant 0 : index
    %187 = vector.load %arg19[%c0_81, %c0_82] : memref<32x32xf32, #tpu.memory_space<vmem>>, vector<32x32xf32>
    %cst_83 = arith.constant dense<0.000000e+00> : vector<16x32xf32>
    %188 = tpu.matmul %186, %187, %cst_83 {dimension_numbers = #tpu.dot_dimension_numbers<[1], [0], [0], [1], [0, 0, 1, 1], [], []>} : vector<16x32xf32>, vector<32x32xf32>, vector<16x32xf32> -> vector<16x32xf32>
    %c0_84 = arith.constant 0 : index
    %c0_85 = arith.constant 0 : index
    %189 = vector.load %arg20[%c0_84, %c0_85] : memref<1x32xf32, #tpu.memory_space<vmem>>, vector<1x32xf32>
    %190 = vector.broadcast %189 : vector<1x32xf32> to vector<16x32xf32>
    %191 = arith.addf %188, %190 : vector<16x32xf32>
    %192 = arith.negf %191 : vector<16x32xf32>
    %193 = math.exp %192 : vector<16x32xf32>
    %cst_86 = arith.constant 1.000000e+00 : f32
    %194 = vector.broadcast %cst_86 : f32 to vector<16x32xf32>
    %195 = arith.addf %194, %193 : vector<16x32xf32>
    %196 = arith.divf %194, %195 : vector<16x32xf32>
    %197 = arith.mulf %191, %196 : vector<16x32xf32>
    %198 = arith.addf %197, %71 : vector<16x32xf32>
    %199 = vector.shape_cast %198 : vector<16x32xf32> to vector<2x8x32xf32>
    "tpu.trace_start"() <{level = 10 : i32, message = "bqn,bne->bqe"}> : () -> ()
    %cst_87 = arith.constant dense<0.000000e+00> : vector<2x1x32xf32>
    %200 = tpu.matmul %79, %199, %cst_87 {dimension_numbers = #tpu.dot_dimension_numbers<[2], [1], [1], [2], [0, 0, 0, 1, 1, 2], [0], [0]>} : vector<2x1x8xf32>, vector<2x8x32xf32>, vector<2x1x32xf32> -> vector<2x1x32xf32>
    "tpu.trace_stop"() : () -> ()
    %201 = vector.shape_cast %200 : vector<2x1x32xf32> to vector<2x32xf32>
    %cst_88 = arith.constant 1.000000e+00 : f32
    %202 = vector.broadcast %cst_88 : f32 to vector<2x8xf32>
    %203 = arith.subf %202, %1 : vector<2x8xf32>
    %cst_89 = arith.constant dense<0.000000e+00> : vector<2xf32>
    %204 = vector.multi_reduction <add>, %203, %cst_89 [1] : vector<2x8xf32> to vector<2xf32>
    %205 = vector.shape_cast %204 : vector<2xf32> to vector<2x1xf32>
    %cst_90 = arith.constant 1.000000e-07 : f32
    %206 = vector.broadcast %cst_90 : f32 to vector<2x1xf32>
    %207 = arith.addf %205, %206 : vector<2x1xf32>
    %208 = vector.broadcast %207 : vector<2x1xf32> to vector<2x32xf32>
    %209 = arith.divf %201, %208 : vector<2x32xf32>
    %c0_91 = arith.constant 0 : index
    %c0_92 = arith.constant 0 : index
    %210 = vector.load %arg21[%c0_91, %c0_92] : memref<32x32xf32, #tpu.memory_space<vmem>>, vector<32x32xf32>
    %cst_93 = arith.constant dense<0.000000e+00> : vector<2x32xf32>
    %211 = tpu.matmul %209, %210, %cst_93 {dimension_numbers = #tpu.dot_dimension_numbers<[1], [0], [0], [1], [0, 0, 1, 1], [], []>} : vector<2x32xf32>, vector<32x32xf32>, vector<2x32xf32> -> vector<2x32xf32>
    %c0_94 = arith.constant 0 : index
    %c0_95 = arith.constant 0 : index
    %212 = vector.load %arg22[%c0_94, %c0_95] : memref<8x32xf32, #tpu.memory_space<vmem>>, vector<8x32xf32>
    %cst_96 = arith.constant dense<0.000000e+00> : vector<2x32xf32>
    %213 = tpu.matmul %0, %212, %cst_96 {dimension_numbers = #tpu.dot_dimension_numbers<[1], [0], [0], [1], [0, 0, 1, 1], [], []>} : vector<2x8xf32>, vector<8x32xf32>, vector<2x32xf32> -> vector<2x32xf32>
    %214 = arith.addf %211, %213 : vector<2x32xf32>
    %c0_97 = arith.constant 0 : index
    %c0_98 = arith.constant 0 : index
    %215 = vector.load %arg23[%c0_97, %c0_98] : memref<1x32xf32, #tpu.memory_space<vmem>>, vector<1x32xf32>
    %216 = vector.broadcast %215 : vector<1x32xf32> to vector<2x32xf32>
    %217 = arith.addf %214, %216 : vector<2x32xf32>
    %218 = arith.negf %217 : vector<2x32xf32>
    %219 = math.exp %218 : vector<2x32xf32>
    %cst_99 = arith.constant 1.000000e+00 : f32
    %220 = vector.broadcast %cst_99 : f32 to vector<2x32xf32>
    %221 = arith.addf %220, %219 : vector<2x32xf32>
    %222 = arith.divf %220, %221 : vector<2x32xf32>
    %223 = arith.mulf %217, %222 : vector<2x32xf32>
    %c0_100 = arith.constant 0 : index
    %c0_101 = arith.constant 0 : index
    %224 = vector.load %arg24[%c0_100, %c0_101] : memref<2x32xf32, #tpu.memory_space<vmem>>, vector<2x32xf32>
    tpu.vector_store %arg24[%c0_100, %c0_101], %223 {strides = array<i32>} : memref<2x32xf32, #tpu.memory_space<vmem>>, vector<2x32xf32>,
    return
  }
  func.func @transform_0(%arg0: i32) -> (i32, i32) {
    %c0_i32 = arith.constant 0 : i32
    %c0_i32_0 = arith.constant 0 : i32
    return %arg0, %c0_i32 : i32, i32
  }
  func.func @transform_1(%arg0: i32) -> (i32, i32, i32) {
    %c0_i32 = arith.constant 0 : i32
    %c0_i32_0 = arith.constant 0 : i32
    %c0_i32_1 = arith.constant 0 : i32
    return %arg0, %c0_i32, %c0_i32_0 : i32, i32, i32
  }
  func.func @transform_2(%arg0: i32) -> (i32, i32, i32) {
    %c0_i32 = arith.constant 0 : i32
    %c0_i32_0 = arith.constant 0 : i32
    %c0_i32_1 = arith.constant 0 : i32
    return %arg0, %c0_i32, %c0_i32_0 : i32, i32, i32
  }
  func.func @transform_3(%arg0: i32) -> (i32, i32) {
    %c0_i32 = arith.constant 0 : i32
    %c0_i32_0 = arith.constant 0 : i32
    return %arg0, %c0_i32 : i32, i32
  }
  func.func @transform_4(%arg0: i32) -> (i32, i32) {
    %c0_i32 = arith.constant 0 : i32
    %c0_i32_0 = arith.constant 0 : i32
    %c0_i32_1 = arith.constant 0 : i32
    return %c0_i32, %c0_i32_0 : i32, i32
  }
  func.func @transform_5(%arg0: i32) -> (i32, i32) {
    %c0_i32 = arith.constant 0 : i32
    %c0_i32_0 = arith.constant 0 : i32
    %c0_i32_1 = arith.constant 0 : i32
    return %c0_i32, %c0_i32_0 : i32, i32
  }
  func.func @transform_6(%arg0: i32) -> (i32, i32) {
    %c0_i32 = arith.constant 0 : i32
    %c0_i32_0 = arith.constant 0 : i32
    %c0_i32_1 = arith.constant 0 : i32
    return %c0_i32, %c0_i32_0 : i32, i32
  }
  func.func @transform_7(%arg0: i32) -> (i32, i32) {
    %c0_i32 = arith.constant 0 : i32
    %c0_i32_0 = arith.constant 0 : i32
    %c0_i32_1 = arith.constant 0 : i32
    return %c0_i32, %c0_i32_0 : i32, i32
  }
  func.func @transform_8(%arg0: i32) -> (i32, i32) {
    %c0_i32 = arith.constant 0 : i32
    %c0_i32_0 = arith.constant 0 : i32
    %c0_i32_1 = arith.constant 0 : i32
    return %c0_i32, %c0_i32_0 : i32, i32
  }
  func.func @transform_9(%arg0: i32) -> (i32, i32) {
    %c0_i32 = arith.constant 0 : i32
    %c0_i32_0 = arith.constant 0 : i32
    %c0_i32_1 = arith.constant 0 : i32
    return %c0_i32, %c0_i32_0 : i32, i32
  }
  func.func @transform_10(%arg0: i32) -> (i32, i32) {
    %c0_i32 = arith.constant 0 : i32
    %c0_i32_0 = arith.constant 0 : i32
    %c0_i32_1 = arith.constant 0 : i32
    return %c0_i32, %c0_i32_0 : i32, i32
  }
  func.func @transform_11(%arg0: i32) -> (i32, i32) {
    %c0_i32 = arith.constant 0 : i32
    %c0_i32_0 = arith.constant 0 : i32
    %c0_i32_1 = arith.constant 0 : i32
    return %c0_i32, %c0_i32_0 : i32, i32
  }
  func.func @transform_12(%arg0: i32) -> (i32, i32) {
    %c0_i32 = arith.constant 0 : i32
    %c0_i32_0 = arith.constant 0 : i32
    %c0_i32_1 = arith.constant 0 : i32
    return %c0_i32, %c0_i32_0 : i32, i32
  }
  func.func @transform_13(%arg0: i32) -> (i32, i32) {
    %c0_i32 = arith.constant 0 : i32
    %c0_i32_0 = arith.constant 0 : i32
    %c0_i32_1 = arith.constant 0 : i32
    return %c0_i32, %c0_i32_0 : i32, i32
  }
  func.func @transform_14(%arg0: i32) -> (i32, i32) {
    %c0_i32 = arith.constant 0 : i32
    %c0_i32_0 = arith.constant 0 : i32
    %c0_i32_1 = arith.constant 0 : i32
    return %c0_i32, %c0_i32_0 : i32, i32
  }
  func.func @transform_15(%arg0: i32) -> (i32, i32) {
    %c0_i32 = arith.constant 0 : i32
    %c0_i32_0 = arith.constant 0 : i32
    %c0_i32_1 = arith.constant 0 : i32
    return %c0_i32, %c0_i32_0 : i32, i32
  }
  func.func @transform_16(%arg0: i32) -> (i32, i32) {
    %c0_i32 = arith.constant 0 : i32
    %c0_i32_0 = arith.constant 0 : i32
    %c0_i32_1 = arith.constant 0 : i32
    return %c0_i32, %c0_i32_0 : i32, i32
  }
  func.func @transform_17(%arg0: i32) -> (i32, i32) {
    %c0_i32 = arith.constant 0 : i32
    %c0_i32_0 = arith.constant 0 : i32
    %c0_i32_1 = arith.constant 0 : i32
    return %c0_i32, %c0_i32_0 : i32, i32
  }
  func.func @transform_18(%arg0: i32) -> (i32, i32) {
    %c0_i32 = arith.constant 0 : i32
    %c0_i32_0 = arith.constant 0 : i32
    %c0_i32_1 = arith.constant 0 : i32
    return %c0_i32, %c0_i32_0 : i32, i32
  }
  func.func @transform_19(%arg0: i32) -> (i32, i32) {
    %c0_i32 = arith.constant 0 : i32
    %c0_i32_0 = arith.constant 0 : i32
    %c0_i32_1 = arith.constant 0 : i32
    return %c0_i32, %c0_i32_0 : i32, i32
  }
  func.func @transform_20(%arg0: i32) -> (i32, i32) {
    %c0_i32 = arith.constant 0 : i32
    %c0_i32_0 = arith.constant 0 : i32
    %c0_i32_1 = arith.constant 0 : i32
    return %c0_i32, %c0_i32_0 : i32, i32
  }
  func.func @transform_21(%arg0: i32) -> (i32, i32) {
    %c0_i32 = arith.constant 0 : i32
    %c0_i32_0 = arith.constant 0 : i32
    %c0_i32_1 = arith.constant 0 : i32
    return %c0_i32, %c0_i32_0 : i32, i32
  }
  func.func @transform_22(%arg0: i32) -> (i32, i32) {
    %c0_i32 = arith.constant 0 : i32
    %c0_i32_0 = arith.constant 0 : i32
    %c0_i32_1 = arith.constant 0 : i32
    return %c0_i32, %c0_i32_0 : i32, i32
  }
  func.func @transform_23(%arg0: i32) -> (i32, i32) {
    %c0_i32 = arith.constant 0 : i32
    %c0_i32_0 = arith.constant 0 : i32
    return %arg0, %c0_i32 : i32, i32
  }
}

</mosaic_0001>

<llo_original>
// kernel: tpu_custom_call.1
$region0: #{tpu_custom_call.1}
  #allocation0 [shape = 'u32[]', space=smem, size = 0x4, offset = 0x4, fixed_abs, tag = 'smem constant byte address 0x4 - core index']
  #allocation1 [shape = 'u32[144,128]{1,0:T(1,128)}', space=vmem, size = 0x12000, scoped, tag = 'internal scratch']
  #allocation2 [shape = 'f32[2,8,32]{2,1,0:T(8,128)}', space=vmem, size = 0x2000, scoped, tag = 'scratch operand']
  %s0 = inlined_call_operand.hbm [shape: f32[2,8], index: 0, kind: input, shape index: {}]
  %s1 = inlined_call_operand.vmem [shape: f32[2,5,6], index: 1, kind: input, shape index: {}]
  %s2 = inlined_call_operand.vmem [shape: f32[2,3,4], index: 2, kind: input, shape index: {}]
  %s3 = inlined_call_operand.hbm [shape: f32[2,8], index: 3, kind: input, shape index: {}]
  %s4 = inlined_call_operand.hbm [shape: f32[8,32], index: 4, kind: input, shape index: {}]
  %s5 = inlined_call_operand.hbm [shape: f32[6,32], index: 5, kind: input, shape index: {}]
  %s6 = inlined_call_operand.hbm [shape: f32[1,32], index: 6, kind: input, shape index: {}]
  %s7 = inlined_call_operand.vmem [shape: f32[32,32], index: 7, kind: input, shape index: {}]
  %s8 = inlined_call_operand.hbm [shape: f32[1,32], index: 8, kind: input, shape index: {}]
  %s9 = inlined_call_operand.hbm [shape: f32[8,32], index: 9, kind: input, shape index: {}]
  %s10 = inlined_call_operand.hbm [shape: f32[4,32], index: 10, kind: input, shape index: {}]
  %s11 = inlined_call_operand.hbm [shape: f32[1,32], index: 11, kind: input, shape index: {}]
  %s12 = inlined_call_operand.vmem [shape: f32[32,32], index: 12, kind: input, shape index: {}]
  %s13 = inlined_call_operand.hbm [shape: f32[1,32], index: 13, kind: input, shape index: {}]
  %s14 = inlined_call_operand.vmem [shape: f32[32,384], index: 14, kind: input, shape index: {}]
  %s15 = inlined_call_operand.hbm [shape: f32[1,384], index: 15, kind: input, shape index: {}]
  %s16 = inlined_call_operand.vmem [shape: f32[128,32], index: 16, kind: input, shape index: {}]
  %s17 = inlined_call_operand.hbm [shape: f32[1,32], index: 17, kind: input, shape index: {}]
  %s18 = inlined_call_operand.vmem [shape: f32[32,32], index: 18, kind: input, shape index: {}]
  %s19 = inlined_call_operand.vmem [shape: f32[1,32], index: 19, kind: input, shape index: {}]
  %s20 = inlined_call_operand.vmem [shape: f32[32,32], index: 20, kind: input, shape index: {}]
  %s21 = inlined_call_operand.vmem [shape: f32[8,32], index: 21, kind: input, shape index: {}]
  %s22 = inlined_call_operand.vmem [shape: f32[1,32], index: 22, kind: input, shape index: {}]
  %s23 = inlined_call_operand.hbm [shape: f32[2,32], index: 23, kind: output, shape index: {}]
  %s24 = sld [smem:[#allocation0]]
  $region150: #{tpu_custom_call.1} parent=0
    _
  %s26 = ssub.s32 1, %s24
  %s27 = scalar_select 0, %s26, %s24
  $region1: #{tpu_custom_call.1} parent=0
    #allocation3 [shape = 'u8[1024]{0}', space=vmem, size = 0x400, scoped, tag = 'input window, operand 0, single buffered']
    #allocation4 [shape = 's32[1]{0}', space=sflag, size = 0x4, scoped, tag = 'scoped memory for tpu_custom_call.1']
    #allocation5 [shape = 's32[1]{0}', space=sflag, size = 0x4, scoped, tag = 'scoped memory for tpu_custom_call.1']
    #allocation6 [shape = 'u8[1024]{0}', space=vmem, size = 0x400, scoped, tag = 'input window, operand 3, single buffered']
    #allocation7 [shape = 's32[1]{0}', space=sflag, size = 0x4, scoped, tag = 'scoped memory for tpu_custom_call.1']
    #allocation8 [shape = 'u8[4096]{0}', space=vmem, size = 0x1000, scoped, tag = 'input window, operand 4, single buffered']
    #allocation9 [shape = 'u8[4096]{0}', space=vmem, size = 0x1000, scoped, tag = 'input window, operand 5, single buffered']
    #allocation10 [shape = 's32[1]{0}', space=sflag, size = 0x4, scoped, tag = 'scoped memory for tpu_custom_call.1']
    #allocation11 [shape = 'u8[512]{0}', space=vmem, size = 0x400, scoped, tag = 'input window, operand 6, single buffered']
    #allocation12 [shape = 'u8[512]{0}', space=vmem, size = 0x400, scoped, tag = 'input window, operand 8, single buffered']
    #allocation13 [shape = 's32[1]{0}', space=sflag, size = 0x4, scoped, tag = 'scoped memory for tpu_custom_call.1']
    #allocation14 [shape = 'u8[4096]{0}', space=vmem, size = 0x1000, scoped, tag = 'input window, operand 9, single buffered']
    #allocation15 [shape = 'u8[2048]{0}', space=vmem, size = 0x800, scoped, tag = 'input window, operand 10, single buffered']
    #allocation16 [shape = 's32[1]{0}', space=sflag, size = 0x4, scoped, tag = 'scoped memory for tpu_custom_call.1']
    #allocation17 [shape = 'u8[512]{0}', space=vmem, size = 0x400, scoped, tag = 'input window, operand 11, single buffered']
    #allocation18 [shape = 'u8[512]{0}', space=vmem, size = 0x400, scoped, tag = 'input window, operand 13, single buffered']
    #allocation19 [shape = 's32[1]{0}', space=sflag, size = 0x4, scoped, tag = 'scoped memory for tpu_custom_call.1']
    #allocation20 [shape = 'u8[1536]{0}', space=vmem, size = 0x800, scoped, tag = 'input window, operand 15, single buffered']
    #allocation21 [shape = 'u8[512]{0}', space=vmem, size = 0x400, scoped, tag = 'input window, operand 17, single buffered']
    #allocation22 [shape = 's32[1]{0}', space=sflag, size = 0x4, scoped, tag = 'scoped memory for tpu_custom_call.1']
    #allocation23 [shape = 'u8[1024]{0}', space=vmem, size = 0x400, scoped, tag = 'output window, operand 0, single buffered']
    %28 = vsyncpa [#allocation4], 0
    %29 = vsyncpa [#allocation7], 0
    %30 = vsyncpa [#allocation10], 0
    %31 = vsyncpa [#allocation13], 0
    %32 = vsyncpa [#allocation16], 0
    %33 = vsyncpa [#allocation19], 0
    %34 = vsyncpa [#allocation22], 0
    %35 = vsyncpa [#allocation5], 0
    // Predicated region
    $region2: #{tpu_custom_call.1} parent=1 // pred_check
      _
    $region3: #{tpu_custom_call.1} parent=1 // pred_check_branch
      %37 = sbr.rel (0) target = $region5
    $region4: #{tpu_custom_call.1} parent=1 // pred_region
      %s39 = ssub.s32 32, 32
      %40 = vsyncadd [#allocation4], %s39
      %s42 = sshll.u32 [#allocation3], 4
      %s43 = int_to_ptr.vmem [resolvable:$true] %s42
      %45 = dma.hbm_to_vmem [thread:$0]  %s0, 32, %s43, [#allocation4]
    $region5: #{tpu_custom_call.1} parent=1 // pred_fallthru
      _
    // Predicated region
    $region6: #{tpu_custom_call.1} parent=1 // pred_check
      _
    $region7: #{tpu_custom_call.1} parent=1 // pred_check_branch
      %47 = sbr.rel (0) target = $region9
    $region8: #{tpu_custom_call.1} parent=1 // pred_region
      _
    $region9: #{tpu_custom_call.1} parent=1 // pred_fallthru
      _
    // Predicated region
    $region10: #{tpu_custom_call.1} parent=1 // pred_check
      _
    $region11: #{tpu_custom_call.1} parent=1 // pred_check_branch
      %49 = sbr.rel (0) target = $region13
    $region12: #{tpu_custom_call.1} parent=1 // pred_region
      _
    $region13: #{tpu_custom_call.1} parent=1 // pred_fallthru
      _
    // Predicated region
    $region14: #{tpu_custom_call.1} parent=1 // pred_check
      _
    $region15: #{tpu_custom_call.1} parent=1 // pred_check_branch
      %51 = sbr.rel (0) target = $region17
    $region16: #{tpu_custom_call.1} parent=1 // pred_region
      %s53 = ssub.s32 32, 32
      %54 = vsyncadd [#allocation7], %s53
      %s56 = sshll.u32 [#allocation6], 4
      %s57 = int_to_ptr.vmem [resolvable:$true] %s56
      %59 = dma.hbm_to_vmem [thread:$0]  %s3, 32, %s57, [#allocation7]
    $region17: #{tpu_custom_call.1} parent=1 // pred_fallthru
      _
    // Predicated region
    $region18: #{tpu_custom_call.1} parent=1 // pred_check
      _
    $region19: #{tpu_custom_call.1} parent=1 // pred_check_branch
      %61 = sbr.rel (0) target = $region21
    $region20: #{tpu_custom_call.1} parent=1 // pred_region
      %s63 = ssub.s32 128, 128
      %64 = vsyncadd [#allocation7], %s63
      %s66 = sshll.u32 [#allocation8], 4
      %s67 = int_to_ptr.vmem [resolvable:$true] %s66
      %69 = dma.hbm_to_vmem [thread:$0]  %s4, 128, %s67, [#allocation7]
    $region21: #{tpu_custom_call.1} parent=1 // pred_fallthru
      _
    // Predicated region
    $region22: #{tpu_custom_call.1} parent=1 // pred_check
      _
    $region23: #{tpu_custom_call.1} parent=1 // pred_check_branch
      %71 = sbr.rel (0) target = $region25
    $region24: #{tpu_custom_call.1} parent=1 // pred_region
      %s73 = ssub.s32 128, 128
      %74 = vsyncadd [#allocation10], %s73
      %s76 = sshll.u32 [#allocation9], 4
      %s77 = int_to_ptr.vmem [resolvable:$true] %s76
      %79 = dma.hbm_to_vmem [thread:$0]  %s5, 128, %s77, [#allocation10]
    $region25: #{tpu_custom_call.1} parent=1 // pred_fallthru
      _
    // Predicated region
    $region26: #{tpu_custom_call.1} parent=1 // pred_check
      _
    $region27: #{tpu_custom_call.1} parent=1 // pred_check_branch
      %81 = sbr.rel (0) target = $region29
    $region28: #{tpu_custom_call.1} parent=1 // pred_region
      %s83 = ssub.s32 16, 16
      %84 = vsyncadd [#allocation10], %s83
      %s86 = sshll.u32 [#allocation11], 4
      %s87 = int_to_ptr.vmem [resolvable:$true] %s86
      %89 = dma.hbm_to_vmem [thread:$0]  %s6, 16, %s87, [#allocation10]
    $region29: #{tpu_custom_call.1} parent=1 // pred_fallthru
      _
    // Predicated region
    $region30: #{tpu_custom_call.1} parent=1 // pred_check
      _
    $region31: #{tpu_custom_call.1} parent=1 // pred_check_branch
      %91 = sbr.rel (0) target = $region33
    $region32: #{tpu_custom_call.1} parent=1 // pred_region
      _
    $region33: #{tpu_custom_call.1} parent=1 // pred_fallthru
      _
    // Predicated region
    $region34: #{tpu_custom_call.1} parent=1 // pred_check
      _
    $region35: #{tpu_custom_call.1} parent=1 // pred_check_branch
      %93 = sbr.rel (0) target = $region37
    $region36: #{tpu_custom_call.1} parent=1 // pred_region
      %s95 = ssub.s32 16, 16
      %96 = vsyncadd [#allocation13], %s95
      %s98 = sshll.u32 [#allocation12], 4
      %s99 = int_to_ptr.vmem [resolvable:$true] %s98
      %101 = dma.hbm_to_vmem [thread:$0]  %s8, 16, %s99, [#allocation13]
    $region37: #{tpu_custom_call.1} parent=1 // pred_fallthru
      _
    // Predicated region
    $region38: #{tpu_custom_call.1} parent=1 // pred_check
      _
    $region39: #{tpu_custom_call.1} parent=1 // pred_check_branch
      %103 = sbr.rel (0) target = $region41
    $region40: #{tpu_custom_call.1} parent=1 // pred_region
      %s105 = ssub.s32 128, 128
      %106 = vsyncadd [#allocation13], %s105
      %s108 = sshll.u32 [#allocation14], 4
      %s109 = int_to_ptr.vmem [resolvable:$true] %s108
      %111 = dma.hbm_to_vmem [thread:$0]  %s9, 128, %s109, [#allocation13]
    $region41: #{tpu_custom_call.1} parent=1 // pred_fallthru
      _
    // Predicated region
    $region42: #{tpu_custom_call.1} parent=1 // pred_check
      _
    $region43: #{tpu_custom_call.1} parent=1 // pred_check_branch
      %113 = sbr.rel (0) target = $region45
    $region44: #{tpu_custom_call.1} parent=1 // pred_region
      %s115 = ssub.s32 64, 64
      %116 = vsyncadd [#allocation16], %s115
      %s118 = sshll.u32 [#allocation15], 4
      %s119 = int_to_ptr.vmem [resolvable:$true] %s118
      %121 = dma.hbm_to_vmem [thread:$0]  %s10, 64, %s119, [#allocation16]
    $region45: #{tpu_custom_call.1} parent=1 // pred_fallthru
      _
    // Predicated region
    $region46: #{tpu_custom_call.1} parent=1 // pred_check
      _
    $region47: #{tpu_custom_call.1} parent=1 // pred_check_branch
      %123 = sbr.rel (0) target = $region49
    $region48: #{tpu_custom_call.1} parent=1 // pred_region
      %s125 = ssub.s32 16, 16
      %126 = vsyncadd [#allocation16], %s125
      %s128 = sshll.u32 [#allocation17], 4
      %s129 = int_to_ptr.vmem [resolvable:$true] %s128
      %131 = dma.hbm_to_vmem [thread:$0]  %s11, 16, %s129, [#allocation16]
    $region49: #{tpu_custom_call.1} parent=1 // pred_fallthru
      _
    // Predicated region
    $region50: #{tpu_custom_call.1} parent=1 // pred_check
      _
    $region51: #{tpu_custom_call.1} parent=1 // pred_check_branch
      %133 = sbr.rel (0) target = $region53
    $region52: #{tpu_custom_call.1} parent=1 // pred_region
      _
    $region53: #{tpu_custom_call.1} parent=1 // pred_fallthru
      _
    // Predicated region
    $region54: #{tpu_custom_call.1} parent=1 // pred_check
      _
    $region55: #{tpu_custom_call.1} parent=1 // pred_check_branch
      %135 = sbr.rel (0) target = $region57
    $region56: #{tpu_custom_call.1} parent=1 // pred_region
      %s137 = ssub.s32 16, 16
      %138 = vsyncadd [#allocation19], %s137
      %s140 = sshll.u32 [#allocation18], 4
      %s141 = int_to_ptr.vmem [resolvable:$true] %s140
      %143 = dma.hbm_to_vmem [thread:$0]  %s13, 16, %s141, [#allocation19]
    $region57: #{tpu_custom_call.1} parent=1 // pred_fallthru
      _
    // Predicated region
    $region58: #{tpu_custom_call.1} parent=1 // pred_check
      _
    $region59: #{tpu_custom_call.1} parent=1 // pred_check_branch
      %145 = sbr.rel (0) target = $region61
    $region60: #{tpu_custom_call.1} parent=1 // pred_region
      _
    $region61: #{tpu_custom_call.1} parent=1 // pred_fallthru
      _
    // Predicated region
    $region62: #{tpu_custom_call.1} parent=1 // pred_check
      _
    $region63: #{tpu_custom_call.1} parent=1 // pred_check_branch
      %147 = sbr.rel (0) target = $region65
    $region64: #{tpu_custom_call.1} parent=1 // pred_region
      %s149 = ssub.s32 48, 48
      %150 = vsyncadd [#allocation19], %s149
      %s152 = sshll.u32 [#allocation20], 4
      %s153 = int_to_ptr.vmem [resolvable:$true] %s152
      %155 = dma.hbm_to_vmem [thread:$0]  %s15, 48, %s153, [#allocation19]
    $region65: #{tpu_custom_call.1} parent=1 // pred_fallthru
      _
    // Predicated region
    $region66: #{tpu_custom_call.1} parent=1 // pred_check
      _
    $region67: #{tpu_custom_call.1} parent=1 // pred_check_branch
      %157 = sbr.rel (0) target = $region69
    $region68: #{tpu_custom_call.1} parent=1 // pred_region
      _
    $region69: #{tpu_custom_call.1} parent=1 // pred_fallthru
      _
    // Predicated region
    $region70: #{tpu_custom_call.1} parent=1 // pred_check
      _
    $region71: #{tpu_custom_call.1} parent=1 // pred_check_branch
      %159 = sbr.rel (0) target = $region73
    $region72: #{tpu_custom_call.1} parent=1 // pred_region
      %s161 = ssub.s32 16, 16
      %162 = vsyncadd [#allocation22], %s161
      %s164 = sshll.u32 [#allocation21], 4
      %s165 = int_to_ptr.vmem [resolvable:$true] %s164
      %167 = dma.hbm_to_vmem [thread:$0]  %s17, 16, %s165, [#allocation22]
    $region73: #{tpu_custom_call.1} parent=1 // pred_fallthru
      _
    // Predicated region
    $region74: #{tpu_custom_call.1} parent=1 // pred_check
      _
    $region75: #{tpu_custom_call.1} parent=1 // pred_check_branch
      %169 = sbr.rel (0) target = $region77
    $region76: #{tpu_custom_call.1} parent=1 // pred_region
      _
    $region77: #{tpu_custom_call.1} parent=1 // pred_fallthru
      _
    // Predicated region
    $region78: #{tpu_custom_call.1} parent=1 // pred_check
      _
    $region79: #{tpu_custom_call.1} parent=1 // pred_check_branch
      %171 = sbr.rel (0) target = $region81
    $region80: #{tpu_custom_call.1} parent=1 // pred_region
      _
    $region81: #{tpu_custom_call.1} parent=1 // pred_fallthru
      _
    // Predicated region
    $region82: #{tpu_custom_call.1} parent=1 // pred_check
      _
    $region83: #{tpu_custom_call.1} parent=1 // pred_check_branch
      %173 = sbr.rel (0) target = $region85
    $region84: #{tpu_custom_call.1} parent=1 // pred_region
      _
    $region85: #{tpu_custom_call.1} parent=1 // pred_fallthru
      _
    // Predicated region
    $region86: #{tpu_custom_call.1} parent=1 // pred_check
      _
    $region87: #{tpu_custom_call.1} parent=1 // pred_check_branch
      %175 = sbr.rel (0) target = $region89
    $region88: #{tpu_custom_call.1} parent=1 // pred_region
      _
    $region89: #{tpu_custom_call.1} parent=1 // pred_fallthru
      _
    // Predicated region
    $region90: #{tpu_custom_call.1} parent=1 // pred_check
      _
    $region91: #{tpu_custom_call.1} parent=1 // pred_check_branch
      %177 = sbr.rel (0) target = $region93
    $region92: #{tpu_custom_call.1} parent=1 // pred_region
      _
    $region93: #{tpu_custom_call.1} parent=1 // pred_fallthru
      _
    // Predicated region
    $region94: #{tpu_custom_call.1} parent=1 // pred_check
      _
    $region95: #{tpu_custom_call.1} parent=1 // pred_check_branch
      %179 = sbr.rel (0) target = $region97
    $region96: #{tpu_custom_call.1} parent=1 // pred_region
      %180 = dma.done [#allocation4], 32
    $region97: #{tpu_custom_call.1} parent=1 // pred_fallthru
      _
    // Predicated region
    $region98: #{tpu_custom_call.1} parent=1 // pred_check
      _
    $region99: #{tpu_custom_call.1} parent=1 // pred_check_branch
      %182 = sbr.rel (0) target = $region101
    $region100: #{tpu_custom_call.1} parent=1 // pred_region
      %183 = dma.done [#allocation7], 32
    $region101: #{tpu_custom_call.1} parent=1 // pred_fallthru
      _
    // Predicated region
    $region102: #{tpu_custom_call.1} parent=1 // pred_check
      _
    $region103: #{tpu_custom_call.1} parent=1 // pred_check_branch
      %185 = sbr.rel (0) target = $region105
    $region104: #{tpu_custom_call.1} parent=1 // pred_region
      %186 = dma.done [#allocation7], 128
    $region105: #{tpu_custom_call.1} parent=1 // pred_fallthru
      _
    // Predicated region
    $region106: #{tpu_custom_call.1} parent=1 // pred_check
      _
    $region107: #{tpu_custom_call.1} parent=1 // pred_check_branch
      %188 = sbr.rel (0) target = $region109
    $region108: #{tpu_custom_call.1} parent=1 // pred_region
      %189 = dma.done [#allocation10], 128
    $region109: #{tpu_custom_call.1} parent=1 // pred_fallthru
      _
    // Predicated region
    $region110: #{tpu_custom_call.1} parent=1 // pred_check
      _
    $region111: #{tpu_custom_call.1} parent=1 // pred_check_branch
      %191 = sbr.rel (0) target = $region113
    $region112: #{tpu_custom_call.1} parent=1 // pred_region
      %192 = dma.done [#allocation10], 16
    $region113: #{tpu_custom_call.1} parent=1 // pred_fallthru
      _
    // Predicated region
    $region114: #{tpu_custom_call.1} parent=1 // pred_check
      _
    $region115: #{tpu_custom_call.1} parent=1 // pred_check_branch
      %194 = sbr.rel (0) target = $region117
    $region116: #{tpu_custom_call.1} parent=1 // pred_region
      %195 = dma.done [#allocation13], 16
    $region117: #{tpu_custom_call.1} parent=1 // pred_fallthru
      _
    // Predicated region
    $region118: #{tpu_custom_call.1} parent=1 // pred_check
      _
    $region119: #{tpu_custom_call.1} parent=1 // pred_check_branch
      %197 = sbr.rel (0) target = $region121
    $region120: #{tpu_custom_call.1} parent=1 // pred_region
      %198 = dma.done [#allocation13], 128
    $region121: #{tpu_custom_call.1} parent=1 // pred_fallthru
      _
    // Predicated region
    $region122: #{tpu_custom_call.1} parent=1 // pred_check
      _
    $region123: #{tpu_custom_call.1} parent=1 // pred_check_branch
      %200 = sbr.rel (0) target = $region125
    $region124: #{tpu_custom_call.1} parent=1 // pred_region
      %201 = dma.done [#allocation16], 64
    $region125: #{tpu_custom_call.1} parent=1 // pred_fallthru
      _
    // Predicated region
    $region126: #{tpu_custom_call.1} parent=1 // pred_check
      _
    $region127: #{tpu_custom_call.1} parent=1 // pred_check_branch
      %203 = sbr.rel (0) target = $region129
    $region128: #{tpu_custom_call.1} parent=1 // pred_region
      %204 = dma.done [#allocation16], 16
    $region129: #{tpu_custom_call.1} parent=1 // pred_fallthru
      _
    // Predicated region
    $region130: #{tpu_custom_call.1} parent=1 // pred_check
      _
    $region131: #{tpu_custom_call.1} parent=1 // pred_check_branch
      %206 = sbr.rel (0) target = $region133
    $region132: #{tpu_custom_call.1} parent=1 // pred_region
      %207 = dma.done [#allocation19], 16
    $region133: #{tpu_custom_call.1} parent=1 // pred_fallthru
      _
    // Predicated region
    $region134: #{tpu_custom_call.1} parent=1 // pred_check
      _
    $region135: #{tpu_custom_call.1} parent=1 // pred_check_branch
      %209 = sbr.rel (0) target = $region137
    $region136: #{tpu_custom_call.1} parent=1 // pred_region
      %210 = dma.done [#allocation19], 48
    $region137: #{tpu_custom_call.1} parent=1 // pred_fallthru
      _
    // Predicated region
    $region138: #{tpu_custom_call.1} parent=1 // pred_check
      _
    $region139: #{tpu_custom_call.1} parent=1 // pred_check_branch
      %212 = sbr.rel (0) target = $region141
    $region140: #{tpu_custom_call.1} parent=1 // pred_region
      %213 = dma.done [#allocation22], 16
    $region141: #{tpu_custom_call.1} parent=1 // pred_fallthru
      _
    %v214 = vld [vmem:[#allocation3] sm:$0x3]
    %v215 = vld [vmem:[#allocation6] sm:$0x3]
    %v216 = vld [vmem:[%s1] sm:$0x1f]
    %v217 = vld [vmem:[%s1 + $0x8] sm:$0x1f]
    %v220 = vcombine.high %v216, %v216
    %v222 = vunpack.c.l.s4 1966171168
    %v223 = vunpack.c.0.s8 %v222
    %v224 = vlaneseq
    %v225 = vshrl.u32 %v224, 7
    %v226 = vsub.s32 %v223, %v225
    %v227 = vrot.slane %v216, %v226
    %v229 = vunpack.c.l.s4 1966171168
    %v230 = vunpack.c.0.s8 %v229
    %v231 = vlaneseq
    %v232 = vshrl.u32 %v231, 7
    %v233 = vsub.s32 %v230, %v232
    %v234 = vrot.slane %v220, %v233
    %v235 = vcombine.high %v227, %v227
    %v237 = vunpack.c.l.s4 1966171168
    %v238 = vunpack.c.0.s8 %v237
    %v239 = vlaneseq
    %v240 = vshrl.u32 %v239, 7
    %v241 = vsub.s32 %v238, %v240
    %v242 = vrot.slane %v227, %v241
    %v244 = vunpack.c.l.s4 1966171168
    %v245 = vunpack.c.0.s8 %v244
    %v246 = vlaneseq
    %v247 = vshrl.u32 %v246, 7
    %v248 = vsub.s32 %v245, %v247
    %v249 = vrot.slane %v234, %v248
    %v251 = vunpack.c.l.s4 1966171168
    %v252 = vunpack.c.0.s8 %v251
    %v253 = vlaneseq
    %v254 = vshrl.u32 %v253, 7
    %v255 = vsub.s32 %v252, %v254
    %v256 = vrot.slane %v235, %v255
    %v257 = vcombine.high %v242, %v242
    %v258 = vcombine.high %v256, %v256
    %v259 = vcombine.high %v217, %v217
    %v261 = vunpack.c.l.s4 1966171168
    %v262 = vunpack.c.0.s8 %v261
    %v263 = vlaneseq
    %v264 = vshrl.u32 %v263, 7
    %v265 = vsub.s32 %v262, %v264
    %v266 = vrot.slane %v217, %v265
    %v268 = vunpack.c.l.s4 1966171168
    %v269 = vunpack.c.0.s8 %v268
    %v270 = vlaneseq
    %v271 = vshrl.u32 %v270, 7
    %v272 = vsub.s32 %v269, %v271
    %v273 = vrot.slane %v259, %v272
    %v274 = vcombine.high %v266, %v266
    %v276 = vunpack.c.l.s4 1966171168
    %v277 = vunpack.c.0.s8 %v276
    %v278 = vlaneseq
    %v279 = vshrl.u32 %v278, 7
    %v280 = vsub.s32 %v277, %v279
    %v281 = vrot.slane %v266, %v280
    %v283 = vunpack.c.l.s4 1966171168
    %v284 = vunpack.c.0.s8 %v283
    %v285 = vlaneseq
    %v286 = vshrl.u32 %v285, 7
    %v287 = vsub.s32 %v284, %v286
    %v288 = vrot.slane %v273, %v287
    %v290 = vunpack.c.l.s4 1966171168
    %v291 = vunpack.c.0.s8 %v290
    %v292 = vlaneseq
    %v293 = vshrl.u32 %v292, 7
    %v294 = vsub.s32 %v291, %v293
    %v295 = vrot.slane %v274, %v294
    %v296 = vcombine.high %v281, %v281
    %v297 = vcombine.high %v295, %v295
    %v298 = vld [vmem:[#allocation8] sm:$0xff]
    %vm299 = vcmask 64512
    %v301 = vsel %vm299, %v214, 0
    %303 = vmatprep.subr.mxu0 0.0
    %304 = vmatpush1.msra.mxu0 %v298
    %305 = vmatprep.subr.mxu0 0.0
    %306 = vmatpush1.msra.mxu0 0.0
    %307 = vmatprep.subr.mxu0 0.0
    %308 = vmatpush1.msra.mxu0 0.0
    %309 = vmatprep.subr.mxu0 0.0
    %310 = vmatpush1.msra.mxu0 0.0
    %311 = vmatprep.subr.mxu0 0.0
    %312 = vmatpush1.msra.mxu0 0.0
    %313 = vmatprep.subr.mxu0 0.0
    %314 = vmatpush1.msra.mxu0 0.0
    %315 = vmatprep.subr.mxu0 0.0
    %316 = vmatpush1.msra.mxu0 0.0
    %317 = vmatprep.subr.mxu0 0.0
    %318 = vmatpush1.msra.mxu0 0.0
    %319 = vmatprep.subr.mxu0 0.0
    %320 = vmatpush1.msra.mxu0 0.0
    %321 = vmatprep.subr.mxu0 0.0
    %322 = vmatpush1.msra.mxu0 0.0
    %323 = vmatprep.subr.mxu0 0.0
    %324 = vmatpush1.msra.mxu0 0.0
    %325 = vmatprep.subr.mxu0 0.0
    %326 = vmatpush1.msra.mxu0 0.0
    %327 = vmatprep.subr.mxu0 0.0
    %328 = vmatpush1.msra.mxu0 0.0
    %329 = vmatprep.subr.mxu0 0.0
    %330 = vmatpush1.msra.mxu0 0.0
    %331 = vmatprep.subr.mxu0 0.0
    %332 = vmatpush1.msra.mxu0 0.0
    %333 = vmatprep.subr.mxu0 0.0
    %334 = vmatpush1.msra.mxu0 0.0
    %335 = vmatprep.subr.mxu0 0.0
    %336 = vmatpush1.msra.mxu0 0.0
    %337 = vmatprep.subr.mxu0 0.0
    %338 = vmatpush1.msra.mxu0 0.0
    %339 = vmatprep.subr.mxu0 0.0
    %340 = vmatpush1.msra.mxu0 0.0
    %341 = vmatprep.subr.mxu0 0.0
    %342 = vmatpush1.msra.mxu0 0.0
    %343 = vmatprep.subr.mxu0 0.0
    %344 = vmatpush1.msra.mxu0 0.0
    %345 = vmatprep.subr.mxu0 0.0
    %346 = vmatpush1.msra.mxu0 0.0
    %347 = vmatprep.subr.mxu0 0.0
    %348 = vmatpush1.msra.mxu0 0.0
    %349 = vmatprep.subr.mxu0 0.0
    %350 = vmatpush1.msra.mxu0 0.0
    %351 = vmatprep.subr.mxu0 0.0
    %352 = vmatpush1.msra.mxu0 0.0
    %353 = vmatprep.subr.mxu0 0.0
    %354 = vmatpush1.msra.mxu0 0.0
    %355 = vmatprep.subr.mxu0 0.0
    %356 = vmatpush1.msra.mxu0 0.0
    %357 = vmatprep.subr.mxu0 0.0
    %358 = vmatpush1.msra.mxu0 0.0
    %359 = vmatprep.subr.mxu0 0.0
    %360 = vmatpush1.msra.mxu0 0.0
    %361 = vmatprep.subr.mxu0 0.0
    %362 = vmatpush1.msra.mxu0 0.0
    %363 = vmatprep.subr.mxu0 0.0
    %364 = vmatpush1.msra.mxu0 0.0
    %365 = vmatprep.subr.mxu0 0.0
    %366 = vmatpush1.msra.mxu0 0.0
    %367 = vmatprep.mubr.f32.mxu0 0.0
    %368 = vmatmul.mubr.f32.gmra.mrb[0].mxu0 %v301
    %v369 = vpop.f32.mrb[0].mxu0
    %v370 = vadd.f32 0.0, %v369
    %v371 = vpop.f32.mrb[0].mxu0
    %372 = vdwg.mxu0
    %v373 = vld [vmem:[#allocation9] sm:$0x3f]
    %v374 = vcombine.low %v242, %v256
    %v375 = vcombine.low %v257, %v258
    %v376 = vcombine.low %v249, %v281
    %v377 = vcombine.low %v295, %v296
    %v379 = vunpack.c.l.s4 1966171168
    %v380 = vunpack.c.0.s8 %v379
    %v381 = vlaneseq
    %v382 = vshrl.u32 %v381, 7
    %v383 = vsub.s32 %v380, %v382
    %v384 = vrot.slane %v374, %v383
    %v386 = vunpack.c.l.s4 1966171168
    %v387 = vunpack.c.0.s8 %v386
    %v388 = vlaneseq
    %v389 = vshrl.u32 %v388, 7
    %v390 = vsub.s32 %v387, %v389
    %v391 = vrot.slane %v375, %v390
    %v393 = vunpack.c.l.s4 1966171168
    %v394 = vunpack.c.0.s8 %v393
    %v395 = vlaneseq
    %v396 = vshrl.u32 %v395, 7
    %v397 = vsub.s32 %v394, %v396
    %v398 = vrot.slane %v376, %v397
    %v400 = vunpack.c.l.s4 1966171168
    %v401 = vunpack.c.0.s8 %v400
    %v402 = vlaneseq
    %v403 = vshrl.u32 %v402, 7
    %v404 = vsub.s32 %v401, %v403
    %v405 = vrot.slane %v377, %v404
    %v406 = vcombine.low %v384, %v391
    %v407 = vcombine.low %v398, %v405
    %v409 = vunpack.c.l.s4 1966171168
    %v410 = vunpack.c.0.s8 %v409
    %v411 = vlaneseq
    %v412 = vshrl.u32 %v411, 7
    %v413 = vsub.s32 %v410, %v412
    %v414 = vrot.slane %v406, %v413
    %v416 = vunpack.c.l.s4 1966171168
    %v417 = vunpack.c.0.s8 %v416
    %v418 = vlaneseq
    %v419 = vshrl.u32 %v418, 7
    %v420 = vsub.s32 %v417, %v419
    %v421 = vrot.slane %v407, %v420
    %v422 = vcombine.low %v414, %v421
    %v423 = vcombine.low %v297, %v288
    %v425 = vunpack.c.l.s4 1966171168
    %v426 = vunpack.c.0.s8 %v425
    %v427 = vlaneseq
    %v428 = vshrl.u32 %v427, 7
    %v429 = vsub.s32 %v426, %v428
    %v430 = vrot.slane %v423, %v429
    %v432 = vunpack.c.l.s4 1966171168
    %v433 = vunpack.c.0.s8 %v432
    %v434 = vlaneseq
    %v435 = vshrl.u32 %v434, 7
    %v436 = vsub.s32 %v433, %v435
    %v437 = vrot.slane %v430, %v436
    %vm438 = vcmask 48128
    %v439 = vsel %vm438, %v422, 0
    %v441 = vsel %vm438, %v437, 0
    %vm443 = vcmask 1045504
    %v445 = vsel %vm443, %v373, 0
    %447 = vmatprep.subr.mxu0 0.0
    %448 = vmatpush1.msra.mxu0 %v445
    %449 = vmatprep.subr.mxu0 0.0
    %450 = vmatpush1.msra.mxu0 0.0
    %451 = vmatprep.subr.mxu0 0.0
    %452 = vmatpush1.msra.mxu0 0.0
    %453 = vmatprep.subr.mxu0 0.0
    %454 = vmatpush1.msra.mxu0 0.0
    %455 = vmatprep.subr.mxu0 0.0
    %456 = vmatpush1.msra.mxu0 0.0
    %457 = vmatprep.subr.mxu0 0.0
    %458 = vmatpush1.msra.mxu0 0.0
    %459 = vmatprep.subr.mxu0 0.0
    %460 = vmatpush1.msra.mxu0 0.0
    %461 = vmatprep.subr.mxu0 0.0
    %462 = vmatpush1.msra.mxu0 0.0
    %463 = vmatprep.subr.mxu0 0.0
    %464 = vmatpush1.msra.mxu0 0.0
    %465 = vmatprep.subr.mxu0 0.0
    %466 = vmatpush1.msra.mxu0 0.0
    %467 = vmatprep.subr.mxu0 0.0
    %468 = vmatpush1.msra.mxu0 0.0
    %469 = vmatprep.subr.mxu0 0.0
    %470 = vmatpush1.msra.mxu0 0.0
    %471 = vmatprep.subr.mxu0 0.0
    %472 = vmatpush1.msra.mxu0 0.0
    %473 = vmatprep.subr.mxu0 0.0
    %474 = vmatpush1.msra.mxu0 0.0
    %475 = vmatprep.subr.mxu0 0.0
    %476 = vmatpush1.msra.mxu0 0.0
    %477 = vmatprep.subr.mxu0 0.0
    %478 = vmatpush1.msra.mxu0 0.0
    %479 = vmatprep.subr.mxu0 0.0
    %480 = vmatpush1.msra.mxu0 0.0
    %481 = vmatprep.subr.mxu0 0.0
    %482 = vmatpush1.msra.mxu0 0.0
    %483 = vmatprep.subr.mxu0 0.0
    %484 = vmatpush1.msra.mxu0 0.0
    %485 = vmatprep.subr.mxu0 0.0
    %486 = vmatpush1.msra.mxu0 0.0
    %487 = vmatprep.subr.mxu0 0.0
    %488 = vmatpush1.msra.mxu0 0.0
    %489 = vmatprep.subr.mxu0 0.0
    %490 = vmatpush1.msra.mxu0 0.0
    %491 = vmatprep.subr.mxu0 0.0
    %492 = vmatpush1.msra.mxu0 0.0
    %493 = vmatprep.subr.mxu0 0.0
    %494 = vmatpush1.msra.mxu0 0.0
    %495 = vmatprep.subr.mxu0 0.0
    %496 = vmatpush1.msra.mxu0 0.0
    %497 = vmatprep.subr.mxu0 0.0
    %498 = vmatpush1.msra.mxu0 0.0
    %499 = vmatprep.subr.mxu0 0.0
    %500 = vmatpush1.msra.mxu0 0.0
    %501 = vmatprep.subr.mxu0 0.0
    %502 = vmatpush1.msra.mxu0 0.0
    %503 = vmatprep.subr.mxu0 0.0
    %504 = vmatpush1.msra.mxu0 0.0
    %505 = vmatprep.subr.mxu0 0.0
    %506 = vmatpush1.msra.mxu0 0.0
    %507 = vmatprep.subr.mxu0 0.0
    %508 = vmatpush1.msra.mxu0 0.0
    %509 = vmatprep.subr.mxu0 0.0
    %510 = vmatpush1.msra.mxu0 0.0
    %511 = vmatprep.mubr.f32.mxu0 0.0
    %512 = vmatmul.mubr.f32.gmra.mrb[0].mxu0 %v439
    %v513 = vpop.f32.mrb[0].mxu0
    %v514 = vadd.f32 0.0, %v513
    %v515 = vpop.f32.mrb[0].mxu0
    %516 = vmatprep.mubr.f32.mxu0 0.0
    %517 = vmatmul.mubr.f32.gmra.mrb[0].mxu0 %v441
    %v518 = vpop.f32.mrb[0].mxu0
    %v519 = vadd.f32 0.0, %v518
    %v520 = vpop.f32.mrb[0].mxu0
    %521 = vdwg.mxu0
    %v524 = vcombine.high %v514, %v514
    %v526 = vunpack.c.l.s4 1966171168
    %v527 = vunpack.c.0.s8 %v526
    %v528 = vlaneseq
    %v529 = vshrl.u32 %v528, 7
    %v530 = vsub.s32 %v527, %v529
    %v531 = vrot.slane %v514, %v530
    %v533 = vunpack.c.l.s4 1966171168
    %v534 = vunpack.c.0.s8 %v533
    %v535 = vlaneseq
    %v536 = vshrl.u32 %v535, 7
    %v537 = vsub.s32 %v534, %v536
    %v538 = vrot.slane %v524, %v537
    %v539 = vcombine.high %v531, %v531
    %v540 = vcombine.high %v538, %v538
    %v542 = vunpack.c.l.s4 1966171168
    %v543 = vunpack.c.0.s8 %v542
    %v544 = vlaneseq
    %v545 = vshrl.u32 %v544, 7
    %v546 = vsub.s32 %v543, %v545
    %v547 = vrot.slane %v531, %v546
    %v549 = vunpack.c.l.s4 1966171168
    %v550 = vunpack.c.0.s8 %v549
    %v551 = vlaneseq
    %v552 = vshrl.u32 %v551, 7
    %v553 = vsub.s32 %v550, %v552
    %v554 = vrot.slane %v538, %v553
    %v556 = vunpack.c.l.s4 1966171168
    %v557 = vunpack.c.0.s8 %v556
    %v558 = vlaneseq
    %v559 = vshrl.u32 %v558, 7
    %v560 = vsub.s32 %v557, %v559
    %v561 = vrot.slane %v539, %v560
    %v563 = vunpack.c.l.s4 1966171168
    %v564 = vunpack.c.0.s8 %v563
    %v565 = vlaneseq
    %v566 = vshrl.u32 %v565, 7
    %v567 = vsub.s32 %v564, %v566
    %v568 = vrot.slane %v540, %v567
    %v569 = vcombine.high %v547, %v547
    %v570 = vcombine.high %v554, %v554
    %v571 = vcombine.high %v561, %v561
    %v572 = vcombine.high %v568, %v568
    %v574 = vunpack.c.l.s4 1966171168
    %v575 = vunpack.c.0.s8 %v574
    %v576 = vlaneseq
    %v577 = vshrl.u32 %v576, 7
    %v578 = vsub.s32 %v575, %v577
    %v579 = vrot.slane %v519, %v578
    %v580 = vcombine.high %v579, %v579
    %v582 = vunpack.c.l.s4 1966171168
    %v583 = vunpack.c.0.s8 %v582
    %v584 = vlaneseq
    %v585 = vshrl.u32 %v584, 7
    %v586 = vsub.s32 %v583, %v585
    %v587 = vrot.slane %v579, %v586
    %v589 = vunpack.c.l.s4 1966171168
    %v590 = vunpack.c.0.s8 %v589
    %v591 = vlaneseq
    %v592 = vshrl.u32 %v591, 7
    %v593 = vsub.s32 %v590, %v592
    %v594 = vrot.slane %v580, %v593
    %v607 = vunpack.c.l.s4 1966171168
    %v608 = vunpack.c.0.s8 %v607
    %v609 = vlaneseq
    %v610 = vshrl.u32 %v609, 7
    %v611 = vsub.s32 %v608, %v610
    %v612 = vrot.slane %v370, %v611
    %v613 = vcombine.high %v612, %v612
    %v615 = vunpack.c.l.s4 1966171168
    %v616 = vunpack.c.0.s8 %v615
    %v617 = vlaneseq
    %v618 = vshrl.u32 %v617, 7
    %v619 = vsub.s32 %v616, %v618
    %v620 = vrot.slane %v612, %v619
    %v622 = vunpack.c.l.s4 1966171168
    %v623 = vunpack.c.0.s8 %v622
    %v624 = vlaneseq
    %v625 = vshrl.u32 %v624, 7
    %v626 = vsub.s32 %v623, %v625
    %v627 = vrot.slane %v613, %v626
    %v628 = vlaneseq
    %v629 = vshrl.u32 %v628, 7
    %v630 = vsub.s32 0, %v629
    %v631 = vrot.slane %v620, %v630
    %v632 = vlaneseq
    %v633 = vshrl.u32 %v632, 7
    %v634 = vsub.s32 0, %v633
    %v635 = vrot.slane %v627, %v634
    %v636 = vcombine.high %v631, %v631
    %v638 = vunpack.c.l.s4 1966171168
    %v639 = vunpack.c.0.s8 %v638
    %v640 = vlaneseq
    %v641 = vshrl.u32 %v640, 7
    %v642 = vsub.s32 %v639, %v641
    %v643 = vrot.slane %v631, %v642
    %v645 = vunpack.c.l.s4 1966171168
    %v646 = vunpack.c.0.s8 %v645
    %v647 = vlaneseq
    %v648 = vshrl.u32 %v647, 7
    %v649 = vsub.s32 %v646, %v648
    %v650 = vrot.slane %v636, %v649
    %v651 = vcombine.high %v643, %v643
    %v653 = vunpack.c.l.s4 1966171168
    %v654 = vunpack.c.0.s8 %v653
    %v655 = vlaneseq
    %v656 = vshrl.u32 %v655, 7
    %v657 = vsub.s32 %v654, %v656
    %v658 = vrot.slane %v643, %v657
    %v660 = vunpack.c.l.s4 1966171168
    %v661 = vunpack.c.0.s8 %v660
    %v662 = vlaneseq
    %v663 = vshrl.u32 %v662, 7
    %v664 = vsub.s32 %v661, %v663
    %v665 = vrot.slane %v650, %v664
    %v667 = vunpack.c.l.s4 1966171168
    %v668 = vunpack.c.0.s8 %v667
    %v669 = vlaneseq
    %v670 = vshrl.u32 %v669, 7
    %v671 = vsub.s32 %v668, %v670
    %v672 = vrot.slane %v651, %v671
    %v673 = vcombine.high %v658, %v658
    %v674 = vcombine.high %v672, %v672
    %v675 = vcombine.high %v635, %v635
    %v677 = vunpack.c.l.s4 1966171168
    %v678 = vunpack.c.0.s8 %v677
    %v679 = vlaneseq
    %v680 = vshrl.u32 %v679, 7
    %v681 = vsub.s32 %v678, %v680
    %v682 = vrot.slane %v635, %v681
    %v684 = vunpack.c.l.s4 1966171168
    %v685 = vunpack.c.0.s8 %v684
    %v686 = vlaneseq
    %v687 = vshrl.u32 %v686, 7
    %v688 = vsub.s32 %v685, %v687
    %v689 = vrot.slane %v675, %v688
    %v690 = vcombine.high %v682, %v682
    %v692 = vunpack.c.l.s4 1966171168
    %v693 = vunpack.c.0.s8 %v692
    %v694 = vlaneseq
    %v695 = vshrl.u32 %v694, 7
    %v696 = vsub.s32 %v693, %v695
    %v697 = vrot.slane %v682, %v696
    %v699 = vunpack.c.l.s4 1966171168
    %v700 = vunpack.c.0.s8 %v699
    %v701 = vlaneseq
    %v702 = vshrl.u32 %v701, 7
    %v703 = vsub.s32 %v700, %v702
    %v704 = vrot.slane %v689, %v703
    %v706 = vunpack.c.l.s4 1966171168
    %v707 = vunpack.c.0.s8 %v706
    %v708 = vlaneseq
    %v709 = vshrl.u32 %v708, 7
    %v710 = vsub.s32 %v707, %v709
    %v711 = vrot.slane %v690, %v710
    %v712 = vcombine.high %v697, %v697
    %v713 = vcombine.high %v711, %v711
    %v724 = vadd.f32 %v547, %v658
    %v725 = vadd.f32 %v561, %v672
    %v726 = vadd.f32 %v569, %v673
    %v727 = vadd.f32 %v571, %v674
    %v728 = vadd.f32 %v554, %v665
    %v729 = vadd.f32 %v568, %v697
    %v730 = vadd.f32 %v570, %v711
    %v731 = vadd.f32 %v572, %v712
    %v732 = vadd.f32 %v587, %v713
    %v733 = vadd.f32 %v594, %v704
    %v734 = vld [vmem:[#allocation11] sm:$0x1]
    %v736 = vlaneseq
    %v737 = vshrl.u32 %v736, 7
    %v738 = vsub.s32 0, %v737
    %v739 = vrot.slane %v734, %v738
    %v740 = vcombine.high %v739, %v739
    %v742 = vunpack.c.l.s4 1966171168
    %v743 = vunpack.c.0.s8 %v742
    %v744 = vlaneseq
    %v745 = vshrl.u32 %v744, 7
    %v746 = vsub.s32 %v743, %v745
    %v747 = vrot.slane %v739, %v746
    %v749 = vunpack.c.l.s4 1966171168
    %v750 = vunpack.c.0.s8 %v749
    %v751 = vlaneseq
    %v752 = vshrl.u32 %v751, 7
    %v753 = vsub.s32 %v750, %v752
    %v754 = vrot.slane %v740, %v753
    %v755 = vcombine.high %v747, %v747
    %v757 = vunpack.c.l.s4 1966171168
    %v758 = vunpack.c.0.s8 %v757
    %v759 = vlaneseq
    %v760 = vshrl.u32 %v759, 7
    %v761 = vsub.s32 %v758, %v760
    %v762 = vrot.slane %v747, %v761
    %v764 = vunpack.c.l.s4 1966171168
    %v765 = vunpack.c.0.s8 %v764
    %v766 = vlaneseq
    %v767 = vshrl.u32 %v766, 7
    %v768 = vsub.s32 %v765, %v767
    %v769 = vrot.slane %v754, %v768
    %v771 = vunpack.c.l.s4 1966171168
    %v772 = vunpack.c.0.s8 %v771
    %v773 = vlaneseq
    %v774 = vshrl.u32 %v773, 7
    %v775 = vsub.s32 %v772, %v774
    %v776 = vrot.slane %v755, %v775
    %v777 = vcombine.high %v762, %v762
    %v778 = vcombine.high %v776, %v776
    %v784 = vadd.f32 %v724, %v762
    %v785 = vadd.f32 %v725, %v776
    %v786 = vadd.f32 %v726, %v777
    %v787 = vadd.f32 %v727, %v778
    %v788 = vadd.f32 %v728, %v769
    %v789 = vadd.f32 %v729, %v762
    %v790 = vadd.f32 %v730, %v776
    %v791 = vadd.f32 %v731, %v777
    %v792 = vadd.f32 %v732, %v778
    %v793 = vadd.f32 %v733, %v769
    %v794 = vxor.u32 %v784, 2147483648
    %v795 = vxor.u32 %v785, 2147483648
    %v796 = vxor.u32 %v786, 2147483648
    %v797 = vxor.u32 %v787, 2147483648
    %v798 = vxor.u32 %v788, 2147483648
    %v799 = vxor.u32 %v789, 2147483648
    %v800 = vxor.u32 %v790, 2147483648
    %v801 = vxor.u32 %v791, 2147483648
    %v802 = vxor.u32 %v792, 2147483648
    %v803 = vxor.u32 %v793, 2147483648
    %v804 = vmul.f32 %v794, 1.442695
    %v805 = vpow.pop %v804
    %v806 = vmul.f32 %v795, 1.442695
    %v807 = vpow.pop %v806
    %v808 = vmul.f32 %v796, 1.442695
    %v809 = vpow.pop %v808
    %v810 = vmul.f32 %v797, 1.442695
    %v811 = vpow.pop %v810
    %v812 = vmul.f32 %v798, 1.442695
    %v813 = vpow.pop %v812
    %v814 = vmul.f32 %v799, 1.442695
    %v815 = vpow.pop %v814
    %v816 = vmul.f32 %v800, 1.442695
    %v817 = vpow.pop %v816
    %v818 = vmul.f32 %v801, 1.442695
    %v819 = vpow.pop %v818
    %v820 = vmul.f32 %v802, 1.442695
    %v821 = vpow.pop %v820
    %v822 = vmul.f32 %v803, 1.442695
    %v823 = vpow.pop %v822
    %v824 = vadd.f32 %v805, 1.0
    %v825 = vadd.f32 %v807, 1.0
    %v826 = vadd.f32 %v809, 1.0
    %v827 = vadd.f32 %v811, 1.0
    %v828 = vadd.f32 %v813, 1.0
    %v829 = vadd.f32 %v815, 1.0
    %v830 = vadd.f32 %v817, 1.0
    %v831 = vadd.f32 %v819, 1.0
    %v832 = vadd.f32 %v821, 1.0
    %v833 = vadd.f32 %v823, 1.0
    %v834 = vrcp.pop %v824
    %v835 = vmul.f32 1.0, %v834
    %v836 = vrcp.pop %v825
    %v837 = vmul.f32 1.0, %v836
    %v838 = vrcp.pop %v826
    %v839 = vmul.f32 1.0, %v838
    %v840 = vrcp.pop %v827
    %v841 = vmul.f32 1.0, %v840
    %v842 = vrcp.pop %v828
    %v843 = vmul.f32 1.0, %v842
    %v844 = vrcp.pop %v829
    %v845 = vmul.f32 1.0, %v844
    %v846 = vrcp.pop %v830
    %v847 = vmul.f32 1.0, %v846
    %v848 = vrcp.pop %v831
    %v849 = vmul.f32 1.0, %v848
    %v850 = vrcp.pop %v832
    %v851 = vmul.f32 1.0, %v850
    %v852 = vrcp.pop %v833
    %v853 = vmul.f32 1.0, %v852
    %v854 = vmul.f32 %v784, %v835
    %v855 = vmul.f32 %v785, %v837
    %v856 = vmul.f32 %v786, %v839
    %v857 = vmul.f32 %v787, %v841
    %v858 = vmul.f32 %v788, %v843
    %v859 = vmul.f32 %v789, %v845
    %v860 = vmul.f32 %v790, %v847
    %v861 = vmul.f32 %v791, %v849
    %v862 = vmul.f32 %v792, %v851
    %v863 = vmul.f32 %v793, %v853
    %v864 = vld [vmem:[%s7] sm:$0xff]
    %v865 = vld [vmem:[%s7 + $0x8] sm:$0xff]
    %v866 = vld [vmem:[%s7 + $0x10] sm:$0xff]
    %v867 = vld [vmem:[%s7 + $0x18] sm:$0xff]
    %v868 = vld [vmem:[#allocation12] sm:$0x1]
    %v870 = vlaneseq
    %v871 = vshrl.u32 %v870, 7
    %v872 = vsub.s32 0, %v871
    %v873 = vrot.slane %v868, %v872
    %v885 = vcombine.low %v854, %v855
    %v886 = vcombine.low %v856, %v857
    %v887 = vcombine.low %v858, %v859
    %v888 = vcombine.low %v860, %v861
    %v890 = vunpack.c.l.s4 1966171168
    %v891 = vunpack.c.0.s8 %v890
    %v892 = vlaneseq
    %v893 = vshrl.u32 %v892, 7
    %v894 = vsub.s32 %v891, %v893
    %v895 = vrot.slane %v885, %v894
    %v897 = vunpack.c.l.s4 1966171168
    %v898 = vunpack.c.0.s8 %v897
    %v899 = vlaneseq
    %v900 = vshrl.u32 %v899, 7
    %v901 = vsub.s32 %v898, %v900
    %v902 = vrot.slane %v886, %v901
    %v904 = vunpack.c.l.s4 1966171168
    %v905 = vunpack.c.0.s8 %v904
    %v906 = vlaneseq
    %v907 = vshrl.u32 %v906, 7
    %v908 = vsub.s32 %v905, %v907
    %v909 = vrot.slane %v887, %v908
    %v911 = vunpack.c.l.s4 1966171168
    %v912 = vunpack.c.0.s8 %v911
    %v913 = vlaneseq
    %v914 = vshrl.u32 %v913, 7
    %v915 = vsub.s32 %v912, %v914
    %v916 = vrot.slane %v888, %v915
    %v917 = vcombine.low %v895, %v902
    %v918 = vcombine.low %v909, %v916
    %v920 = vunpack.c.l.s4 1966171168
    %v921 = vunpack.c.0.s8 %v920
    %v922 = vlaneseq
    %v923 = vshrl.u32 %v922, 7
    %v924 = vsub.s32 %v921, %v923
    %v925 = vrot.slane %v917, %v924
    %v927 = vunpack.c.l.s4 1966171168
    %v928 = vunpack.c.0.s8 %v927
    %v929 = vlaneseq
    %v930 = vshrl.u32 %v929, 7
    %v931 = vsub.s32 %v928, %v930
    %v932 = vrot.slane %v918, %v931
    %v933 = vcombine.low %v925, %v932
    %v934 = vcombine.low %v862, %v863
    %v936 = vunpack.c.l.s4 1966171168
    %v937 = vunpack.c.0.s8 %v936
    %v938 = vlaneseq
    %v939 = vshrl.u32 %v938, 7
    %v940 = vsub.s32 %v937, %v939
    %v941 = vrot.slane %v934, %v940
    %v943 = vunpack.c.l.s4 1966171168
    %v944 = vunpack.c.0.s8 %v943
    %v945 = vlaneseq
    %v946 = vshrl.u32 %v945, 7
    %v947 = vsub.s32 %v944, %v946
    %v948 = vrot.slane %v941, %v947
    %vm949 = vcmask 261120
    %v950 = vsel %vm949, %v933, 0
    %v952 = vsel %vm949, %v948, 0
    %954 = vmatprep.subr.mxu0 0.0
    %955 = vmatpush1.msra.mxu0 %v864
    %956 = vmatprep.subr.mxu0 0.0
    %957 = vmatpush1.msra.mxu0 %v865
    %958 = vmatprep.subr.mxu0 0.0
    %959 = vmatpush1.msra.mxu0 %v866
    %960 = vmatprep.subr.mxu0 0.0
    %961 = vmatpush1.msra.mxu0 %v867
    %962 = vmatprep.subr.mxu0 0.0
    %963 = vmatpush1.msra.mxu0 0.0
    %964 = vmatprep.subr.mxu0 0.0
    %965 = vmatpush1.msra.mxu0 0.0
    %966 = vmatprep.subr.mxu0 0.0
    %967 = vmatpush1.msra.mxu0 0.0
    %968 = vmatprep.subr.mxu0 0.0
    %969 = vmatpush1.msra.mxu0 0.0
    %970 = vmatprep.subr.mxu0 0.0
    %971 = vmatpush1.msra.mxu0 0.0
    %972 = vmatprep.subr.mxu0 0.0
    %973 = vmatpush1.msra.mxu0 0.0
    %974 = vmatprep.subr.mxu0 0.0
    %975 = vmatpush1.msra.mxu0 0.0
    %976 = vmatprep.subr.mxu0 0.0
    %977 = vmatpush1.msra.mxu0 0.0
    %978 = vmatprep.subr.mxu0 0.0
    %979 = vmatpush1.msra.mxu0 0.0
    %980 = vmatprep.subr.mxu0 0.0
    %981 = vmatpush1.msra.mxu0 0.0
    %982 = vmatprep.subr.mxu0 0.0
    %983 = vmatpush1.msra.mxu0 0.0
    %984 = vmatprep.subr.mxu0 0.0
    %985 = vmatpush1.msra.mxu0 0.0
    %986 = vmatprep.subr.mxu0 0.0
    %987 = vmatpush1.msra.mxu0 0.0
    %988 = vmatprep.subr.mxu0 0.0
    %989 = vmatpush1.msra.mxu0 0.0
    %990 = vmatprep.subr.mxu0 0.0
    %991 = vmatpush1.msra.mxu0 0.0
    %992 = vmatprep.subr.mxu0 0.0
    %993 = vmatpush1.msra.mxu0 0.0
    %994 = vmatprep.subr.mxu0 0.0
    %995 = vmatpush1.msra.mxu0 0.0
    %996 = vmatprep.subr.mxu0 0.0
    %997 = vmatpush1.msra.mxu0 0.0
    %998 = vmatprep.subr.mxu0 0.0
    %999 = vmatpush1.msra.mxu0 0.0
    %1000 = vmatprep.subr.mxu0 0.0
    %1001 = vmatpush1.msra.mxu0 0.0
    %1002 = vmatprep.subr.mxu0 0.0
    %1003 = vmatpush1.msra.mxu0 0.0
    %1004 = vmatprep.subr.mxu0 0.0
    %1005 = vmatpush1.msra.mxu0 0.0
    %1006 = vmatprep.subr.mxu0 0.0
    %1007 = vmatpush1.msra.mxu0 0.0
    %1008 = vmatprep.subr.mxu0 0.0
    %1009 = vmatpush1.msra.mxu0 0.0
    %1010 = vmatprep.subr.mxu0 0.0
    %1011 = vmatpush1.msra.mxu0 0.0
    %1012 = vmatprep.subr.mxu0 0.0
    %1013 = vmatpush1.msra.mxu0 0.0
    %1014 = vmatprep.subr.mxu0 0.0
    %1015 = vmatpush1.msra.mxu0 0.0
    %1016 = vmatprep.subr.mxu0 0.0
    %1017 = vmatpush1.msra.mxu0 0.0
    %1018 = vmatprep.mubr.f32.mxu0 0.0
    %1019 = vmatmul.mubr.f32.gmra.mrb[0].mxu0 %v950
    %v1020 = vpop.f32.mrb[0].mxu0
    %v1021 = vadd.f32 %v873, %v1020
    %v1022 = vpop.f32.mrb[0].mxu0
    %1023 = vmatprep.mubr.f32.mxu0 0.0
    %1024 = vmatmul.mubr.f32.gmra.mrb[0].mxu0 %v952
    %v1025 = vpop.f32.mrb[0].mxu0
    %v1026 = vadd.f32 %v873, %v1025
    %v1027 = vpop.f32.mrb[0].mxu0
    %1028 = vdwg.mxu0
    %v1029 = vxor.u32 %v1021, 2147483648
    %v1030 = vxor.u32 %v1026, 2147483648
    %v1031 = vmul.f32 %v1029, 1.442695
    %v1032 = vpow.pop %v1031
    %v1033 = vmul.f32 %v1030, 1.442695
    %v1034 = vpow.pop %v1033
    %v1035 = vadd.f32 %v1032, 1.0
    %v1036 = vadd.f32 %v1034, 1.0
    %v1037 = vrcp.pop %v1035
    %v1038 = vmul.f32 1.0, %v1037
    %v1039 = vrcp.pop %v1036
    %v1040 = vmul.f32 1.0, %v1039
    %v1041 = vmul.f32 %v1021, %v1038
    %v1042 = vmul.f32 %v1026, %v1040
    %v1045 = vcombine.high %v1041, %v1041
    %v1047 = vunpack.c.l.s4 1966171168
    %v1048 = vunpack.c.0.s8 %v1047
    %v1049 = vlaneseq
    %v1050 = vshrl.u32 %v1049, 7
    %v1051 = vsub.s32 %v1048, %v1050
    %v1052 = vrot.slane %v1041, %v1051
    %v1054 = vunpack.c.l.s4 1966171168
    %v1055 = vunpack.c.0.s8 %v1054
    %v1056 = vlaneseq
    %v1057 = vshrl.u32 %v1056, 7
    %v1058 = vsub.s32 %v1055, %v1057
    %v1059 = vrot.slane %v1045, %v1058
    %v1060 = vcombine.high %v1052, %v1052
    %v1061 = vcombine.high %v1059, %v1059
    %v1063 = vunpack.c.l.s4 1966171168
    %v1064 = vunpack.c.0.s8 %v1063
    %v1065 = vlaneseq
    %v1066 = vshrl.u32 %v1065, 7
    %v1067 = vsub.s32 %v1064, %v1066
    %v1068 = vrot.slane %v1052, %v1067
    %v1070 = vunpack.c.l.s4 1966171168
    %v1071 = vunpack.c.0.s8 %v1070
    %v1072 = vlaneseq
    %v1073 = vshrl.u32 %v1072, 7
    %v1074 = vsub.s32 %v1071, %v1073
    %v1075 = vrot.slane %v1059, %v1074
    %v1077 = vunpack.c.l.s4 1966171168
    %v1078 = vunpack.c.0.s8 %v1077
    %v1079 = vlaneseq
    %v1080 = vshrl.u32 %v1079, 7
    %v1081 = vsub.s32 %v1078, %v1080
    %v1082 = vrot.slane %v1060, %v1081
    %v1084 = vunpack.c.l.s4 1966171168
    %v1085 = vunpack.c.0.s8 %v1084
    %v1086 = vlaneseq
    %v1087 = vshrl.u32 %v1086, 7
    %v1088 = vsub.s32 %v1085, %v1087
    %v1089 = vrot.slane %v1061, %v1088
    %v1090 = vcombine.high %v1068, %v1068
    %v1091 = vcombine.high %v1075, %v1075
    %v1092 = vcombine.high %v1082, %v1082
    %v1093 = vcombine.high %v1089, %v1089
    %v1095 = vunpack.c.l.s4 1966171168
    %v1096 = vunpack.c.0.s8 %v1095
    %v1097 = vlaneseq
    %v1098 = vshrl.u32 %v1097, 7
    %v1099 = vsub.s32 %v1096, %v1098
    %v1100 = vrot.slane %v1042, %v1099
    %v1101 = vcombine.high %v1100, %v1100
    %v1103 = vunpack.c.l.s4 1966171168
    %v1104 = vunpack.c.0.s8 %v1103
    %v1105 = vlaneseq
    %v1106 = vshrl.u32 %v1105, 7
    %v1107 = vsub.s32 %v1104, %v1106
    %v1108 = vrot.slane %v1100, %v1107
    %v1110 = vunpack.c.l.s4 1966171168
    %v1111 = vunpack.c.0.s8 %v1110
    %v1112 = vlaneseq
    %v1113 = vshrl.u32 %v1112, 7
    %v1114 = vsub.s32 %v1111, %v1113
    %v1115 = vrot.slane %v1101, %v1114
    %v1116 = vcombine.low %v1068, %v1082
    %v1117 = vcombine.low %v1090, %v1092
    %v1119 = vunpack.c.l.s4 1966171168
    %v1120 = vunpack.c.0.s8 %v1119
    %v1121 = vlaneseq
    %v1122 = vshrl.u32 %v1121, 7
    %v1123 = vsub.s32 %v1120, %v1122
    %v1124 = vrot.slane %v1116, %v1123
    %v1126 = vunpack.c.l.s4 1966171168
    %v1127 = vunpack.c.0.s8 %v1126
    %v1128 = vlaneseq
    %v1129 = vshrl.u32 %v1128, 7
    %v1130 = vsub.s32 %v1127, %v1129
    %v1131 = vrot.slane %v1117, %v1130
    %v1133 = vunpack.c.l.s4 1966171168
    %v1134 = vunpack.c.0.s8 %v1133
    %v1135 = vlaneseq
    %v1136 = vshrl.u32 %v1135, 7
    %v1137 = vsub.s32 %v1134, %v1136
    %v1138 = vrot.slane %v1075, %v1137
    %v1139 = vcombine.low %v1124, %v1131
    %v1141 = vunpack.c.l.s4 1966171168
    %v1142 = vunpack.c.0.s8 %v1141
    %v1143 = vlaneseq
    %v1144 = vshrl.u32 %v1143, 7
    %v1145 = vsub.s32 %v1142, %v1144
    %v1146 = vrot.slane %v1139, %v1145
    %v1148 = vunpack.c.l.s4 1966171168
    %v1149 = vunpack.c.0.s8 %v1148
    %v1150 = vlaneseq
    %v1151 = vshrl.u32 %v1150, 7
    %v1152 = vsub.s32 %v1149, %v1151
    %v1153 = vrot.slane %v1138, %v1152
    %v1154 = vcombine.low %v1146, %v1153
    %v1155 = vcombine.low %v1089, %v1091
    %v1156 = vcombine.low %v1093, %v1108
    %v1158 = vunpack.c.l.s4 1966171168
    %v1159 = vunpack.c.0.s8 %v1158
    %v1160 = vlaneseq
    %v1161 = vshrl.u32 %v1160, 7
    %v1162 = vsub.s32 %v1159, %v1161
    %v1163 = vrot.slane %v1155, %v1162
    %v1165 = vunpack.c.l.s4 1966171168
    %v1166 = vunpack.c.0.s8 %v1165
    %v1167 = vlaneseq
    %v1168 = vshrl.u32 %v1167, 7
    %v1169 = vsub.s32 %v1166, %v1168
    %v1170 = vrot.slane %v1156, %v1169
    %v1172 = vunpack.c.l.s4 1966171168
    %v1173 = vunpack.c.0.s8 %v1172
    %v1174 = vlaneseq
    %v1175 = vshrl.u32 %v1174, 7
    %v1176 = vsub.s32 %v1173, %v1175
    %v1177 = vrot.slane %v1115, %v1176
    %v1178 = vcombine.low %v1163, %v1170
    %v1180 = vunpack.c.l.s4 1966171168
    %v1181 = vunpack.c.0.s8 %v1180
    %v1182 = vlaneseq
    %v1183 = vshrl.u32 %v1182, 7
    %v1184 = vsub.s32 %v1181, %v1183
    %v1185 = vrot.slane %v1178, %v1184
    %v1187 = vunpack.c.l.s4 1966171168
    %v1188 = vunpack.c.0.s8 %v1187
    %v1189 = vlaneseq
    %v1190 = vshrl.u32 %v1189, 7
    %v1191 = vsub.s32 %v1188, %v1190
    %v1192 = vrot.slane %v1177, %v1191
    %v1193 = vcombine.low %v1185, %v1192
    %vm1196 = vcmask 258048
    %1197 = vst.msk [vmem:[#allocation2] sm:$0x1f] %vm1196, %v1154
    %1198 = vst.msk [vmem:[#allocation2 + $0x8] sm:$0x1f] %vm1196, %v1193
    %v1199 = vld [vmem:[%s2] sm:$0x7]
    %v1200 = vld [vmem:[%s2 + $0x4] sm:$0x7]
    %v1204 = vunpack.c.l.s4 1966171168
    %v1205 = vunpack.c.0.s8 %v1204
    %v1206 = vlaneseq
    %v1207 = vshrl.u32 %v1206, 7
    %v1208 = vsub.s32 %v1205, %v1207
    %v1209 = vrot.slane %v1199, %v1208
    %v1210 = vcombine.high %v1209, %v1209
    %v1212 = vunpack.c.l.s4 1966171168
    %v1213 = vunpack.c.0.s8 %v1212
    %v1214 = vlaneseq
    %v1215 = vshrl.u32 %v1214, 7
    %v1216 = vsub.s32 %v1213, %v1215
    %v1217 = vrot.slane %v1209, %v1216
    %v1219 = vunpack.c.l.s4 1966171168
    %v1220 = vunpack.c.0.s8 %v1219
    %v1221 = vlaneseq
    %v1222 = vshrl.u32 %v1221, 7
    %v1223 = vsub.s32 %v1220, %v1222
    %v1224 = vrot.slane %v1210, %v1223
    %v1225 = vcombine.high %v1217, %v1217
    %v1227 = vunpack.c.l.s4 1966171168
    %v1228 = vunpack.c.0.s8 %v1227
    %v1229 = vlaneseq
    %v1230 = vshrl.u32 %v1229, 7
    %v1231 = vsub.s32 %v1228, %v1230
    %v1232 = vrot.slane %v1200, %v1231
    %v1233 = vcombine.high %v1232, %v1232
    %v1235 = vunpack.c.l.s4 1966171168
    %v1236 = vunpack.c.0.s8 %v1235
    %v1237 = vlaneseq
    %v1238 = vshrl.u32 %v1237, 7
    %v1239 = vsub.s32 %v1236, %v1238
    %v1240 = vrot.slane %v1232, %v1239
    %v1242 = vunpack.c.l.s4 1966171168
    %v1243 = vunpack.c.0.s8 %v1242
    %v1244 = vlaneseq
    %v1245 = vshrl.u32 %v1244, 7
    %v1246 = vsub.s32 %v1243, %v1245
    %v1247 = vrot.slane %v1233, %v1246
    %v1248 = vcombine.high %v1240, %v1240
    %v1249 = vld [vmem:[#allocation14] sm:$0xff]
    %1250 = vmatprep.subr.mxu0 0.0
    %1251 = vmatpush1.msra.mxu0 %v1249
    %1252 = vmatprep.subr.mxu0 0.0
    %1253 = vmatpush1.msra.mxu0 0.0
    %1254 = vmatprep.subr.mxu0 0.0
    %1255 = vmatpush1.msra.mxu0 0.0
    %1256 = vmatprep.subr.mxu0 0.0
    %1257 = vmatpush1.msra.mxu0 0.0
    %1258 = vmatprep.subr.mxu0 0.0
    %1259 = vmatpush1.msra.mxu0 0.0
    %1260 = vmatprep.subr.mxu0 0.0
    %1261 = vmatpush1.msra.mxu0 0.0
    %1262 = vmatprep.subr.mxu0 0.0
    %1263 = vmatpush1.msra.mxu0 0.0
    %1264 = vmatprep.subr.mxu0 0.0
    %1265 = vmatpush1.msra.mxu0 0.0
    %1266 = vmatprep.subr.mxu0 0.0
    %1267 = vmatpush1.msra.mxu0 0.0
    %1268 = vmatprep.subr.mxu0 0.0
    %1269 = vmatpush1.msra.mxu0 0.0
    %1270 = vmatprep.subr.mxu0 0.0
    %1271 = vmatpush1.msra.mxu0 0.0
    %1272 = vmatprep.subr.mxu0 0.0
    %1273 = vmatpush1.msra.mxu0 0.0
    %1274 = vmatprep.subr.mxu0 0.0
    %1275 = vmatpush1.msra.mxu0 0.0
    %1276 = vmatprep.subr.mxu0 0.0
    %1277 = vmatpush1.msra.mxu0 0.0
    %1278 = vmatprep.subr.mxu0 0.0
    %1279 = vmatpush1.msra.mxu0 0.0
    %1280 = vmatprep.subr.mxu0 0.0
    %1281 = vmatpush1.msra.mxu0 0.0
    %1282 = vmatprep.subr.mxu0 0.0
    %1283 = vmatpush1.msra.mxu0 0.0
    %1284 = vmatprep.subr.mxu0 0.0
    %1285 = vmatpush1.msra.mxu0 0.0
    %1286 = vmatprep.subr.mxu0 0.0
    %1287 = vmatpush1.msra.mxu0 0.0
    %1288 = vmatprep.subr.mxu0 0.0
    %1289 = vmatpush1.msra.mxu0 0.0
    %1290 = vmatprep.subr.mxu0 0.0
    %1291 = vmatpush1.msra.mxu0 0.0
    %1292 = vmatprep.subr.mxu0 0.0
    %1293 = vmatpush1.msra.mxu0 0.0
    %1294 = vmatprep.subr.mxu0 0.0
    %1295 = vmatpush1.msra.mxu0 0.0
    %1296 = vmatprep.subr.mxu0 0.0
    %1297 = vmatpush1.msra.mxu0 0.0
    %1298 = vmatprep.subr.mxu0 0.0
    %1299 = vmatpush1.msra.mxu0 0.0
    %1300 = vmatprep.subr.mxu0 0.0
    %1301 = vmatpush1.msra.mxu0 0.0
    %1302 = vmatprep.subr.mxu0 0.0
    %1303 = vmatpush1.msra.mxu0 0.0
    %1304 = vmatprep.subr.mxu0 0.0
    %1305 = vmatpush1.msra.mxu0 0.0
    %1306 = vmatprep.subr.mxu0 0.0
    %1307 = vmatpush1.msra.mxu0 0.0
    %1308 = vmatprep.subr.mxu0 0.0
    %1309 = vmatpush1.msra.mxu0 0.0
    %1310 = vmatprep.subr.mxu0 0.0
    %1311 = vmatpush1.msra.mxu0 0.0
    %1312 = vmatprep.subr.mxu0 0.0
    %1313 = vmatpush1.msra.mxu0 0.0
    %1314 = vmatprep.mubr.f32.mxu0 0.0
    %1315 = vmatmul.mubr.f32.gmra.mrb[0].mxu0 %v301
    %v1316 = vpop.f32.mrb[0].mxu0
    %v1317 = vadd.f32 0.0, %v1316
    %v1318 = vpop.f32.mrb[0].mxu0
    %1319 = vdwg.mxu0
    %v1320 = vld [vmem:[#allocation15] sm:$0xf]
    %v1321 = vcombine.low %v1217, %v1224
    %v1322 = vcombine.low %v1225, %v1240
    %v1323 = vcombine.low %v1247, %v1248
    %v1325 = vunpack.c.l.s4 1966171168
    %v1326 = vunpack.c.0.s8 %v1325
    %v1327 = vlaneseq
    %v1328 = vshrl.u32 %v1327, 7
    %v1329 = vsub.s32 %v1326, %v1328
    %v1330 = vrot.slane %v1321, %v1329
    %v1332 = vunpack.c.l.s4 1966171168
    %v1333 = vunpack.c.0.s8 %v1332
    %v1334 = vlaneseq
    %v1335 = vshrl.u32 %v1334, 7
    %v1336 = vsub.s32 %v1333, %v1335
    %v1337 = vrot.slane %v1322, %v1336
    %v1339 = vunpack.c.l.s4 1966171168
    %v1340 = vunpack.c.0.s8 %v1339
    %v1341 = vlaneseq
    %v1342 = vshrl.u32 %v1341, 7
    %v1343 = vsub.s32 %v1340, %v1342
    %v1344 = vrot.slane %v1323, %v1343
    %v1345 = vcombine.low %v1330, %v1337
    %v1347 = vunpack.c.l.s4 1966171168
    %v1348 = vunpack.c.0.s8 %v1347
    %v1349 = vlaneseq
    %v1350 = vshrl.u32 %v1349, 7
    %v1351 = vsub.s32 %v1348, %v1350
    %v1352 = vrot.slane %v1345, %v1351
    %v1354 = vunpack.c.l.s4 1966171168
    %v1355 = vunpack.c.0.s8 %v1354
    %v1356 = vlaneseq
    %v1357 = vshrl.u32 %v1356, 7
    %v1358 = vsub.s32 %v1355, %v1357
    %v1359 = vrot.slane %v1344, %v1358
    %v1360 = vcombine.low %v1352, %v1359
    %vm1361 = vcmask 31744
    %v1362 = vsel %vm1361, %v1360, 0
    %vm1364 = vcmask 1043456
    %v1366 = vsel %vm1364, %v1320, 0
    %1368 = vmatprep.subr.mxu0 0.0
    %1369 = vmatpush1.msra.mxu0 %v1366
    %1370 = vmatprep.subr.mxu0 0.0
    %1371 = vmatpush1.msra.mxu0 0.0
    %1372 = vmatprep.subr.mxu0 0.0
    %1373 = vmatpush1.msra.mxu0 0.0
    %1374 = vmatprep.subr.mxu0 0.0
    %1375 = vmatpush1.msra.mxu0 0.0
    %1376 = vmatprep.subr.mxu0 0.0
    %1377 = vmatpush1.msra.mxu0 0.0
    %1378 = vmatprep.subr.mxu0 0.0
    %1379 = vmatpush1.msra.mxu0 0.0
    %1380 = vmatprep.subr.mxu0 0.0
    %1381 = vmatpush1.msra.mxu0 0.0
    %1382 = vmatprep.subr.mxu0 0.0
    %1383 = vmatpush1.msra.mxu0 0.0
    %1384 = vmatprep.subr.mxu0 0.0
    %1385 = vmatpush1.msra.mxu0 0.0
    %1386 = vmatprep.subr.mxu0 0.0
    %1387 = vmatpush1.msra.mxu0 0.0
    %1388 = vmatprep.subr.mxu0 0.0
    %1389 = vmatpush1.msra.mxu0 0.0
    %1390 = vmatprep.subr.mxu0 0.0
    %1391 = vmatpush1.msra.mxu0 0.0
    %1392 = vmatprep.subr.mxu0 0.0
    %1393 = vmatpush1.msra.mxu0 0.0
    %1394 = vmatprep.subr.mxu0 0.0
    %1395 = vmatpush1.msra.mxu0 0.0
    %1396 = vmatprep.subr.mxu0 0.0
    %1397 = vmatpush1.msra.mxu0 0.0
    %1398 = vmatprep.subr.mxu0 0.0
    %1399 = vmatpush1.msra.mxu0 0.0
    %1400 = vmatprep.subr.mxu0 0.0
    %1401 = vmatpush1.msra.mxu0 0.0
    %1402 = vmatprep.subr.mxu0 0.0
    %1403 = vmatpush1.msra.mxu0 0.0
    %1404 = vmatprep.subr.mxu0 0.0
    %1405 = vmatpush1.msra.mxu0 0.0
    %1406 = vmatprep.subr.mxu0 0.0
    %1407 = vmatpush1.msra.mxu0 0.0
    %1408 = vmatprep.subr.mxu0 0.0
    %1409 = vmatpush1.msra.mxu0 0.0
    %1410 = vmatprep.subr.mxu0 0.0
    %1411 = vmatpush1.msra.mxu0 0.0
    %1412 = vmatprep.subr.mxu0 0.0
    %1413 = vmatpush1.msra.mxu0 0.0
    %1414 = vmatprep.subr.mxu0 0.0
    %1415 = vmatpush1.msra.mxu0 0.0
    %1416 = vmatprep.subr.mxu0 0.0
    %1417 = vmatpush1.msra.mxu0 0.0
    %1418 = vmatprep.subr.mxu0 0.0
    %1419 = vmatpush1.msra.mxu0 0.0
    %1420 = vmatprep.subr.mxu0 0.0
    %1421 = vmatpush1.msra.mxu0 0.0
    %1422 = vmatprep.subr.mxu0 0.0
    %1423 = vmatpush1.msra.mxu0 0.0
    %1424 = vmatprep.subr.mxu0 0.0
    %1425 = vmatpush1.msra.mxu0 0.0
    %1426 = vmatprep.subr.mxu0 0.0
    %1427 = vmatpush1.msra.mxu0 0.0
    %1428 = vmatprep.subr.mxu0 0.0
    %1429 = vmatpush1.msra.mxu0 0.0
    %1430 = vmatprep.subr.mxu0 0.0
    %1431 = vmatpush1.msra.mxu0 0.0
    %1432 = vmatprep.mubr.f32.mxu0 0.0
    %1433 = vmatmul.mubr.f32.gmra.mrb[0].mxu0 %v1362
    %v1434 = vpop.f32.mrb[0].mxu0
    %v1435 = vadd.f32 0.0, %v1434
    %v1436 = vpop.f32.mrb[0].mxu0
    %1437 = vdwg.mxu0
    %v1439 = vcombine.high %v1435, %v1435
    %v1441 = vunpack.c.l.s4 1966171168
    %v1442 = vunpack.c.0.s8 %v1441
    %v1443 = vlaneseq
    %v1444 = vshrl.u32 %v1443, 7
    %v1445 = vsub.s32 %v1442, %v1444
    %v1446 = vrot.slane %v1435, %v1445
    %v1448 = vunpack.c.l.s4 1966171168
    %v1449 = vunpack.c.0.s8 %v1448
    %v1450 = vlaneseq
    %v1451 = vshrl.u32 %v1450, 7
    %v1452 = vsub.s32 %v1449, %v1451
    %v1453 = vrot.slane %v1439, %v1452
    %v1454 = vcombine.high %v1446, %v1446
    %v1455 = vcombine.high %v1453, %v1453
    %v1457 = vunpack.c.l.s4 1966171168
    %v1458 = vunpack.c.0.s8 %v1457
    %v1459 = vlaneseq
    %v1460 = vshrl.u32 %v1459, 7
    %v1461 = vsub.s32 %v1458, %v1460
    %v1462 = vrot.slane %v1446, %v1461
    %v1464 = vunpack.c.l.s4 1966171168
    %v1465 = vunpack.c.0.s8 %v1464
    %v1466 = vlaneseq
    %v1467 = vshrl.u32 %v1466, 7
    %v1468 = vsub.s32 %v1465, %v1467
    %v1469 = vrot.slane %v1453, %v1468
    %v1471 = vunpack.c.l.s4 1966171168
    %v1472 = vunpack.c.0.s8 %v1471
    %v1473 = vlaneseq
    %v1474 = vshrl.u32 %v1473, 7
    %v1475 = vsub.s32 %v1472, %v1474
    %v1476 = vrot.slane %v1454, %v1475
    %v1478 = vunpack.c.l.s4 1966171168
    %v1479 = vunpack.c.0.s8 %v1478
    %v1480 = vlaneseq
    %v1481 = vshrl.u32 %v1480, 7
    %v1482 = vsub.s32 %v1479, %v1481
    %v1483 = vrot.slane %v1455, %v1482
    %v1484 = vcombine.high %v1462, %v1462
    %v1485 = vcombine.high %v1476, %v1476
    %v1494 = vunpack.c.l.s4 1966171168
    %v1495 = vunpack.c.0.s8 %v1494
    %v1496 = vlaneseq
    %v1497 = vshrl.u32 %v1496, 7
    %v1498 = vsub.s32 %v1495, %v1497
    %v1499 = vrot.slane %v1317, %v1498
    %v1500 = vcombine.high %v1499, %v1499
    %v1502 = vunpack.c.l.s4 1966171168
    %v1503 = vunpack.c.0.s8 %v1502
    %v1504 = vlaneseq
    %v1505 = vshrl.u32 %v1504, 7
    %v1506 = vsub.s32 %v1503, %v1505
    %v1507 = vrot.slane %v1499, %v1506
    %v1509 = vunpack.c.l.s4 1966171168
    %v1510 = vunpack.c.0.s8 %v1509
    %v1511 = vlaneseq
    %v1512 = vshrl.u32 %v1511, 7
    %v1513 = vsub.s32 %v1510, %v1512
    %v1514 = vrot.slane %v1500, %v1513
    %v1515 = vlaneseq
    %v1516 = vshrl.u32 %v1515, 7
    %v1517 = vsub.s32 0, %v1516
    %v1518 = vrot.slane %v1507, %v1517
    %v1519 = vlaneseq
    %v1520 = vshrl.u32 %v1519, 7
    %v1521 = vsub.s32 0, %v1520
    %v1522 = vrot.slane %v1514, %v1521
    %v1524 = vunpack.c.l.s4 1966171168
    %v1525 = vunpack.c.0.s8 %v1524
    %v1526 = vlaneseq
    %v1527 = vshrl.u32 %v1526, 7
    %v1528 = vsub.s32 %v1525, %v1527
    %v1529 = vrot.slane %v1518, %v1528
    %v1530 = vcombine.high %v1529, %v1529
    %v1532 = vunpack.c.l.s4 1966171168
    %v1533 = vunpack.c.0.s8 %v1532
    %v1534 = vlaneseq
    %v1535 = vshrl.u32 %v1534, 7
    %v1536 = vsub.s32 %v1533, %v1535
    %v1537 = vrot.slane %v1529, %v1536
    %v1539 = vunpack.c.l.s4 1966171168
    %v1540 = vunpack.c.0.s8 %v1539
    %v1541 = vlaneseq
    %v1542 = vshrl.u32 %v1541, 7
    %v1543 = vsub.s32 %v1540, %v1542
    %v1544 = vrot.slane %v1530, %v1543
    %v1545 = vcombine.high %v1537, %v1537
    %v1547 = vunpack.c.l.s4 1966171168
    %v1548 = vunpack.c.0.s8 %v1547
    %v1549 = vlaneseq
    %v1550 = vshrl.u32 %v1549, 7
    %v1551 = vsub.s32 %v1548, %v1550
    %v1552 = vrot.slane %v1522, %v1551
    %v1553 = vcombine.high %v1552, %v1552
    %v1555 = vunpack.c.l.s4 1966171168
    %v1556 = vunpack.c.0.s8 %v1555
    %v1557 = vlaneseq
    %v1558 = vshrl.u32 %v1557, 7
    %v1559 = vsub.s32 %v1556, %v1558
    %v1560 = vrot.slane %v1552, %v1559
    %v1562 = vunpack.c.l.s4 1966171168
    %v1563 = vunpack.c.0.s8 %v1562
    %v1564 = vlaneseq
    %v1565 = vshrl.u32 %v1564, 7
    %v1566 = vsub.s32 %v1563, %v1565
    %v1567 = vrot.slane %v1553, %v1566
    %v1568 = vcombine.high %v1560, %v1560
    %v1575 = vadd.f32 %v1462, %v1537
    %v1576 = vadd.f32 %v1476, %v1544
    %v1577 = vadd.f32 %v1484, %v1545
    %v1578 = vadd.f32 %v1485, %v1560
    %v1579 = vadd.f32 %v1469, %v1567
    %v1580 = vadd.f32 %v1483, %v1568
    %v1581 = vld [vmem:[#allocation17] sm:$0x1]
    %v1583 = vlaneseq
    %v1584 = vshrl.u32 %v1583, 7
    %v1585 = vsub.s32 0, %v1584
    %v1586 = vrot.slane %v1581, %v1585
    %v1588 = vunpack.c.l.s4 1966171168
    %v1589 = vunpack.c.0.s8 %v1588
    %v1590 = vlaneseq
    %v1591 = vshrl.u32 %v1590, 7
    %v1592 = vsub.s32 %v1589, %v1591
    %v1593 = vrot.slane %v1586, %v1592
    %v1594 = vcombine.high %v1593, %v1593
    %v1596 = vunpack.c.l.s4 1966171168
    %v1597 = vunpack.c.0.s8 %v1596
    %v1598 = vlaneseq
    %v1599 = vshrl.u32 %v1598, 7
    %v1600 = vsub.s32 %v1597, %v1599
    %v1601 = vrot.slane %v1593, %v1600
    %v1603 = vunpack.c.l.s4 1966171168
    %v1604 = vunpack.c.0.s8 %v1603
    %v1605 = vlaneseq
    %v1606 = vshrl.u32 %v1605, 7
    %v1607 = vsub.s32 %v1604, %v1606
    %v1608 = vrot.slane %v1594, %v1607
    %v1609 = vcombine.high %v1601, %v1601
    %v1613 = vadd.f32 %v1575, %v1601
    %v1614 = vadd.f32 %v1576, %v1608
    %v1615 = vadd.f32 %v1577, %v1609
    %v1616 = vadd.f32 %v1578, %v1601
    %v1617 = vadd.f32 %v1579, %v1608
    %v1618 = vadd.f32 %v1580, %v1609
    %v1619 = vxor.u32 %v1613, 2147483648
    %v1620 = vxor.u32 %v1614, 2147483648
    %v1621 = vxor.u32 %v1615, 2147483648
    %v1622 = vxor.u32 %v1616, 2147483648
    %v1623 = vxor.u32 %v1617, 2147483648
    %v1624 = vxor.u32 %v1618, 2147483648
    %v1625 = vmul.f32 %v1619, 1.442695
    %v1626 = vpow.pop %v1625
    %v1627 = vmul.f32 %v1620, 1.442695
    %v1628 = vpow.pop %v1627
    %v1629 = vmul.f32 %v1621, 1.442695
    %v1630 = vpow.pop %v1629
    %v1631 = vmul.f32 %v1622, 1.442695
    %v1632 = vpow.pop %v1631
    %v1633 = vmul.f32 %v1623, 1.442695
    %v1634 = vpow.pop %v1633
    %v1635 = vmul.f32 %v1624, 1.442695
    %v1636 = vpow.pop %v1635
    %v1637 = vadd.f32 %v1626, 1.0
    %v1638 = vadd.f32 %v1628, 1.0
    %v1639 = vadd.f32 %v1630, 1.0
    %v1640 = vadd.f32 %v1632, 1.0
    %v1641 = vadd.f32 %v1634, 1.0
    %v1642 = vadd.f32 %v1636, 1.0
    %v1643 = vrcp.pop %v1637
    %v1644 = vmul.f32 1.0, %v1643
    %v1645 = vrcp.pop %v1638
    %v1646 = vmul.f32 1.0, %v1645
    %v1647 = vrcp.pop %v1639
    %v1648 = vmul.f32 1.0, %v1647
    %v1649 = vrcp.pop %v1640
    %v1650 = vmul.f32 1.0, %v1649
    %v1651 = vrcp.pop %v1641
    %v1652 = vmul.f32 1.0, %v1651
    %v1653 = vrcp.pop %v1642
    %v1654 = vmul.f32 1.0, %v1653
    %v1655 = vmul.f32 %v1613, %v1644
    %v1656 = vmul.f32 %v1614, %v1646
    %v1657 = vmul.f32 %v1615, %v1648
    %v1658 = vmul.f32 %v1616, %v1650
    %v1659 = vmul.f32 %v1617, %v1652
    %v1660 = vmul.f32 %v1618, %v1654
    %v1661 = vld [vmem:[%s12] sm:$0xff]
    %v1662 = vld [vmem:[%s12 + $0x8] sm:$0xff]
    %v1663 = vld [vmem:[%s12 + $0x10] sm:$0xff]
    %v1664 = vld [vmem:[%s12 + $0x18] sm:$0xff]
    %v1665 = vld [vmem:[#allocation18] sm:$0x1]
    %v1667 = vlaneseq
    %v1668 = vshrl.u32 %v1667, 7
    %v1669 = vsub.s32 0, %v1668
    %v1670 = vrot.slane %v1665, %v1669
    %v1678 = vcombine.low %v1655, %v1656
    %v1679 = vcombine.low %v1657, %v1658
    %v1680 = vcombine.low %v1659, %v1660
    %v1682 = vunpack.c.l.s4 1966171168
    %v1683 = vunpack.c.0.s8 %v1682
    %v1684 = vlaneseq
    %v1685 = vshrl.u32 %v1684, 7
    %v1686 = vsub.s32 %v1683, %v1685
    %v1687 = vrot.slane %v1678, %v1686
    %v1689 = vunpack.c.l.s4 1966171168
    %v1690 = vunpack.c.0.s8 %v1689
    %v1691 = vlaneseq
    %v1692 = vshrl.u32 %v1691, 7
    %v1693 = vsub.s32 %v1690, %v1692
    %v1694 = vrot.slane %v1679, %v1693
    %v1696 = vunpack.c.l.s4 1966171168
    %v1697 = vunpack.c.0.s8 %v1696
    %v1698 = vlaneseq
    %v1699 = vshrl.u32 %v1698, 7
    %v1700 = vsub.s32 %v1697, %v1699
    %v1701 = vrot.slane %v1680, %v1700
    %v1702 = vcombine.low %v1687, %v1694
    %v1704 = vunpack.c.l.s4 1966171168
    %v1705 = vunpack.c.0.s8 %v1704
    %v1706 = vlaneseq
    %v1707 = vshrl.u32 %v1706, 7
    %v1708 = vsub.s32 %v1705, %v1707
    %v1709 = vrot.slane %v1702, %v1708
    %v1711 = vunpack.c.l.s4 1966171168
    %v1712 = vunpack.c.0.s8 %v1711
    %v1713 = vlaneseq
    %v1714 = vshrl.u32 %v1713, 7
    %v1715 = vsub.s32 %v1712, %v1714
    %v1716 = vrot.slane %v1701, %v1715
    %v1717 = vcombine.low %v1709, %v1716
    %v1718 = vsel %vm949, %v1717, 0
    %1720 = vmatprep.subr.mxu0 0.0
    %1721 = vmatpush1.msra.mxu0 %v1661
    %1722 = vmatprep.subr.mxu0 0.0
    %1723 = vmatpush1.msra.mxu0 %v1662
    %1724 = vmatprep.subr.mxu0 0.0
    %1725 = vmatpush1.msra.mxu0 %v1663
    %1726 = vmatprep.subr.mxu0 0.0
    %1727 = vmatpush1.msra.mxu0 %v1664
    %1728 = vmatprep.subr.mxu0 0.0
    %1729 = vmatpush1.msra.mxu0 0.0
    %1730 = vmatprep.subr.mxu0 0.0
    %1731 = vmatpush1.msra.mxu0 0.0
    %1732 = vmatprep.subr.mxu0 0.0
    %1733 = vmatpush1.msra.mxu0 0.0
    %1734 = vmatprep.subr.mxu0 0.0
    %1735 = vmatpush1.msra.mxu0 0.0
    %1736 = vmatprep.subr.mxu0 0.0
    %1737 = vmatpush1.msra.mxu0 0.0
    %1738 = vmatprep.subr.mxu0 0.0
    %1739 = vmatpush1.msra.mxu0 0.0
    %1740 = vmatprep.subr.mxu0 0.0
    %1741 = vmatpush1.msra.mxu0 0.0
    %1742 = vmatprep.subr.mxu0 0.0
    %1743 = vmatpush1.msra.mxu0 0.0
    %1744 = vmatprep.subr.mxu0 0.0
    %1745 = vmatpush1.msra.mxu0 0.0
    %1746 = vmatprep.subr.mxu0 0.0
    %1747 = vmatpush1.msra.mxu0 0.0
    %1748 = vmatprep.subr.mxu0 0.0
    %1749 = vmatpush1.msra.mxu0 0.0
    %1750 = vmatprep.subr.mxu0 0.0
    %1751 = vmatpush1.msra.mxu0 0.0
    %1752 = vmatprep.subr.mxu0 0.0
    %1753 = vmatpush1.msra.mxu0 0.0
    %1754 = vmatprep.subr.mxu0 0.0
    %1755 = vmatpush1.msra.mxu0 0.0
    %1756 = vmatprep.subr.mxu0 0.0
    %1757 = vmatpush1.msra.mxu0 0.0
    %1758 = vmatprep.subr.mxu0 0.0
    %1759 = vmatpush1.msra.mxu0 0.0
    %1760 = vmatprep.subr.mxu0 0.0
    %1761 = vmatpush1.msra.mxu0 0.0
    %1762 = vmatprep.subr.mxu0 0.0
    %1763 = vmatpush1.msra.mxu0 0.0
    %1764 = vmatprep.subr.mxu0 0.0
    %1765 = vmatpush1.msra.mxu0 0.0
    %1766 = vmatprep.subr.mxu0 0.0
    %1767 = vmatpush1.msra.mxu0 0.0
    %1768 = vmatprep.subr.mxu0 0.0
    %1769 = vmatpush1.msra.mxu0 0.0
    %1770 = vmatprep.subr.mxu0 0.0
    %1771 = vmatpush1.msra.mxu0 0.0
    %1772 = vmatprep.subr.mxu0 0.0
    %1773 = vmatpush1.msra.mxu0 0.0
    %1774 = vmatprep.subr.mxu0 0.0
    %1775 = vmatpush1.msra.mxu0 0.0
    %1776 = vmatprep.subr.mxu0 0.0
    %1777 = vmatpush1.msra.mxu0 0.0
    %1778 = vmatprep.subr.mxu0 0.0
    %1779 = vmatpush1.msra.mxu0 0.0
    %1780 = vmatprep.subr.mxu0 0.0
    %1781 = vmatpush1.msra.mxu0 0.0
    %1782 = vmatprep.subr.mxu0 0.0
    %1783 = vmatpush1.msra.mxu0 0.0
    %1784 = vmatprep.mubr.f32.mxu0 0.0
    %1785 = vmatmul.mubr.f32.gmra.mrb[0].mxu0 %v1718
    %v1786 = vpop.f32.mrb[0].mxu0
    %v1787 = vadd.f32 %v1670, %v1786
    %v1788 = vpop.f32.mrb[0].mxu0
    %1789 = vdwg.mxu0
    %v1790 = vxor.u32 %v1787, 2147483648
    %v1791 = vmul.f32 %v1790, 1.442695
    %v1792 = vpow.pop %v1791
    %v1793 = vadd.f32 %v1792, 1.0
    %v1794 = vrcp.pop %v1793
    %v1795 = vmul.f32 1.0, %v1794
    %v1796 = vmul.f32 %v1787, %v1795
    %v1798 = vcombine.high %v1796, %v1796
    %v1800 = vunpack.c.l.s4 1966171168
    %v1801 = vunpack.c.0.s8 %v1800
    %v1802 = vlaneseq
    %v1803 = vshrl.u32 %v1802, 7
    %v1804 = vsub.s32 %v1801, %v1803
    %v1805 = vrot.slane %v1796, %v1804
    %v1807 = vunpack.c.l.s4 1966171168
    %v1808 = vunpack.c.0.s8 %v1807
    %v1809 = vlaneseq
    %v1810 = vshrl.u32 %v1809, 7
    %v1811 = vsub.s32 %v1808, %v1810
    %v1812 = vrot.slane %v1798, %v1811
    %v1813 = vcombine.high %v1805, %v1805
    %v1814 = vcombine.high %v1812, %v1812
    %v1816 = vunpack.c.l.s4 1966171168
    %v1817 = vunpack.c.0.s8 %v1816
    %v1818 = vlaneseq
    %v1819 = vshrl.u32 %v1818, 7
    %v1820 = vsub.s32 %v1817, %v1819
    %v1821 = vrot.slane %v1805, %v1820
    %v1823 = vunpack.c.l.s4 1966171168
    %v1824 = vunpack.c.0.s8 %v1823
    %v1825 = vlaneseq
    %v1826 = vshrl.u32 %v1825, 7
    %v1827 = vsub.s32 %v1824, %v1826
    %v1828 = vrot.slane %v1812, %v1827
    %v1830 = vunpack.c.l.s4 1966171168
    %v1831 = vunpack.c.0.s8 %v1830
    %v1832 = vlaneseq
    %v1833 = vshrl.u32 %v1832, 7
    %v1834 = vsub.s32 %v1831, %v1833
    %v1835 = vrot.slane %v1813, %v1834
    %v1837 = vunpack.c.l.s4 1966171168
    %v1838 = vunpack.c.0.s8 %v1837
    %v1839 = vlaneseq
    %v1840 = vshrl.u32 %v1839, 7
    %v1841 = vsub.s32 %v1838, %v1840
    %v1842 = vrot.slane %v1814, %v1841
    %v1843 = vcombine.high %v1821, %v1821
    %v1844 = vcombine.high %v1835, %v1835
    %v1845 = vcombine.low %v1821, %v1835
    %v1847 = vunpack.c.l.s4 1966171168
    %v1848 = vunpack.c.0.s8 %v1847
    %v1849 = vlaneseq
    %v1850 = vshrl.u32 %v1849, 7
    %v1851 = vsub.s32 %v1848, %v1850
    %v1852 = vrot.slane %v1845, %v1851
    %v1854 = vunpack.c.l.s4 1966171168
    %v1855 = vunpack.c.0.s8 %v1854
    %v1856 = vlaneseq
    %v1857 = vshrl.u32 %v1856, 7
    %v1858 = vsub.s32 %v1855, %v1857
    %v1859 = vrot.slane %v1843, %v1858
    %v1860 = vcombine.low %v1852, %v1859
    %v1862 = vunpack.c.l.s4 1966171168
    %v1863 = vunpack.c.0.s8 %v1862
    %v1864 = vlaneseq
    %v1865 = vshrl.u32 %v1864, 7
    %v1866 = vsub.s32 %v1863, %v1865
    %v1867 = vrot.slane %v1860, %v1866
    %v1868 = vcombine.low %v1844, %v1828
    %v1870 = vunpack.c.l.s4 1966171168
    %v1871 = vunpack.c.0.s8 %v1870
    %v1872 = vlaneseq
    %v1873 = vshrl.u32 %v1872, 7
    %v1874 = vsub.s32 %v1871, %v1873
    %v1875 = vrot.slane %v1868, %v1874
    %v1877 = vunpack.c.l.s4 1966171168
    %v1878 = vunpack.c.0.s8 %v1877
    %v1879 = vlaneseq
    %v1880 = vshrl.u32 %v1879, 7
    %v1881 = vsub.s32 %v1878, %v1880
    %v1882 = vrot.slane %v1842, %v1881
    %v1883 = vcombine.low %v1875, %v1882
    %v1885 = vunpack.c.l.s4 1966171168
    %v1886 = vunpack.c.0.s8 %v1885
    %v1887 = vlaneseq
    %v1888 = vshrl.u32 %v1887, 7
    %v1889 = vsub.s32 %v1886, %v1888
    %v1890 = vrot.slane %v1883, %v1889
    %vm1893 = vcmask 256000
    %1894 = vst.msk [vmem:[#allocation2 + $0x5] sm:$0x7] %vm1893, %v1867
    %1895 = vst.msk [vmem:[#allocation2 + $0xd] sm:$0x7] %vm1893, %v1890
    %v1896 = vld [vmem:[#allocation2] sm:$0xff]
    %v1897 = vld [vmem:[#allocation2 + $0x8] sm:$0xff]
    %v1898 = vld [vmem:[%s14] sm:$0xff]
    %v1899 = vld [vmem:[%s14 + $0x8] sm:$0xff]
    %v1900 = vld [vmem:[%s14 + $0x10] sm:$0xff]
    %v1901 = vld [vmem:[%s14 + $0x18] sm:$0xff]
    %v1902 = vld [vmem:[%s14 + $0x20] sm:$0xff]
    %v1903 = vld [vmem:[%s14 + $0x28] sm:$0xff]
    %v1904 = vld [vmem:[%s14 + $0x30] sm:$0xff]
    %v1905 = vld [vmem:[%s14 + $0x38] sm:$0xff]
    %v1906 = vld [vmem:[%s14 + $0x40] sm:$0xff]
    %v1907 = vld [vmem:[%s14 + $0x48] sm:$0xff]
    %v1908 = vld [vmem:[%s14 + $0x50] sm:$0xff]
    %v1909 = vld [vmem:[%s14 + $0x58] sm:$0xff]
    %v1910 = vld [vmem:[#allocation20] sm:$0x7]
    %v1912 = vlaneseq
    %v1913 = vshrl.u32 %v1912, 7
    %v1914 = vsub.s32 0, %v1913
    %v1915 = vrot.slane %v1910, %v1914
    %v1916 = vlaneseq
    %v1917 = vshrl.u32 %v1916, 7
    %v1918 = vsub.s32 1, %v1917
    %v1919 = vrot.slane %v1910, %v1918
    %v1920 = vlaneseq
    %v1921 = vshrl.u32 %v1920, 7
    %v1922 = vsub.s32 2, %v1921
    %v1923 = vrot.slane %v1910, %v1922
    %v1928 = vsel %vm949, %v1896, 0
    %v1931 = vsel %vm949, %v1897, 0
    %1933 = vmatprep.subr.mxu0 %v1899
    %1934 = vmatpush1.msra.mxu0 %v1898
    %1935 = vmatprep.subr.mxu0 %v1902
    %1936 = vmatpush1.msra.mxu0 %v1901
    %1937 = vmatprep.subr.mxu0 %v1905
    %1938 = vmatpush1.msra.mxu0 %v1904
    %1939 = vmatprep.subr.mxu0 %v1908
    %1940 = vmatpush1.msra.mxu0 %v1907
    %1941 = vmatprep.subr.mxu0 0.0
    %1942 = vmatpush1.msra.mxu0 0.0
    %1943 = vmatprep.subr.mxu0 0.0
    %1944 = vmatpush1.msra.mxu0 0.0
    %1945 = vmatprep.subr.mxu0 0.0
    %1946 = vmatpush1.msra.mxu0 0.0
    %1947 = vmatprep.subr.mxu0 0.0
    %1948 = vmatpush1.msra.mxu0 0.0
    %1949 = vmatprep.subr.mxu0 0.0
    %1950 = vmatpush1.msra.mxu0 0.0
    %1951 = vmatprep.subr.mxu0 0.0
    %1952 = vmatpush1.msra.mxu0 0.0
    %1953 = vmatprep.subr.mxu0 0.0
    %1954 = vmatpush1.msra.mxu0 0.0
    %1955 = vmatprep.subr.mxu0 0.0
    %1956 = vmatpush1.msra.mxu0 0.0
    %1957 = vmatprep.subr.mxu0 0.0
    %1958 = vmatpush1.msra.mxu0 0.0
    %1959 = vmatprep.subr.mxu0 0.0
    %1960 = vmatpush1.msra.mxu0 0.0
    %1961 = vmatprep.subr.mxu0 0.0
    %1962 = vmatpush1.msra.mxu0 0.0
    %1963 = vmatprep.subr.mxu0 0.0
    %1964 = vmatpush1.msra.mxu0 0.0
    %1965 = vmatprep.subr.mxu0 0.0
    %1966 = vmatpush1.msra.mxu0 0.0
    %1967 = vmatprep.subr.mxu0 0.0
    %1968 = vmatpush1.msra.mxu0 0.0
    %1969 = vmatprep.subr.mxu0 0.0
    %1970 = vmatpush1.msra.mxu0 0.0
    %1971 = vmatprep.subr.mxu0 0.0
    %1972 = vmatpush1.msra.mxu0 0.0
    %1973 = vmatprep.subr.mxu0 0.0
    %1974 = vmatpush1.msra.mxu0 0.0
    %1975 = vmatprep.subr.mxu0 0.0
    %1976 = vmatpush1.msra.mxu0 0.0
    %1977 = vmatprep.subr.mxu0 0.0
    %1978 = vmatpush1.msra.mxu0 0.0
    %1979 = vmatprep.subr.mxu0 0.0
    %1980 = vmatpush1.msra.mxu0 0.0
    %1981 = vmatprep.subr.mxu0 0.0
    %1982 = vmatpush1.msra.mxu0 0.0
    %1983 = vmatprep.subr.mxu0 0.0
    %1984 = vmatpush1.msra.mxu0 0.0
    %1985 = vmatprep.subr.mxu0 0.0
    %1986 = vmatpush1.msra.mxu0 0.0
    %1987 = vmatprep.subr.mxu0 0.0
    %1988 = vmatpush1.msra.mxu0 0.0
    %1989 = vmatprep.subr.mxu0 0.0
    %1990 = vmatpush1.msra.mxu0 0.0
    %1991 = vmatprep.subr.mxu0 0.0
    %1992 = vmatpush1.msra.mxu0 0.0
    %1993 = vmatprep.subr.mxu0 0.0
    %1994 = vmatpush1.msra.mxu0 0.0
    %1995 = vmatprep.subr.mxu0 0.0
    %1996 = vmatpush1.msra.mxu0 0.0
    %1997 = vmatprep.mubr.f32.mxu0 0.0
    %1998 = vmatmul.mubr.f32.gmra.mrb[0].mxu0 %v1928
    %v1999 = vpop.f32.mrb[0].mxu0
    %v2000 = vadd.f32 %v1915, %v1999
    %v2001 = vpop.f32.mrb[0].mxu0
    %v2002 = vadd.f32 %v1919, %v2001
    %2003 = vmatprep.mubr.f32.mxu0 0.0
    %2004 = vmatmul.mubr.f32.gmra.mrb[0].mxu0 %v1931
    %v2005 = vpop.f32.mrb[0].mxu0
    %v2006 = vadd.f32 %v1915, %v2005
    %v2007 = vpop.f32.mrb[0].mxu0
    %v2008 = vadd.f32 %v1919, %v2007
    %2009 = vdwg.mxu0
    %2010 = vmatprep.subr.mxu0 0.0
    %2011 = vmatpush1.msra.mxu0 %v1900
    %2012 = vmatprep.subr.mxu0 0.0
    %2013 = vmatpush1.msra.mxu0 %v1903
    %2014 = vmatprep.subr.mxu0 0.0
    %2015 = vmatpush1.msra.mxu0 %v1906
    %2016 = vmatprep.subr.mxu0 0.0
    %2017 = vmatpush1.msra.mxu0 %v1909
    %2018 = vmatprep.subr.mxu0 0.0
    %2019 = vmatpush1.msra.mxu0 0.0
    %2020 = vmatprep.subr.mxu0 0.0
    %2021 = vmatpush1.msra.mxu0 0.0
    %2022 = vmatprep.subr.mxu0 0.0
    %2023 = vmatpush1.msra.mxu0 0.0
    %2024 = vmatprep.subr.mxu0 0.0
    %2025 = vmatpush1.msra.mxu0 0.0
    %2026 = vmatprep.subr.mxu0 0.0
    %2027 = vmatpush1.msra.mxu0 0.0
    %2028 = vmatprep.subr.mxu0 0.0
    %2029 = vmatpush1.msra.mxu0 0.0
    %2030 = vmatprep.subr.mxu0 0.0
    %2031 = vmatpush1.msra.mxu0 0.0
    %2032 = vmatprep.subr.mxu0 0.0
    %2033 = vmatpush1.msra.mxu0 0.0
    %2034 = vmatprep.subr.mxu0 0.0
    %2035 = vmatpush1.msra.mxu0 0.0
    %2036 = vmatprep.subr.mxu0 0.0
    %2037 = vmatpush1.msra.mxu0 0.0
    %2038 = vmatprep.subr.mxu0 0.0
    %2039 = vmatpush1.msra.mxu0 0.0
    %2040 = vmatprep.subr.mxu0 0.0
    %2041 = vmatpush1.msra.mxu0 0.0
    %2042 = vmatprep.subr.mxu0 0.0
    %2043 = vmatpush1.msra.mxu0 0.0
    %2044 = vmatprep.subr.mxu0 0.0
    %2045 = vmatpush1.msra.mxu0 0.0
    %2046 = vmatprep.subr.mxu0 0.0
    %2047 = vmatpush1.msra.mxu0 0.0
    %2048 = vmatprep.subr.mxu0 0.0
    %2049 = vmatpush1.msra.mxu0 0.0
    %2050 = vmatprep.subr.mxu0 0.0
    %2051 = vmatpush1.msra.mxu0 0.0
    %2052 = vmatprep.subr.mxu0 0.0
    %2053 = vmatpush1.msra.mxu0 0.0
    %2054 = vmatprep.subr.mxu0 0.0
    %2055 = vmatpush1.msra.mxu0 0.0
    %2056 = vmatprep.subr.mxu0 0.0
    %2057 = vmatpush1.msra.mxu0 0.0
    %2058 = vmatprep.subr.mxu0 0.0
    %2059 = vmatpush1.msra.mxu0 0.0
    %2060 = vmatprep.subr.mxu0 0.0
    %2061 = vmatpush1.msra.mxu0 0.0
    %2062 = vmatprep.subr.mxu0 0.0
    %2063 = vmatpush1.msra.mxu0 0.0
    %2064 = vmatprep.subr.mxu0 0.0
    %2065 = vmatpush1.msra.mxu0 0.0
    %2066 = vmatprep.subr.mxu0 0.0
    %2067 = vmatpush1.msra.mxu0 0.0
    %2068 = vmatprep.subr.mxu0 0.0
    %2069 = vmatpush1.msra.mxu0 0.0
    %2070 = vmatprep.subr.mxu0 0.0
    %2071 = vmatpush1.msra.mxu0 0.0
    %2072 = vmatprep.subr.mxu0 0.0
    %2073 = vmatpush1.msra.mxu0 0.0
    %2074 = vmatprep.mubr.f32.mxu0 0.0
    %2075 = vmatmul.mubr.f32.gmra.mrb[0].mxu0 %v1928
    %v2076 = vpop.f32.mrb[0].mxu0
    %v2077 = vadd.f32 %v1923, %v2076
    %v2078 = vpop.f32.mrb[0].mxu0
    %2079 = vmatprep.mubr.f32.mxu0 0.0
    %2080 = vmatmul.mubr.f32.gmra.mrb[0].mxu0 %v1931
    %v2081 = vpop.f32.mrb[0].mxu0
    %v2082 = vadd.f32 %v1923, %v2081
    %v2083 = vpop.f32.mrb[0].mxu0
    %2084 = vdwg.mxu0
    %v2087 = vunpack.c.l.s4 1966171168
    %v2088 = vunpack.c.0.s8 %v2087
    %v2089 = vlaneseq
    %v2090 = vshrl.u32 %v2089, 7
    %v2091 = vsub.s32 %v2088, %v2090
    %v2092 = vrot.slane %v215, %v2091
    %v2093 = vcombine.high %v2092, %v2092
    %v2095 = vunpack.c.l.s4 1966171168
    %v2096 = vunpack.c.0.s8 %v2095
    %v2097 = vlaneseq
    %v2098 = vshrl.u32 %v2097, 7
    %v2099 = vsub.s32 %v2096, %v2098
    %v2100 = vrot.slane %v2092, %v2099
    %v2102 = vunpack.c.l.s4 1966171168
    %v2103 = vunpack.c.0.s8 %v2102
    %v2104 = vlaneseq
    %v2105 = vshrl.u32 %v2104, 7
    %v2106 = vsub.s32 %v2103, %v2105
    %v2107 = vrot.slane %v2093, %v2106
    %v2110 = vsub.f32 1.0, %v2100
    %v2111 = vsub.f32 1.0, %v2107
    %v2113 = vsel %vm949, %v2000, 0
    %v2116 = vsel %vm949, %v2002, 0
    %2118 = vmatprep.subr.mxu0 0.0
    %2119 = vmatpush1.xpose.msra.mxu0 %v2116
    %2120 = vmatprep.subr.mxu0 0.0
    %2121 = vmatpush1.xpose.msra.mxu0 0.0
    %2122 = vmatprep.subr.mxu0 0.0
    %2123 = vmatpush1.xpose.msra.mxu0 0.0
    %2124 = vmatprep.subr.mxu0 0.0
    %2125 = vmatpush1.xpose.msra.mxu0 0.0
    %2126 = vmatprep.subr.mxu0 0.0
    %2127 = vmatpush1.xpose.msra.mxu0 0.0
    %2128 = vmatprep.subr.mxu0 0.0
    %2129 = vmatpush1.xpose.msra.mxu0 0.0
    %2130 = vmatprep.subr.mxu0 0.0
    %2131 = vmatpush1.xpose.msra.mxu0 0.0
    %2132 = vmatprep.subr.mxu0 0.0
    %2133 = vmatpush1.xpose.msra.mxu0 0.0
    %2134 = vmatprep.subr.mxu0 0.0
    %2135 = vmatpush1.xpose.msra.mxu0 0.0
    %2136 = vmatprep.subr.mxu0 0.0
    %2137 = vmatpush1.xpose.msra.mxu0 0.0
    %2138 = vmatprep.subr.mxu0 0.0
    %2139 = vmatpush1.xpose.msra.mxu0 0.0
    %2140 = vmatprep.subr.mxu0 0.0
    %2141 = vmatpush1.xpose.msra.mxu0 0.0
    %2142 = vmatprep.subr.mxu0 0.0
    %2143 = vmatpush1.xpose.msra.mxu0 0.0
    %2144 = vmatprep.subr.mxu0 0.0
    %2145 = vmatpush1.xpose.msra.mxu0 0.0
    %2146 = vmatprep.subr.mxu0 0.0
    %2147 = vmatpush1.xpose.msra.mxu0 0.0
    %2148 = vmatprep.subr.mxu0 0.0
    %2149 = vmatpush1.xpose.msra.mxu0 0.0
    %2150 = vmatprep.subr.mxu0 0.0
    %2151 = vmatpush1.xpose.msra.mxu0 0.0
    %2152 = vmatprep.subr.mxu0 0.0
    %2153 = vmatpush1.xpose.msra.mxu0 0.0
    %2154 = vmatprep.subr.mxu0 0.0
    %2155 = vmatpush1.xpose.msra.mxu0 0.0
    %2156 = vmatprep.subr.mxu0 0.0
    %2157 = vmatpush1.xpose.msra.mxu0 0.0
    %2158 = vmatprep.subr.mxu0 0.0
    %2159 = vmatpush1.xpose.msra.mxu0 0.0
    %2160 = vmatprep.subr.mxu0 0.0
    %2161 = vmatpush1.xpose.msra.mxu0 0.0
    %2162 = vmatprep.subr.mxu0 0.0
    %2163 = vmatpush1.xpose.msra.mxu0 0.0
    %2164 = vmatprep.subr.mxu0 0.0
    %2165 = vmatpush1.xpose.msra.mxu0 0.0
    %2166 = vmatprep.subr.mxu0 0.0
    %2167 = vmatpush1.xpose.msra.mxu0 0.0
    %2168 = vmatprep.subr.mxu0 0.0
    %2169 = vmatpush1.xpose.msra.mxu0 0.0
    %2170 = vmatprep.subr.mxu0 0.0
    %2171 = vmatpush1.xpose.msra.mxu0 0.0
    %2172 = vmatprep.subr.mxu0 0.0
    %2173 = vmatpush1.xpose.msra.mxu0 0.0
    %2174 = vmatprep.subr.mxu0 0.0
    %2175 = vmatpush1.xpose.msra.mxu0 0.0
    %2176 = vmatprep.subr.mxu0 0.0
    %2177 = vmatpush1.xpose.msra.mxu0 0.0
    %2178 = vmatprep.subr.mxu0 0.0
    %2179 = vmatpush1.xpose.msra.mxu0 0.0
    %2180 = vmatprep.subr.mxu0 0.0
    %2181 = vmatpush1.xpose.msra.mxu0 0.0
    %2182 = vmatprep.mubr.f32.mxu0 0.0
    %2183 = vmatmul.mubr.f32.gmra.mrb[0].mxu0 %v2113
    %v2184 = vpop.f32.mrb[0].mxu0
    %v2185 = vadd.f32 0.0, %v2184
    %v2186 = vpop.f32.mrb[0].mxu0
    %2187 = vdwg.mxu0
    %v2189 = vsel %vm949, %v2006, 0
    %v2192 = vsel %vm949, %v2008, 0
    %2194 = vmatprep.subr.mxu0 0.0
    %2195 = vmatpush1.xpose.msra.mxu0 %v2192
    %2196 = vmatprep.subr.mxu0 0.0
    %2197 = vmatpush1.xpose.msra.mxu0 0.0
    %2198 = vmatprep.subr.mxu0 0.0
    %2199 = vmatpush1.xpose.msra.mxu0 0.0
    %2200 = vmatprep.subr.mxu0 0.0
    %2201 = vmatpush1.xpose.msra.mxu0 0.0
    %2202 = vmatprep.subr.mxu0 0.0
    %2203 = vmatpush1.xpose.msra.mxu0 0.0
    %2204 = vmatprep.subr.mxu0 0.0
    %2205 = vmatpush1.xpose.msra.mxu0 0.0
    %2206 = vmatprep.subr.mxu0 0.0
    %2207 = vmatpush1.xpose.msra.mxu0 0.0
    %2208 = vmatprep.subr.mxu0 0.0
    %2209 = vmatpush1.xpose.msra.mxu0 0.0
    %2210 = vmatprep.subr.mxu0 0.0
    %2211 = vmatpush1.xpose.msra.mxu0 0.0
    %2212 = vmatprep.subr.mxu0 0.0
    %2213 = vmatpush1.xpose.msra.mxu0 0.0
    %2214 = vmatprep.subr.mxu0 0.0
    %2215 = vmatpush1.xpose.msra.mxu0 0.0
    %2216 = vmatprep.subr.mxu0 0.0
    %2217 = vmatpush1.xpose.msra.mxu0 0.0
    %2218 = vmatprep.subr.mxu0 0.0
    %2219 = vmatpush1.xpose.msra.mxu0 0.0
    %2220 = vmatprep.subr.mxu0 0.0
    %2221 = vmatpush1.xpose.msra.mxu0 0.0
    %2222 = vmatprep.subr.mxu0 0.0
    %2223 = vmatpush1.xpose.msra.mxu0 0.0
    %2224 = vmatprep.subr.mxu0 0.0
    %2225 = vmatpush1.xpose.msra.mxu0 0.0
    %2226 = vmatprep.subr.mxu0 0.0
    %2227 = vmatpush1.xpose.msra.mxu0 0.0
    %2228 = vmatprep.subr.mxu0 0.0
    %2229 = vmatpush1.xpose.msra.mxu0 0.0
    %2230 = vmatprep.subr.mxu0 0.0
    %2231 = vmatpush1.xpose.msra.mxu0 0.0
    %2232 = vmatprep.subr.mxu0 0.0
    %2233 = vmatpush1.xpose.msra.mxu0 0.0
    %2234 = vmatprep.subr.mxu0 0.0
    %2235 = vmatpush1.xpose.msra.mxu0 0.0
    %2236 = vmatprep.subr.mxu0 0.0
    %2237 = vmatpush1.xpose.msra.mxu0 0.0
    %2238 = vmatprep.subr.mxu0 0.0
    %2239 = vmatpush1.xpose.msra.mxu0 0.0
    %2240 = vmatprep.subr.mxu0 0.0
    %2241 = vmatpush1.xpose.msra.mxu0 0.0
    %2242 = vmatprep.subr.mxu0 0.0
    %2243 = vmatpush1.xpose.msra.mxu0 0.0
    %2244 = vmatprep.subr.mxu0 0.0
    %2245 = vmatpush1.xpose.msra.mxu0 0.0
    %2246 = vmatprep.subr.mxu0 0.0
    %2247 = vmatpush1.xpose.msra.mxu0 0.0
    %2248 = vmatprep.subr.mxu0 0.0
    %2249 = vmatpush1.xpose.msra.mxu0 0.0
    %2250 = vmatprep.subr.mxu0 0.0
    %2251 = vmatpush1.xpose.msra.mxu0 0.0
    %2252 = vmatprep.subr.mxu0 0.0
    %2253 = vmatpush1.xpose.msra.mxu0 0.0
    %2254 = vmatprep.subr.mxu0 0.0
    %2255 = vmatpush1.xpose.msra.mxu0 0.0
    %2256 = vmatprep.subr.mxu0 0.0
    %2257 = vmatpush1.xpose.msra.mxu0 0.0
    %2258 = vmatprep.mubr.f32.mxu0 0.0
    %2259 = vmatmul.mubr.f32.gmra.mrb[0].mxu0 %v2189
    %v2260 = vpop.f32.mrb[0].mxu0
    %v2261 = vadd.f32 0.0, %v2260
    %v2262 = vpop.f32.mrb[0].mxu0
    %2263 = vdwg.mxu0
    %v2266 = vlaneseq
    %v2267 = vshrl.u32 %v2266, 7
    %v2268 = vsub.s32 0, %v2267
    %v2269 = vrot.slane %v2110, %v2268
    %v2270 = vlaneseq
    %v2271 = vshrl.u32 %v2270, 7
    %v2272 = vsub.s32 0, %v2271
    %v2273 = vrot.slane %v2111, %v2272
    %v2276 = vmul.f32 %v2269, %v2185
    %v2277 = vmul.f32 %v2273, %v2261
    %v2278 = vmul.f32 %v2276, 0.17677669
    %v2279 = vmul.f32 %v2277, 0.17677669
    %v2280 = vmul.f32 %v2100, -1000000.0
    %v2281 = vmul.f32 %v2107, -1000000.0
    %v2284 = vlaneseq
    %v2285 = vshrl.u32 %v2284, 7
    %v2286 = vsub.s32 0, %v2285
    %v2287 = vrot.slane %v2280, %v2286
    %v2288 = vlaneseq
    %v2289 = vshrl.u32 %v2288, 7
    %v2290 = vsub.s32 0, %v2289
    %v2291 = vrot.slane %v2281, %v2290
    %v2294 = vadd.f32 %v2278, %v2287
    %v2295 = vadd.f32 %v2279, %v2291
    %v2296 = vsel %vm299, %v2294, -inf
    %2297 = vmax.xlane.f32.xlu0 %v2296
    %v2298 = vpop.xlane.xlu0 %2297
    %v2299 = vsel %vm299, %v2295, -inf
    %2300 = vmax.xlane.f32.xlu0 %v2299
    %v2301 = vpop.xlane.xlu0 %2300
    %v2302 = vsub.f32 %v2294, %v2298
    %v2303 = vsub.f32 %v2295, %v2301
    %v2304 = vmul.f32 %v2302, 1.442695
    %v2305 = vpow.pop %v2304
    %v2306 = vmul.f32 %v2303, 1.442695
    %v2307 = vpow.pop %v2306
    %v2308 = vsel %vm299, %v2305, 0.0
    %2309 = vadd.xlane.f32.xlu0 %v2308
    %v2310 = vpop.xlane.xlu0 %2309
    %v2311 = vsel %vm299, %v2307, 0.0
    %2312 = vadd.xlane.f32.xlu0 %v2311
    %v2313 = vpop.xlane.xlu0 %2312
    %v2314 = vrcp.pop %v2310
    %v2315 = vmul.f32 %v2305, %v2314
    %v2316 = vrcp.pop %v2313
    %v2317 = vmul.f32 %v2307, %v2316
    %v2319 = vsel %vm299, %v2315, 0
    %2321 = vmatprep.subr.mxu0 0.0
    %2322 = vmatpush1.msra.mxu0 %v2077
    %2323 = vmatprep.subr.mxu0 0.0
    %2324 = vmatpush1.msra.mxu0 0.0
    %2325 = vmatprep.subr.mxu0 0.0
    %2326 = vmatpush1.msra.mxu0 0.0
    %2327 = vmatprep.subr.mxu0 0.0
    %2328 = vmatpush1.msra.mxu0 0.0
    %2329 = vmatprep.subr.mxu0 0.0
    %2330 = vmatpush1.msra.mxu0 0.0
    %2331 = vmatprep.subr.mxu0 0.0
    %2332 = vmatpush1.msra.mxu0 0.0
    %2333 = vmatprep.subr.mxu0 0.0
    %2334 = vmatpush1.msra.mxu0 0.0
    %2335 = vmatprep.subr.mxu0 0.0
    %2336 = vmatpush1.msra.mxu0 0.0
    %2337 = vmatprep.subr.mxu0 0.0
    %2338 = vmatpush1.msra.mxu0 0.0
    %2339 = vmatprep.subr.mxu0 0.0
    %2340 = vmatpush1.msra.mxu0 0.0
    %2341 = vmatprep.subr.mxu0 0.0
    %2342 = vmatpush1.msra.mxu0 0.0
    %2343 = vmatprep.subr.mxu0 0.0
    %2344 = vmatpush1.msra.mxu0 0.0
    %2345 = vmatprep.subr.mxu0 0.0
    %2346 = vmatpush1.msra.mxu0 0.0
    %2347 = vmatprep.subr.mxu0 0.0
    %2348 = vmatpush1.msra.mxu0 0.0
    %2349 = vmatprep.subr.mxu0 0.0
    %2350 = vmatpush1.msra.mxu0 0.0
    %2351 = vmatprep.subr.mxu0 0.0
    %2352 = vmatpush1.msra.mxu0 0.0
    %2353 = vmatprep.subr.mxu0 0.0
    %2354 = vmatpush1.msra.mxu0 0.0
    %2355 = vmatprep.subr.mxu0 0.0
    %2356 = vmatpush1.msra.mxu0 0.0
    %2357 = vmatprep.subr.mxu0 0.0
    %2358 = vmatpush1.msra.mxu0 0.0
    %2359 = vmatprep.subr.mxu0 0.0
    %2360 = vmatpush1.msra.mxu0 0.0
    %2361 = vmatprep.subr.mxu0 0.0
    %2362 = vmatpush1.msra.mxu0 0.0
    %2363 = vmatprep.subr.mxu0 0.0
    %2364 = vmatpush1.msra.mxu0 0.0
    %2365 = vmatprep.subr.mxu0 0.0
    %2366 = vmatpush1.msra.mxu0 0.0
    %2367 = vmatprep.subr.mxu0 0.0
    %2368 = vmatpush1.msra.mxu0 0.0
    %2369 = vmatprep.subr.mxu0 0.0
    %2370 = vmatpush1.msra.mxu0 0.0
    %2371 = vmatprep.subr.mxu0 0.0
    %2372 = vmatpush1.msra.mxu0 0.0
    %2373 = vmatprep.subr.mxu0 0.0
    %2374 = vmatpush1.msra.mxu0 0.0
    %2375 = vmatprep.subr.mxu0 0.0
    %2376 = vmatpush1.msra.mxu0 0.0
    %2377 = vmatprep.subr.mxu0 0.0
    %2378 = vmatpush1.msra.mxu0 0.0
    %2379 = vmatprep.subr.mxu0 0.0
    %2380 = vmatpush1.msra.mxu0 0.0
    %2381 = vmatprep.subr.mxu0 0.0
    %2382 = vmatpush1.msra.mxu0 0.0
    %2383 = vmatprep.subr.mxu0 0.0
    %2384 = vmatpush1.msra.mxu0 0.0
    %2385 = vmatprep.mubr.f32.mxu0 0.0
    %2386 = vmatmul.mubr.f32.gmra.mrb[0].mxu0 %v2319
    %v2387 = vpop.f32.mrb[0].mxu0
    %v2388 = vadd.f32 0.0, %v2387
    %v2389 = vpop.f32.mrb[0].mxu0
    %2390 = vdwg.mxu0
    %v2392 = vsel %vm299, %v2317, 0
    %2394 = vmatprep.subr.mxu0 0.0
    %2395 = vmatpush1.msra.mxu0 %v2082
    %2396 = vmatprep.subr.mxu0 0.0
    %2397 = vmatpush1.msra.mxu0 0.0
    %2398 = vmatprep.subr.mxu0 0.0
    %2399 = vmatpush1.msra.mxu0 0.0
    %2400 = vmatprep.subr.mxu0 0.0
    %2401 = vmatpush1.msra.mxu0 0.0
    %2402 = vmatprep.subr.mxu0 0.0
    %2403 = vmatpush1.msra.mxu0 0.0
    %2404 = vmatprep.subr.mxu0 0.0
    %2405 = vmatpush1.msra.mxu0 0.0
    %2406 = vmatprep.subr.mxu0 0.0
    %2407 = vmatpush1.msra.mxu0 0.0
    %2408 = vmatprep.subr.mxu0 0.0
    %2409 = vmatpush1.msra.mxu0 0.0
    %2410 = vmatprep.subr.mxu0 0.0
    %2411 = vmatpush1.msra.mxu0 0.0
    %2412 = vmatprep.subr.mxu0 0.0
    %2413 = vmatpush1.msra.mxu0 0.0
    %2414 = vmatprep.subr.mxu0 0.0
    %2415 = vmatpush1.msra.mxu0 0.0
    %2416 = vmatprep.subr.mxu0 0.0
    %2417 = vmatpush1.msra.mxu0 0.0
    %2418 = vmatprep.subr.mxu0 0.0
    %2419 = vmatpush1.msra.mxu0 0.0
    %2420 = vmatprep.subr.mxu0 0.0
    %2421 = vmatpush1.msra.mxu0 0.0
    %2422 = vmatprep.subr.mxu0 0.0
    %2423 = vmatpush1.msra.mxu0 0.0
    %2424 = vmatprep.subr.mxu0 0.0
    %2425 = vmatpush1.msra.mxu0 0.0
    %2426 = vmatprep.subr.mxu0 0.0
    %2427 = vmatpush1.msra.mxu0 0.0
    %2428 = vmatprep.subr.mxu0 0.0
    %2429 = vmatpush1.msra.mxu0 0.0
    %2430 = vmatprep.subr.mxu0 0.0
    %2431 = vmatpush1.msra.mxu0 0.0
    %2432 = vmatprep.subr.mxu0 0.0
    %2433 = vmatpush1.msra.mxu0 0.0
    %2434 = vmatprep.subr.mxu0 0.0
    %2435 = vmatpush1.msra.mxu0 0.0
    %2436 = vmatprep.subr.mxu0 0.0
    %2437 = vmatpush1.msra.mxu0 0.0
    %2438 = vmatprep.subr.mxu0 0.0
    %2439 = vmatpush1.msra.mxu0 0.0
    %2440 = vmatprep.subr.mxu0 0.0
    %2441 = vmatpush1.msra.mxu0 0.0
    %2442 = vmatprep.subr.mxu0 0.0
    %2443 = vmatpush1.msra.mxu0 0.0
    %2444 = vmatprep.subr.mxu0 0.0
    %2445 = vmatpush1.msra.mxu0 0.0
    %2446 = vmatprep.subr.mxu0 0.0
    %2447 = vmatpush1.msra.mxu0 0.0
    %2448 = vmatprep.subr.mxu0 0.0
    %2449 = vmatpush1.msra.mxu0 0.0
    %2450 = vmatprep.subr.mxu0 0.0
    %2451 = vmatpush1.msra.mxu0 0.0
    %2452 = vmatprep.subr.mxu0 0.0
    %2453 = vmatpush1.msra.mxu0 0.0
    %2454 = vmatprep.subr.mxu0 0.0
    %2455 = vmatpush1.msra.mxu0 0.0
    %2456 = vmatprep.subr.mxu0 0.0
    %2457 = vmatpush1.msra.mxu0 0.0
    %2458 = vmatprep.mubr.f32.mxu0 0.0
    %2459 = vmatmul.mubr.f32.gmra.mrb[0].mxu0 %v2392
    %v2460 = vpop.f32.mrb[0].mxu0
    %v2461 = vadd.f32 0.0, %v2460
    %v2462 = vpop.f32.mrb[0].mxu0
    %2463 = vdwg.mxu0
    %2464 = vrot.lane.b32.xlu0 %v2000, 96
    %v2465 = vpop.permute.xlu0 %2464
    %2466 = vrot.lane.b32.xlu0 %v2002, 96
    %v2467 = vpop.permute.xlu0 %2466
    %v2468 = vsel %vm949, %v2465, 0
    %v2470 = vsel %vm949, %v2467, 0
    %2472 = vmatprep.subr.mxu0 0.0
    %2473 = vmatpush1.xpose.msra.mxu0 %v2470
    %2474 = vmatprep.subr.mxu0 0.0
    %2475 = vmatpush1.xpose.msra.mxu0 0.0
    %2476 = vmatprep.subr.mxu0 0.0
    %2477 = vmatpush1.xpose.msra.mxu0 0.0
    %2478 = vmatprep.subr.mxu0 0.0
    %2479 = vmatpush1.xpose.msra.mxu0 0.0
    %2480 = vmatprep.subr.mxu0 0.0
    %2481 = vmatpush1.xpose.msra.mxu0 0.0
    %2482 = vmatprep.subr.mxu0 0.0
    %2483 = vmatpush1.xpose.msra.mxu0 0.0
    %2484 = vmatprep.subr.mxu0 0.0
    %2485 = vmatpush1.xpose.msra.mxu0 0.0
    %2486 = vmatprep.subr.mxu0 0.0
    %2487 = vmatpush1.xpose.msra.mxu0 0.0
    %2488 = vmatprep.subr.mxu0 0.0
    %2489 = vmatpush1.xpose.msra.mxu0 0.0
    %2490 = vmatprep.subr.mxu0 0.0
    %2491 = vmatpush1.xpose.msra.mxu0 0.0
    %2492 = vmatprep.subr.mxu0 0.0
    %2493 = vmatpush1.xpose.msra.mxu0 0.0
    %2494 = vmatprep.subr.mxu0 0.0
    %2495 = vmatpush1.xpose.msra.mxu0 0.0
    %2496 = vmatprep.subr.mxu0 0.0
    %2497 = vmatpush1.xpose.msra.mxu0 0.0
    %2498 = vmatprep.subr.mxu0 0.0
    %2499 = vmatpush1.xpose.msra.mxu0 0.0
    %2500 = vmatprep.subr.mxu0 0.0
    %2501 = vmatpush1.xpose.msra.mxu0 0.0
    %2502 = vmatprep.subr.mxu0 0.0
    %2503 = vmatpush1.xpose.msra.mxu0 0.0
    %2504 = vmatprep.subr.mxu0 0.0
    %2505 = vmatpush1.xpose.msra.mxu0 0.0
    %2506 = vmatprep.subr.mxu0 0.0
    %2507 = vmatpush1.xpose.msra.mxu0 0.0
    %2508 = vmatprep.subr.mxu0 0.0
    %2509 = vmatpush1.xpose.msra.mxu0 0.0
    %2510 = vmatprep.subr.mxu0 0.0
    %2511 = vmatpush1.xpose.msra.mxu0 0.0
    %2512 = vmatprep.subr.mxu0 0.0
    %2513 = vmatpush1.xpose.msra.mxu0 0.0
    %2514 = vmatprep.subr.mxu0 0.0
    %2515 = vmatpush1.xpose.msra.mxu0 0.0
    %2516 = vmatprep.subr.mxu0 0.0
    %2517 = vmatpush1.xpose.msra.mxu0 0.0
    %2518 = vmatprep.subr.mxu0 0.0
    %2519 = vmatpush1.xpose.msra.mxu0 0.0
    %2520 = vmatprep.subr.mxu0 0.0
    %2521 = vmatpush1.xpose.msra.mxu0 0.0
    %2522 = vmatprep.subr.mxu0 0.0
    %2523 = vmatpush1.xpose.msra.mxu0 0.0
    %2524 = vmatprep.subr.mxu0 0.0
    %2525 = vmatpush1.xpose.msra.mxu0 0.0
    %2526 = vmatprep.subr.mxu0 0.0
    %2527 = vmatpush1.xpose.msra.mxu0 0.0
    %2528 = vmatprep.subr.mxu0 0.0
    %2529 = vmatpush1.xpose.msra.mxu0 0.0
    %2530 = vmatprep.subr.mxu0 0.0
    %2531 = vmatpush1.xpose.msra.mxu0 0.0
    %2532 = vmatprep.subr.mxu0 0.0
    %2533 = vmatpush1.xpose.msra.mxu0 0.0
    %2534 = vmatprep.subr.mxu0 0.0
    %2535 = vmatpush1.xpose.msra.mxu0 0.0
    %2536 = vmatprep.mubr.f32.mxu0 0.0
    %2537 = vmatmul.mubr.f32.gmra.mrb[0].mxu0 %v2468
    %v2538 = vpop.f32.mrb[0].mxu0
    %v2539 = vadd.f32 0.0, %v2538
    %v2540 = vpop.f32.mrb[0].mxu0
    %2541 = vdwg.mxu0
    %2542 = vrot.lane.b32.xlu0 %v2006, 96
    %v2543 = vpop.permute.xlu0 %2542
    %2544 = vrot.lane.b32.xlu0 %v2008, 96
    %v2545 = vpop.permute.xlu0 %2544
    %v2546 = vsel %vm949, %v2543, 0
    %v2548 = vsel %vm949, %v2545, 0
    %2550 = vmatprep.subr.mxu0 0.0
    %2551 = vmatpush1.xpose.msra.mxu0 %v2548
    %2552 = vmatprep.subr.mxu0 0.0
    %2553 = vmatpush1.xpose.msra.mxu0 0.0
    %2554 = vmatprep.subr.mxu0 0.0
    %2555 = vmatpush1.xpose.msra.mxu0 0.0
    %2556 = vmatprep.subr.mxu0 0.0
    %2557 = vmatpush1.xpose.msra.mxu0 0.0
    %2558 = vmatprep.subr.mxu0 0.0
    %2559 = vmatpush1.xpose.msra.mxu0 0.0
    %2560 = vmatprep.subr.mxu0 0.0
    %2561 = vmatpush1.xpose.msra.mxu0 0.0
    %2562 = vmatprep.subr.mxu0 0.0
    %2563 = vmatpush1.xpose.msra.mxu0 0.0
    %2564 = vmatprep.subr.mxu0 0.0
    %2565 = vmatpush1.xpose.msra.mxu0 0.0
    %2566 = vmatprep.subr.mxu0 0.0
    %2567 = vmatpush1.xpose.msra.mxu0 0.0
    %2568 = vmatprep.subr.mxu0 0.0
    %2569 = vmatpush1.xpose.msra.mxu0 0.0
    %2570 = vmatprep.subr.mxu0 0.0
    %2571 = vmatpush1.xpose.msra.mxu0 0.0
    %2572 = vmatprep.subr.mxu0 0.0
    %2573 = vmatpush1.xpose.msra.mxu0 0.0
    %2574 = vmatprep.subr.mxu0 0.0
    %2575 = vmatpush1.xpose.msra.mxu0 0.0
    %2576 = vmatprep.subr.mxu0 0.0
    %2577 = vmatpush1.xpose.msra.mxu0 0.0
    %2578 = vmatprep.subr.mxu0 0.0
    %2579 = vmatpush1.xpose.msra.mxu0 0.0
    %2580 = vmatprep.subr.mxu0 0.0
    %2581 = vmatpush1.xpose.msra.mxu0 0.0
    %2582 = vmatprep.subr.mxu0 0.0
    %2583 = vmatpush1.xpose.msra.mxu0 0.0
    %2584 = vmatprep.subr.mxu0 0.0
    %2585 = vmatpush1.xpose.msra.mxu0 0.0
    %2586 = vmatprep.subr.mxu0 0.0
    %2587 = vmatpush1.xpose.msra.mxu0 0.0
    %2588 = vmatprep.subr.mxu0 0.0
    %2589 = vmatpush1.xpose.msra.mxu0 0.0
    %2590 = vmatprep.subr.mxu0 0.0
    %2591 = vmatpush1.xpose.msra.mxu0 0.0
    %2592 = vmatprep.subr.mxu0 0.0
    %2593 = vmatpush1.xpose.msra.mxu0 0.0
    %2594 = vmatprep.subr.mxu0 0.0
    %2595 = vmatpush1.xpose.msra.mxu0 0.0
    %2596 = vmatprep.subr.mxu0 0.0
    %2597 = vmatpush1.xpose.msra.mxu0 0.0
    %2598 = vmatprep.subr.mxu0 0.0
    %2599 = vmatpush1.xpose.msra.mxu0 0.0
    %2600 = vmatprep.subr.mxu0 0.0
    %2601 = vmatpush1.xpose.msra.mxu0 0.0
    %2602 = vmatprep.subr.mxu0 0.0
    %2603 = vmatpush1.xpose.msra.mxu0 0.0
    %2604 = vmatprep.subr.mxu0 0.0
    %2605 = vmatpush1.xpose.msra.mxu0 0.0
    %2606 = vmatprep.subr.mxu0 0.0
    %2607 = vmatpush1.xpose.msra.mxu0 0.0
    %2608 = vmatprep.subr.mxu0 0.0
    %2609 = vmatpush1.xpose.msra.mxu0 0.0
    %2610 = vmatprep.subr.mxu0 0.0
    %2611 = vmatpush1.xpose.msra.mxu0 0.0
    %2612 = vmatprep.subr.mxu0 0.0
    %2613 = vmatpush1.xpose.msra.mxu0 0.0
    %2614 = vmatprep.mubr.f32.mxu0 0.0
    %2615 = vmatmul.mubr.f32.gmra.mrb[0].mxu0 %v2546
    %v2616 = vpop.f32.mrb[0].mxu0
    %v2617 = vadd.f32 0.0, %v2616
    %v2618 = vpop.f32.mrb[0].mxu0
    %2619 = vdwg.mxu0
    %v2620 = vmul.f32 %v2269, %v2539
    %v2621 = vmul.f32 %v2273, %v2617
    %v2622 = vmul.f32 %v2620, 0.17677669
    %v2623 = vmul.f32 %v2621, 0.17677669
    %v2624 = vadd.f32 %v2622, %v2287
    %v2625 = vadd.f32 %v2623, %v2291
    %v2626 = vsel %vm299, %v2624, -inf
    %2627 = vmax.xlane.f32.xlu0 %v2626
    %v2628 = vpop.xlane.xlu0 %2627
    %v2629 = vsel %vm299, %v2625, -inf
    %2630 = vmax.xlane.f32.xlu0 %v2629
    %v2631 = vpop.xlane.xlu0 %2630
    %v2632 = vsub.f32 %v2624, %v2628
    %v2633 = vsub.f32 %v2625, %v2631
    %v2634 = vmul.f32 %v2632, 1.442695
    %v2635 = vpow.pop %v2634
    %v2636 = vmul.f32 %v2633, 1.442695
    %v2637 = vpow.pop %v2636
    %v2638 = vsel %vm299, %v2635, 0.0
    %2639 = vadd.xlane.f32.xlu0 %v2638
    %v2640 = vpop.xlane.xlu0 %2639
    %v2641 = vsel %vm299, %v2637, 0.0
    %2642 = vadd.xlane.f32.xlu0 %v2641
    %v2643 = vpop.xlane.xlu0 %2642
    %v2644 = vrcp.pop %v2640
    %v2645 = vmul.f32 %v2635, %v2644
    %v2646 = vrcp.pop %v2643
    %v2647 = vmul.f32 %v2637, %v2646
    %2649 = vrot.lane.b32.xlu0 %v2077, 96
    %v2650 = vpop.permute.xlu0 %2649
    %v2653 = vsel %vm299, %v2645, 0
    %2655 = vmatprep.subr.mxu0 0.0
    %2656 = vmatpush1.msra.mxu0 %v2650
    %2657 = vmatprep.subr.mxu0 0.0
    %2658 = vmatpush1.msra.mxu0 0.0
    %2659 = vmatprep.subr.mxu0 0.0
    %2660 = vmatpush1.msra.mxu0 0.0
    %2661 = vmatprep.subr.mxu0 0.0
    %2662 = vmatpush1.msra.mxu0 0.0
    %2663 = vmatprep.subr.mxu0 0.0
    %2664 = vmatpush1.msra.mxu0 0.0
    %2665 = vmatprep.subr.mxu0 0.0
    %2666 = vmatpush1.msra.mxu0 0.0
    %2667 = vmatprep.subr.mxu0 0.0
    %2668 = vmatpush1.msra.mxu0 0.0
    %2669 = vmatprep.subr.mxu0 0.0
    %2670 = vmatpush1.msra.mxu0 0.0
    %2671 = vmatprep.subr.mxu0 0.0
    %2672 = vmatpush1.msra.mxu0 0.0
    %2673 = vmatprep.subr.mxu0 0.0
    %2674 = vmatpush1.msra.mxu0 0.0
    %2675 = vmatprep.subr.mxu0 0.0
    %2676 = vmatpush1.msra.mxu0 0.0
    %2677 = vmatprep.subr.mxu0 0.0
    %2678 = vmatpush1.msra.mxu0 0.0
    %2679 = vmatprep.subr.mxu0 0.0
    %2680 = vmatpush1.msra.mxu0 0.0
    %2681 = vmatprep.subr.mxu0 0.0
    %2682 = vmatpush1.msra.mxu0 0.0
    %2683 = vmatprep.subr.mxu0 0.0
    %2684 = vmatpush1.msra.mxu0 0.0
    %2685 = vmatprep.subr.mxu0 0.0
    %2686 = vmatpush1.msra.mxu0 0.0
    %2687 = vmatprep.subr.mxu0 0.0
    %2688 = vmatpush1.msra.mxu0 0.0
    %2689 = vmatprep.subr.mxu0 0.0
    %2690 = vmatpush1.msra.mxu0 0.0
    %2691 = vmatprep.subr.mxu0 0.0
    %2692 = vmatpush1.msra.mxu0 0.0
    %2693 = vmatprep.subr.mxu0 0.0
    %2694 = vmatpush1.msra.mxu0 0.0
    %2695 = vmatprep.subr.mxu0 0.0
    %2696 = vmatpush1.msra.mxu0 0.0
    %2697 = vmatprep.subr.mxu0 0.0
    %2698 = vmatpush1.msra.mxu0 0.0
    %2699 = vmatprep.subr.mxu0 0.0
    %2700 = vmatpush1.msra.mxu0 0.0
    %2701 = vmatprep.subr.mxu0 0.0
    %2702 = vmatpush1.msra.mxu0 0.0
    %2703 = vmatprep.subr.mxu0 0.0
    %2704 = vmatpush1.msra.mxu0 0.0
    %2705 = vmatprep.subr.mxu0 0.0
    %2706 = vmatpush1.msra.mxu0 0.0
    %2707 = vmatprep.subr.mxu0 0.0
    %2708 = vmatpush1.msra.mxu0 0.0
    %2709 = vmatprep.subr.mxu0 0.0
    %2710 = vmatpush1.msra.mxu0 0.0
    %2711 = vmatprep.subr.mxu0 0.0
    %2712 = vmatpush1.msra.mxu0 0.0
    %2713 = vmatprep.subr.mxu0 0.0
    %2714 = vmatpush1.msra.mxu0 0.0
    %2715 = vmatprep.subr.mxu0 0.0
    %2716 = vmatpush1.msra.mxu0 0.0
    %2717 = vmatprep.subr.mxu0 0.0
    %2718 = vmatpush1.msra.mxu0 0.0
    %2719 = vmatprep.mubr.f32.mxu0 0.0
    %2720 = vmatmul.mubr.f32.gmra.mrb[0].mxu0 %v2653
    %v2721 = vpop.f32.mrb[0].mxu0
    %v2722 = vadd.f32 0.0, %v2721
    %v2723 = vpop.f32.mrb[0].mxu0
    %2724 = vdwg.mxu0
    %2726 = vrot.lane.b32.xlu0 %v2082, 96
    %v2727 = vpop.permute.xlu0 %2726
    %v2730 = vsel %vm299, %v2647, 0
    %2732 = vmatprep.subr.mxu0 0.0
    %2733 = vmatpush1.msra.mxu0 %v2727
    %2734 = vmatprep.subr.mxu0 0.0
    %2735 = vmatpush1.msra.mxu0 0.0
    %2736 = vmatprep.subr.mxu0 0.0
    %2737 = vmatpush1.msra.mxu0 0.0
    %2738 = vmatprep.subr.mxu0 0.0
    %2739 = vmatpush1.msra.mxu0 0.0
    %2740 = vmatprep.subr.mxu0 0.0
    %2741 = vmatpush1.msra.mxu0 0.0
    %2742 = vmatprep.subr.mxu0 0.0
    %2743 = vmatpush1.msra.mxu0 0.0
    %2744 = vmatprep.subr.mxu0 0.0
    %2745 = vmatpush1.msra.mxu0 0.0
    %2746 = vmatprep.subr.mxu0 0.0
    %2747 = vmatpush1.msra.mxu0 0.0
    %2748 = vmatprep.subr.mxu0 0.0
    %2749 = vmatpush1.msra.mxu0 0.0
    %2750 = vmatprep.subr.mxu0 0.0
    %2751 = vmatpush1.msra.mxu0 0.0
    %2752 = vmatprep.subr.mxu0 0.0
    %2753 = vmatpush1.msra.mxu0 0.0
    %2754 = vmatprep.subr.mxu0 0.0
    %2755 = vmatpush1.msra.mxu0 0.0
    %2756 = vmatprep.subr.mxu0 0.0
    %2757 = vmatpush1.msra.mxu0 0.0
    %2758 = vmatprep.subr.mxu0 0.0
    %2759 = vmatpush1.msra.mxu0 0.0
    %2760 = vmatprep.subr.mxu0 0.0
    %2761 = vmatpush1.msra.mxu0 0.0
    %2762 = vmatprep.subr.mxu0 0.0
    %2763 = vmatpush1.msra.mxu0 0.0
    %2764 = vmatprep.subr.mxu0 0.0
    %2765 = vmatpush1.msra.mxu0 0.0
    %2766 = vmatprep.subr.mxu0 0.0
    %2767 = vmatpush1.msra.mxu0 0.0
    %2768 = vmatprep.subr.mxu0 0.0
    %2769 = vmatpush1.msra.mxu0 0.0
    %2770 = vmatprep.subr.mxu0 0.0
    %2771 = vmatpush1.msra.mxu0 0.0
    %2772 = vmatprep.subr.mxu0 0.0
    %2773 = vmatpush1.msra.mxu0 0.0
    %2774 = vmatprep.subr.mxu0 0.0
    %2775 = vmatpush1.msra.mxu0 0.0
    %2776 = vmatprep.subr.mxu0 0.0
    %2777 = vmatpush1.msra.mxu0 0.0
    %2778 = vmatprep.subr.mxu0 0.0
    %2779 = vmatpush1.msra.mxu0 0.0
    %2780 = vmatprep.subr.mxu0 0.0
    %2781 = vmatpush1.msra.mxu0 0.0
    %2782 = vmatprep.subr.mxu0 0.0
    %2783 = vmatpush1.msra.mxu0 0.0
    %2784 = vmatprep.subr.mxu0 0.0
    %2785 = vmatpush1.msra.mxu0 0.0
    %2786 = vmatprep.subr.mxu0 0.0
    %2787 = vmatpush1.msra.mxu0 0.0
    %2788 = vmatprep.subr.mxu0 0.0
    %2789 = vmatpush1.msra.mxu0 0.0
    %2790 = vmatprep.subr.mxu0 0.0
    %2791 = vmatpush1.msra.mxu0 0.0
    %2792 = vmatprep.subr.mxu0 0.0
    %2793 = vmatpush1.msra.mxu0 0.0
    %2794 = vmatprep.subr.mxu0 0.0
    %2795 = vmatpush1.msra.mxu0 0.0
    %2796 = vmatprep.mubr.f32.mxu0 0.0
    %2797 = vmatmul.mubr.f32.gmra.mrb[0].mxu0 %v2730
    %v2798 = vpop.f32.mrb[0].mxu0
    %v2799 = vadd.f32 0.0, %v2798
    %v2800 = vpop.f32.mrb[0].mxu0
    %2801 = vdwg.mxu0
    %2802 = vrot.lane.b32.xlu0 %v2000, 64
    %v2803 = vpop.permute.xlu0 %2802
    %2804 = vrot.lane.b32.xlu0 %v2002, 64
    %v2805 = vpop.permute.xlu0 %2804
    %v2806 = vsel %vm949, %v2803, 0
    %v2808 = vsel %vm949, %v2805, 0
    %2810 = vmatprep.subr.mxu0 0.0
    %2811 = vmatpush1.xpose.msra.mxu0 %v2808
    %2812 = vmatprep.subr.mxu0 0.0
    %2813 = vmatpush1.xpose.msra.mxu0 0.0
    %2814 = vmatprep.subr.mxu0 0.0
    %2815 = vmatpush1.xpose.msra.mxu0 0.0
    %2816 = vmatprep.subr.mxu0 0.0
    %2817 = vmatpush1.xpose.msra.mxu0 0.0
    %2818 = vmatprep.subr.mxu0 0.0
    %2819 = vmatpush1.xpose.msra.mxu0 0.0
    %2820 = vmatprep.subr.mxu0 0.0
    %2821 = vmatpush1.xpose.msra.mxu0 0.0
    %2822 = vmatprep.subr.mxu0 0.0
    %2823 = vmatpush1.xpose.msra.mxu0 0.0
    %2824 = vmatprep.subr.mxu0 0.0
    %2825 = vmatpush1.xpose.msra.mxu0 0.0
    %2826 = vmatprep.subr.mxu0 0.0
    %2827 = vmatpush1.xpose.msra.mxu0 0.0
    %2828 = vmatprep.subr.mxu0 0.0
    %2829 = vmatpush1.xpose.msra.mxu0 0.0
    %2830 = vmatprep.subr.mxu0 0.0
    %2831 = vmatpush1.xpose.msra.mxu0 0.0
    %2832 = vmatprep.subr.mxu0 0.0
    %2833 = vmatpush1.xpose.msra.mxu0 0.0
    %2834 = vmatprep.subr.mxu0 0.0
    %2835 = vmatpush1.xpose.msra.mxu0 0.0
    %2836 = vmatprep.subr.mxu0 0.0
    %2837 = vmatpush1.xpose.msra.mxu0 0.0
    %2838 = vmatprep.subr.mxu0 0.0
    %2839 = vmatpush1.xpose.msra.mxu0 0.0
    %2840 = vmatprep.subr.mxu0 0.0
    %2841 = vmatpush1.xpose.msra.mxu0 0.0
    %2842 = vmatprep.subr.mxu0 0.0
    %2843 = vmatpush1.xpose.msra.mxu0 0.0
    %2844 = vmatprep.subr.mxu0 0.0
    %2845 = vmatpush1.xpose.msra.mxu0 0.0
    %2846 = vmatprep.subr.mxu0 0.0
    %2847 = vmatpush1.xpose.msra.mxu0 0.0
    %2848 = vmatprep.subr.mxu0 0.0
    %2849 = vmatpush1.xpose.msra.mxu0 0.0
    %2850 = vmatprep.subr.mxu0 0.0
    %2851 = vmatpush1.xpose.msra.mxu0 0.0
    %2852 = vmatprep.subr.mxu0 0.0
    %2853 = vmatpush1.xpose.msra.mxu0 0.0
    %2854 = vmatprep.subr.mxu0 0.0
    %2855 = vmatpush1.xpose.msra.mxu0 0.0
    %2856 = vmatprep.subr.mxu0 0.0
    %2857 = vmatpush1.xpose.msra.mxu0 0.0
    %2858 = vmatprep.subr.mxu0 0.0
    %2859 = vmatpush1.xpose.msra.mxu0 0.0
    %2860 = vmatprep.subr.mxu0 0.0
    %2861 = vmatpush1.xpose.msra.mxu0 0.0
    %2862 = vmatprep.subr.mxu0 0.0
    %2863 = vmatpush1.xpose.msra.mxu0 0.0
    %2864 = vmatprep.subr.mxu0 0.0
    %2865 = vmatpush1.xpose.msra.mxu0 0.0
    %2866 = vmatprep.subr.mxu0 0.0
    %2867 = vmatpush1.xpose.msra.mxu0 0.0
    %2868 = vmatprep.subr.mxu0 0.0
    %2869 = vmatpush1.xpose.msra.mxu0 0.0
    %2870 = vmatprep.subr.mxu0 0.0
    %2871 = vmatpush1.xpose.msra.mxu0 0.0
    %2872 = vmatprep.subr.mxu0 0.0
    %2873 = vmatpush1.xpose.msra.mxu0 0.0
    %2874 = vmatprep.mubr.f32.mxu0 0.0
    %2875 = vmatmul.mubr.f32.gmra.mrb[0].mxu0 %v2806
    %v2876 = vpop.f32.mrb[0].mxu0
    %v2877 = vadd.f32 0.0, %v2876
    %v2878 = vpop.f32.mrb[0].mxu0
    %2879 = vdwg.mxu0
    %2880 = vrot.lane.b32.xlu0 %v2006, 64
    %v2881 = vpop.permute.xlu0 %2880
    %2882 = vrot.lane.b32.xlu0 %v2008, 64
    %v2883 = vpop.permute.xlu0 %2882
    %v2884 = vsel %vm949, %v2881, 0
    %v2886 = vsel %vm949, %v2883, 0
    %2888 = vmatprep.subr.mxu0 0.0
    %2889 = vmatpush1.xpose.msra.mxu0 %v2886
    %2890 = vmatprep.subr.mxu0 0.0
    %2891 = vmatpush1.xpose.msra.mxu0 0.0
    %2892 = vmatprep.subr.mxu0 0.0
    %2893 = vmatpush1.xpose.msra.mxu0 0.0
    %2894 = vmatprep.subr.mxu0 0.0
    %2895 = vmatpush1.xpose.msra.mxu0 0.0
    %2896 = vmatprep.subr.mxu0 0.0
    %2897 = vmatpush1.xpose.msra.mxu0 0.0
    %2898 = vmatprep.subr.mxu0 0.0
    %2899 = vmatpush1.xpose.msra.mxu0 0.0
    %2900 = vmatprep.subr.mxu0 0.0
    %2901 = vmatpush1.xpose.msra.mxu0 0.0
    %2902 = vmatprep.subr.mxu0 0.0
    %2903 = vmatpush1.xpose.msra.mxu0 0.0
    %2904 = vmatprep.subr.mxu0 0.0
    %2905 = vmatpush1.xpose.msra.mxu0 0.0
    %2906 = vmatprep.subr.mxu0 0.0
    %2907 = vmatpush1.xpose.msra.mxu0 0.0
    %2908 = vmatprep.subr.mxu0 0.0
    %2909 = vmatpush1.xpose.msra.mxu0 0.0
    %2910 = vmatprep.subr.mxu0 0.0
    %2911 = vmatpush1.xpose.msra.mxu0 0.0
    %2912 = vmatprep.subr.mxu0 0.0
    %2913 = vmatpush1.xpose.msra.mxu0 0.0
    %2914 = vmatprep.subr.mxu0 0.0
    %2915 = vmatpush1.xpose.msra.mxu0 0.0
    %2916 = vmatprep.subr.mxu0 0.0
    %2917 = vmatpush1.xpose.msra.mxu0 0.0
    %2918 = vmatprep.subr.mxu0 0.0
    %2919 = vmatpush1.xpose.msra.mxu0 0.0
    %2920 = vmatprep.subr.mxu0 0.0
    %2921 = vmatpush1.xpose.msra.mxu0 0.0
    %2922 = vmatprep.subr.mxu0 0.0
    %2923 = vmatpush1.xpose.msra.mxu0 0.0
    %2924 = vmatprep.subr.mxu0 0.0
    %2925 = vmatpush1.xpose.msra.mxu0 0.0
    %2926 = vmatprep.subr.mxu0 0.0
    %2927 = vmatpush1.xpose.msra.mxu0 0.0
    %2928 = vmatprep.subr.mxu0 0.0
    %2929 = vmatpush1.xpose.msra.mxu0 0.0
    %2930 = vmatprep.subr.mxu0 0.0
    %2931 = vmatpush1.xpose.msra.mxu0 0.0
    %2932 = vmatprep.subr.mxu0 0.0
    %2933 = vmatpush1.xpose.msra.mxu0 0.0
    %2934 = vmatprep.subr.mxu0 0.0
    %2935 = vmatpush1.xpose.msra.mxu0 0.0
    %2936 = vmatprep.subr.mxu0 0.0
    %2937 = vmatpush1.xpose.msra.mxu0 0.0
    %2938 = vmatprep.subr.mxu0 0.0
    %2939 = vmatpush1.xpose.msra.mxu0 0.0
    %2940 = vmatprep.subr.mxu0 0.0
    %2941 = vmatpush1.xpose.msra.mxu0 0.0
    %2942 = vmatprep.subr.mxu0 0.0
    %2943 = vmatpush1.xpose.msra.mxu0 0.0
    %2944 = vmatprep.subr.mxu0 0.0
    %2945 = vmatpush1.xpose.msra.mxu0 0.0
    %2946 = vmatprep.subr.mxu0 0.0
    %2947 = vmatpush1.xpose.msra.mxu0 0.0
    %2948 = vmatprep.subr.mxu0 0.0
    %2949 = vmatpush1.xpose.msra.mxu0 0.0
    %2950 = vmatprep.subr.mxu0 0.0
    %2951 = vmatpush1.xpose.msra.mxu0 0.0
    %2952 = vmatprep.mubr.f32.mxu0 0.0
    %2953 = vmatmul.mubr.f32.gmra.mrb[0].mxu0 %v2884
    %v2954 = vpop.f32.mrb[0].mxu0
    %v2955 = vadd.f32 0.0, %v2954
    %v2956 = vpop.f32.mrb[0].mxu0
    %2957 = vdwg.mxu0
    %v2958 = vmul.f32 %v2269, %v2877
    %v2959 = vmul.f32 %v2273, %v2955
    %v2960 = vmul.f32 %v2958, 0.17677669
    %v2961 = vmul.f32 %v2959, 0.17677669
    %v2962 = vadd.f32 %v2960, %v2287
    %v2963 = vadd.f32 %v2961, %v2291
    %v2964 = vsel %vm299, %v2962, -inf
    %2965 = vmax.xlane.f32.xlu0 %v2964
    %v2966 = vpop.xlane.xlu0 %2965
    %v2967 = vsel %vm299, %v2963, -inf
    %2968 = vmax.xlane.f32.xlu0 %v2967
    %v2969 = vpop.xlane.xlu0 %2968
    %v2970 = vsub.f32 %v2962, %v2966
    %v2971 = vsub.f32 %v2963, %v2969
    %v2972 = vmul.f32 %v2970, 1.442695
    %v2973 = vpow.pop %v2972
    %v2974 = vmul.f32 %v2971, 1.442695
    %v2975 = vpow.pop %v2974
    %v2976 = vsel %vm299, %v2973, 0.0
    %2977 = vadd.xlane.f32.xlu0 %v2976
    %v2978 = vpop.xlane.xlu0 %2977
    %v2979 = vsel %vm299, %v2975, 0.0
    %2980 = vadd.xlane.f32.xlu0 %v2979
    %v2981 = vpop.xlane.xlu0 %2980
    %v2982 = vrcp.pop %v2978
    %v2983 = vmul.f32 %v2973, %v2982
    %v2984 = vrcp.pop %v2981
    %v2985 = vmul.f32 %v2975, %v2984
    %2986 = vrot.lane.b32.xlu0 %v2077, 64
    %v2987 = vpop.permute.xlu0 %2986
    %v2990 = vsel %vm299, %v2983, 0
    %2992 = vmatprep.subr.mxu0 0.0
    %2993 = vmatpush1.msra.mxu0 %v2987
    %2994 = vmatprep.subr.mxu0 0.0
    %2995 = vmatpush1.msra.mxu0 0.0
    %2996 = vmatprep.subr.mxu0 0.0
    %2997 = vmatpush1.msra.mxu0 0.0
    %2998 = vmatprep.subr.mxu0 0.0
    %2999 = vmatpush1.msra.mxu0 0.0
    %3000 = vmatprep.subr.mxu0 0.0
    %3001 = vmatpush1.msra.mxu0 0.0
    %3002 = vmatprep.subr.mxu0 0.0
    %3003 = vmatpush1.msra.mxu0 0.0
    %3004 = vmatprep.subr.mxu0 0.0
    %3005 = vmatpush1.msra.mxu0 0.0
    %3006 = vmatprep.subr.mxu0 0.0
    %3007 = vmatpush1.msra.mxu0 0.0
    %3008 = vmatprep.subr.mxu0 0.0
    %3009 = vmatpush1.msra.mxu0 0.0
    %3010 = vmatprep.subr.mxu0 0.0
    %3011 = vmatpush1.msra.mxu0 0.0
    %3012 = vmatprep.subr.mxu0 0.0
    %3013 = vmatpush1.msra.mxu0 0.0
    %3014 = vmatprep.subr.mxu0 0.0
    %3015 = vmatpush1.msra.mxu0 0.0
    %3016 = vmatprep.subr.mxu0 0.0
    %3017 = vmatpush1.msra.mxu0 0.0
    %3018 = vmatprep.subr.mxu0 0.0
    %3019 = vmatpush1.msra.mxu0 0.0
    %3020 = vmatprep.subr.mxu0 0.0
    %3021 = vmatpush1.msra.mxu0 0.0
    %3022 = vmatprep.subr.mxu0 0.0
    %3023 = vmatpush1.msra.mxu0 0.0
    %3024 = vmatprep.subr.mxu0 0.0
    %3025 = vmatpush1.msra.mxu0 0.0
    %3026 = vmatprep.subr.mxu0 0.0
    %3027 = vmatpush1.msra.mxu0 0.0
    %3028 = vmatprep.subr.mxu0 0.0
    %3029 = vmatpush1.msra.mxu0 0.0
    %3030 = vmatprep.subr.mxu0 0.0
    %3031 = vmatpush1.msra.mxu0 0.0
    %3032 = vmatprep.subr.mxu0 0.0
    %3033 = vmatpush1.msra.mxu0 0.0
    %3034 = vmatprep.subr.mxu0 0.0
    %3035 = vmatpush1.msra.mxu0 0.0
    %3036 = vmatprep.subr.mxu0 0.0
    %3037 = vmatpush1.msra.mxu0 0.0
    %3038 = vmatprep.subr.mxu0 0.0
    %3039 = vmatpush1.msra.mxu0 0.0
    %3040 = vmatprep.subr.mxu0 0.0
    %3041 = vmatpush1.msra.mxu0 0.0
    %3042 = vmatprep.subr.mxu0 0.0
    %3043 = vmatpush1.msra.mxu0 0.0
    %3044 = vmatprep.subr.mxu0 0.0
    %3045 = vmatpush1.msra.mxu0 0.0
    %3046 = vmatprep.subr.mxu0 0.0
    %3047 = vmatpush1.msra.mxu0 0.0
    %3048 = vmatprep.subr.mxu0 0.0
    %3049 = vmatpush1.msra.mxu0 0.0
    %3050 = vmatprep.subr.mxu0 0.0
    %3051 = vmatpush1.msra.mxu0 0.0
    %3052 = vmatprep.subr.mxu0 0.0
    %3053 = vmatpush1.msra.mxu0 0.0
    %3054 = vmatprep.subr.mxu0 0.0
    %3055 = vmatpush1.msra.mxu0 0.0
    %3056 = vmatprep.mubr.f32.mxu0 0.0
    %3057 = vmatmul.mubr.f32.gmra.mrb[0].mxu0 %v2990
    %v3058 = vpop.f32.mrb[0].mxu0
    %v3059 = vadd.f32 0.0, %v3058
    %v3060 = vpop.f32.mrb[0].mxu0
    %3061 = vdwg.mxu0
    %3062 = vrot.lane.b32.xlu0 %v2082, 64
    %v3063 = vpop.permute.xlu0 %3062
    %v3066 = vsel %vm299, %v2985, 0
    %3068 = vmatprep.subr.mxu0 0.0
    %3069 = vmatpush1.msra.mxu0 %v3063
    %3070 = vmatprep.subr.mxu0 0.0
    %3071 = vmatpush1.msra.mxu0 0.0
    %3072 = vmatprep.subr.mxu0 0.0
    %3073 = vmatpush1.msra.mxu0 0.0
    %3074 = vmatprep.subr.mxu0 0.0
    %3075 = vmatpush1.msra.mxu0 0.0
    %3076 = vmatprep.subr.mxu0 0.0
    %3077 = vmatpush1.msra.mxu0 0.0
    %3078 = vmatprep.subr.mxu0 0.0
    %3079 = vmatpush1.msra.mxu0 0.0
    %3080 = vmatprep.subr.mxu0 0.0
    %3081 = vmatpush1.msra.mxu0 0.0
    %3082 = vmatprep.subr.mxu0 0.0
    %3083 = vmatpush1.msra.mxu0 0.0
    %3084 = vmatprep.subr.mxu0 0.0
    %3085 = vmatpush1.msra.mxu0 0.0
    %3086 = vmatprep.subr.mxu0 0.0
    %3087 = vmatpush1.msra.mxu0 0.0
    %3088 = vmatprep.subr.mxu0 0.0
    %3089 = vmatpush1.msra.mxu0 0.0
    %3090 = vmatprep.subr.mxu0 0.0
    %3091 = vmatpush1.msra.mxu0 0.0
    %3092 = vmatprep.subr.mxu0 0.0
    %3093 = vmatpush1.msra.mxu0 0.0
    %3094 = vmatprep.subr.mxu0 0.0
    %3095 = vmatpush1.msra.mxu0 0.0
    %3096 = vmatprep.subr.mxu0 0.0
    %3097 = vmatpush1.msra.mxu0 0.0
    %3098 = vmatprep.subr.mxu0 0.0
    %3099 = vmatpush1.msra.mxu0 0.0
    %3100 = vmatprep.subr.mxu0 0.0
    %3101 = vmatpush1.msra.mxu0 0.0
    %3102 = vmatprep.subr.mxu0 0.0
    %3103 = vmatpush1.msra.mxu0 0.0
    %3104 = vmatprep.subr.mxu0 0.0
    %3105 = vmatpush1.msra.mxu0 0.0
    %3106 = vmatprep.subr.mxu0 0.0
    %3107 = vmatpush1.msra.mxu0 0.0
    %3108 = vmatprep.subr.mxu0 0.0
    %3109 = vmatpush1.msra.mxu0 0.0
    %3110 = vmatprep.subr.mxu0 0.0
    %3111 = vmatpush1.msra.mxu0 0.0
    %3112 = vmatprep.subr.mxu0 0.0
    %3113 = vmatpush1.msra.mxu0 0.0
    %3114 = vmatprep.subr.mxu0 0.0
    %3115 = vmatpush1.msra.mxu0 0.0
    %3116 = vmatprep.subr.mxu0 0.0
    %3117 = vmatpush1.msra.mxu0 0.0
    %3118 = vmatprep.subr.mxu0 0.0
    %3119 = vmatpush1.msra.mxu0 0.0
    %3120 = vmatprep.subr.mxu0 0.0
    %3121 = vmatpush1.msra.mxu0 0.0
    %3122 = vmatprep.subr.mxu0 0.0
    %3123 = vmatpush1.msra.mxu0 0.0
    %3124 = vmatprep.subr.mxu0 0.0
    %3125 = vmatpush1.msra.mxu0 0.0
    %3126 = vmatprep.subr.mxu0 0.0
    %3127 = vmatpush1.msra.mxu0 0.0
    %3128 = vmatprep.subr.mxu0 0.0
    %3129 = vmatpush1.msra.mxu0 0.0
    %3130 = vmatprep.subr.mxu0 0.0
    %3131 = vmatpush1.msra.mxu0 0.0
    %3132 = vmatprep.mubr.f32.mxu0 0.0
    %3133 = vmatmul.mubr.f32.gmra.mrb[0].mxu0 %v3066
    %v3134 = vpop.f32.mrb[0].mxu0
    %v3135 = vadd.f32 0.0, %v3134
    %v3136 = vpop.f32.mrb[0].mxu0
    %3137 = vdwg.mxu0
    %3138 = vrot.lane.b32.xlu0 %v2000, 32
    %v3139 = vpop.permute.xlu0 %3138
    %3140 = vrot.lane.b32.xlu0 %v2002, 32
    %v3141 = vpop.permute.xlu0 %3140
    %v3142 = vsel %vm949, %v3139, 0
    %v3144 = vsel %vm949, %v3141, 0
    %3146 = vmatprep.subr.mxu0 0.0
    %3147 = vmatpush1.xpose.msra.mxu0 %v3144
    %3148 = vmatprep.subr.mxu0 0.0
    %3149 = vmatpush1.xpose.msra.mxu0 0.0
    %3150 = vmatprep.subr.mxu0 0.0
    %3151 = vmatpush1.xpose.msra.mxu0 0.0
    %3152 = vmatprep.subr.mxu0 0.0
    %3153 = vmatpush1.xpose.msra.mxu0 0.0
    %3154 = vmatprep.subr.mxu0 0.0
    %3155 = vmatpush1.xpose.msra.mxu0 0.0
    %3156 = vmatprep.subr.mxu0 0.0
    %3157 = vmatpush1.xpose.msra.mxu0 0.0
    %3158 = vmatprep.subr.mxu0 0.0
    %3159 = vmatpush1.xpose.msra.mxu0 0.0
    %3160 = vmatprep.subr.mxu0 0.0
    %3161 = vmatpush1.xpose.msra.mxu0 0.0
    %3162 = vmatprep.subr.mxu0 0.0
    %3163 = vmatpush1.xpose.msra.mxu0 0.0
    %3164 = vmatprep.subr.mxu0 0.0
    %3165 = vmatpush1.xpose.msra.mxu0 0.0
    %3166 = vmatprep.subr.mxu0 0.0
    %3167 = vmatpush1.xpose.msra.mxu0 0.0
    %3168 = vmatprep.subr.mxu0 0.0
    %3169 = vmatpush1.xpose.msra.mxu0 0.0
    %3170 = vmatprep.subr.mxu0 0.0
    %3171 = vmatpush1.xpose.msra.mxu0 0.0
    %3172 = vmatprep.subr.mxu0 0.0
    %3173 = vmatpush1.xpose.msra.mxu0 0.0
    %3174 = vmatprep.subr.mxu0 0.0
    %3175 = vmatpush1.xpose.msra.mxu0 0.0
    %3176 = vmatprep.subr.mxu0 0.0
    %3177 = vmatpush1.xpose.msra.mxu0 0.0
    %3178 = vmatprep.subr.mxu0 0.0
    %3179 = vmatpush1.xpose.msra.mxu0 0.0
    %3180 = vmatprep.subr.mxu0 0.0
    %3181 = vmatpush1.xpose.msra.mxu0 0.0
    %3182 = vmatprep.subr.mxu0 0.0
    %3183 = vmatpush1.xpose.msra.mxu0 0.0
    %3184 = vmatprep.subr.mxu0 0.0
    %3185 = vmatpush1.xpose.msra.mxu0 0.0
    %3186 = vmatprep.subr.mxu0 0.0
    %3187 = vmatpush1.xpose.msra.mxu0 0.0
    %3188 = vmatprep.subr.mxu0 0.0
    %3189 = vmatpush1.xpose.msra.mxu0 0.0
    %3190 = vmatprep.subr.mxu0 0.0
    %3191 = vmatpush1.xpose.msra.mxu0 0.0
    %3192 = vmatprep.subr.mxu0 0.0
    %3193 = vmatpush1.xpose.msra.mxu0 0.0
    %3194 = vmatprep.subr.mxu0 0.0
    %3195 = vmatpush1.xpose.msra.mxu0 0.0
    %3196 = vmatprep.subr.mxu0 0.0
    %3197 = vmatpush1.xpose.msra.mxu0 0.0
    %3198 = vmatprep.subr.mxu0 0.0
    %3199 = vmatpush1.xpose.msra.mxu0 0.0
    %3200 = vmatprep.subr.mxu0 0.0
    %3201 = vmatpush1.xpose.msra.mxu0 0.0
    %3202 = vmatprep.subr.mxu0 0.0
    %3203 = vmatpush1.xpose.msra.mxu0 0.0
    %3204 = vmatprep.subr.mxu0 0.0
    %3205 = vmatpush1.xpose.msra.mxu0 0.0
    %3206 = vmatprep.subr.mxu0 0.0
    %3207 = vmatpush1.xpose.msra.mxu0 0.0
    %3208 = vmatprep.subr.mxu0 0.0
    %3209 = vmatpush1.xpose.msra.mxu0 0.0
    %3210 = vmatprep.mubr.f32.mxu0 0.0
    %3211 = vmatmul.mubr.f32.gmra.mrb[0].mxu0 %v3142
    %v3212 = vpop.f32.mrb[0].mxu0
    %v3213 = vadd.f32 0.0, %v3212
    %v3214 = vpop.f32.mrb[0].mxu0
    %3215 = vdwg.mxu0
    %3216 = vrot.lane.b32.xlu0 %v2006, 32
    %v3217 = vpop.permute.xlu0 %3216
    %3218 = vrot.lane.b32.xlu0 %v2008, 32
    %v3219 = vpop.permute.xlu0 %3218
    %v3220 = vsel %vm949, %v3217, 0
    %v3222 = vsel %vm949, %v3219, 0
    %3224 = vmatprep.subr.mxu0 0.0
    %3225 = vmatpush1.xpose.msra.mxu0 %v3222
    %3226 = vmatprep.subr.mxu0 0.0
    %3227 = vmatpush1.xpose.msra.mxu0 0.0
    %3228 = vmatprep.subr.mxu0 0.0
    %3229 = vmatpush1.xpose.msra.mxu0 0.0
    %3230 = vmatprep.subr.mxu0 0.0
    %3231 = vmatpush1.xpose.msra.mxu0 0.0
    %3232 = vmatprep.subr.mxu0 0.0
    %3233 = vmatpush1.xpose.msra.mxu0 0.0
    %3234 = vmatprep.subr.mxu0 0.0
    %3235 = vmatpush1.xpose.msra.mxu0 0.0
    %3236 = vmatprep.subr.mxu0 0.0
    %3237 = vmatpush1.xpose.msra.mxu0 0.0
    %3238 = vmatprep.subr.mxu0 0.0
    %3239 = vmatpush1.xpose.msra.mxu0 0.0
    %3240 = vmatprep.subr.mxu0 0.0
    %3241 = vmatpush1.xpose.msra.mxu0 0.0
    %3242 = vmatprep.subr.mxu0 0.0
    %3243 = vmatpush1.xpose.msra.mxu0 0.0
    %3244 = vmatprep.subr.mxu0 0.0
    %3245 = vmatpush1.xpose.msra.mxu0 0.0
    %3246 = vmatprep.subr.mxu0 0.0
    %3247 = vmatpush1.xpose.msra.mxu0 0.0
    %3248 = vmatprep.subr.mxu0 0.0
    %3249 = vmatpush1.xpose.msra.mxu0 0.0
    %3250 = vmatprep.subr.mxu0 0.0
    %3251 = vmatpush1.xpose.msra.mxu0 0.0
    %3252 = vmatprep.subr.mxu0 0.0
    %3253 = vmatpush1.xpose.msra.mxu0 0.0
    %3254 = vmatprep.subr.mxu0 0.0
    %3255 = vmatpush1.xpose.msra.mxu0 0.0
    %3256 = vmatprep.subr.mxu0 0.0
    %3257 = vmatpush1.xpose.msra.mxu0 0.0
    %3258 = vmatprep.subr.mxu0 0.0
    %3259 = vmatpush1.xpose.msra.mxu0 0.0
    %3260 = vmatprep.subr.mxu0 0.0
    %3261 = vmatpush1.xpose.msra.mxu0 0.0
    %3262 = vmatprep.subr.mxu0 0.0
    %3263 = vmatpush1.xpose.msra.mxu0 0.0
    %3264 = vmatprep.subr.mxu0 0.0
    %3265 = vmatpush1.xpose.msra.mxu0 0.0
    %3266 = vmatprep.subr.mxu0 0.0
    %3267 = vmatpush1.xpose.msra.mxu0 0.0
    %3268 = vmatprep.subr.mxu0 0.0
    %3269 = vmatpush1.xpose.msra.mxu0 0.0
    %3270 = vmatprep.subr.mxu0 0.0
    %3271 = vmatpush1.xpose.msra.mxu0 0.0
    %3272 = vmatprep.subr.mxu0 0.0
    %3273 = vmatpush1.xpose.msra.mxu0 0.0
    %3274 = vmatprep.subr.mxu0 0.0
    %3275 = vmatpush1.xpose.msra.mxu0 0.0
    %3276 = vmatprep.subr.mxu0 0.0
    %3277 = vmatpush1.xpose.msra.mxu0 0.0
    %3278 = vmatprep.subr.mxu0 0.0
    %3279 = vmatpush1.xpose.msra.mxu0 0.0
    %3280 = vmatprep.subr.mxu0 0.0
    %3281 = vmatpush1.xpose.msra.mxu0 0.0
    %3282 = vmatprep.subr.mxu0 0.0
    %3283 = vmatpush1.xpose.msra.mxu0 0.0
    %3284 = vmatprep.subr.mxu0 0.0
    %3285 = vmatpush1.xpose.msra.mxu0 0.0
    %3286 = vmatprep.subr.mxu0 0.0
    %3287 = vmatpush1.xpose.msra.mxu0 0.0
    %3288 = vmatprep.mubr.f32.mxu0 0.0
    %3289 = vmatmul.mubr.f32.gmra.mrb[0].mxu0 %v3220
    %v3290 = vpop.f32.mrb[0].mxu0
    %v3291 = vadd.f32 0.0, %v3290
    %v3292 = vpop.f32.mrb[0].mxu0
    %3293 = vdwg.mxu0
    %v3294 = vmul.f32 %v2269, %v3213
    %v3295 = vmul.f32 %v2273, %v3291
    %v3296 = vmul.f32 %v3294, 0.17677669
    %v3297 = vmul.f32 %v3295, 0.17677669
    %v3298 = vadd.f32 %v3296, %v2287
    %v3299 = vadd.f32 %v3297, %v2291
    %v3300 = vsel %vm299, %v3298, -inf
    %3301 = vmax.xlane.f32.xlu0 %v3300
    %v3302 = vpop.xlane.xlu0 %3301
    %v3303 = vsel %vm299, %v3299, -inf
    %3304 = vmax.xlane.f32.xlu0 %v3303
    %v3305 = vpop.xlane.xlu0 %3304
    %v3306 = vsub.f32 %v3298, %v3302
    %v3307 = vsub.f32 %v3299, %v3305
    %v3308 = vmul.f32 %v3306, 1.442695
    %v3309 = vpow.pop %v3308
    %v3310 = vmul.f32 %v3307, 1.442695
    %v3311 = vpow.pop %v3310
    %v3312 = vsel %vm299, %v3309, 0.0
    %3313 = vadd.xlane.f32.xlu0 %v3312
    %v3314 = vpop.xlane.xlu0 %3313
    %v3315 = vsel %vm299, %v3311, 0.0
    %3316 = vadd.xlane.f32.xlu0 %v3315
    %v3317 = vpop.xlane.xlu0 %3316
    %v3318 = vrcp.pop %v3314
    %v3319 = vmul.f32 %v3309, %v3318
    %v3320 = vrcp.pop %v3317
    %v3321 = vmul.f32 %v3311, %v3320
    %3322 = vrot.lane.b32.xlu0 %v2077, 32
    %v3323 = vpop.permute.xlu0 %3322
    %v3326 = vsel %vm299, %v3319, 0
    %3328 = vmatprep.subr.mxu0 0.0
    %3329 = vmatpush1.msra.mxu0 %v3323
    %3330 = vmatprep.subr.mxu0 0.0
    %3331 = vmatpush1.msra.mxu0 0.0
    %3332 = vmatprep.subr.mxu0 0.0
    %3333 = vmatpush1.msra.mxu0 0.0
    %3334 = vmatprep.subr.mxu0 0.0
    %3335 = vmatpush1.msra.mxu0 0.0
    %3336 = vmatprep.subr.mxu0 0.0
    %3337 = vmatpush1.msra.mxu0 0.0
    %3338 = vmatprep.subr.mxu0 0.0
    %3339 = vmatpush1.msra.mxu0 0.0
    %3340 = vmatprep.subr.mxu0 0.0
    %3341 = vmatpush1.msra.mxu0 0.0
    %3342 = vmatprep.subr.mxu0 0.0
    %3343 = vmatpush1.msra.mxu0 0.0
    %3344 = vmatprep.subr.mxu0 0.0
    %3345 = vmatpush1.msra.mxu0 0.0
    %3346 = vmatprep.subr.mxu0 0.0
    %3347 = vmatpush1.msra.mxu0 0.0
    %3348 = vmatprep.subr.mxu0 0.0
    %3349 = vmatpush1.msra.mxu0 0.0
    %3350 = vmatprep.subr.mxu0 0.0
    %3351 = vmatpush1.msra.mxu0 0.0
    %3352 = vmatprep.subr.mxu0 0.0
    %3353 = vmatpush1.msra.mxu0 0.0
    %3354 = vmatprep.subr.mxu0 0.0
    %3355 = vmatpush1.msra.mxu0 0.0
    %3356 = vmatprep.subr.mxu0 0.0
    %3357 = vmatpush1.msra.mxu0 0.0
    %3358 = vmatprep.subr.mxu0 0.0
    %3359 = vmatpush1.msra.mxu0 0.0
    %3360 = vmatprep.subr.mxu0 0.0
    %3361 = vmatpush1.msra.mxu0 0.0
    %3362 = vmatprep.subr.mxu0 0.0
    %3363 = vmatpush1.msra.mxu0 0.0
    %3364 = vmatprep.subr.mxu0 0.0
    %3365 = vmatpush1.msra.mxu0 0.0
    %3366 = vmatprep.subr.mxu0 0.0
    %3367 = vmatpush1.msra.mxu0 0.0
    %3368 = vmatprep.subr.mxu0 0.0
    %3369 = vmatpush1.msra.mxu0 0.0
    %3370 = vmatprep.subr.mxu0 0.0
    %3371 = vmatpush1.msra.mxu0 0.0
    %3372 = vmatprep.subr.mxu0 0.0
    %3373 = vmatpush1.msra.mxu0 0.0
    %3374 = vmatprep.subr.mxu0 0.0
    %3375 = vmatpush1.msra.mxu0 0.0
    %3376 = vmatprep.subr.mxu0 0.0
    %3377 = vmatpush1.msra.mxu0 0.0
    %3378 = vmatprep.subr.mxu0 0.0
    %3379 = vmatpush1.msra.mxu0 0.0
    %3380 = vmatprep.subr.mxu0 0.0
    %3381 = vmatpush1.msra.mxu0 0.0
    %3382 = vmatprep.subr.mxu0 0.0
    %3383 = vmatpush1.msra.mxu0 0.0
    %3384 = vmatprep.subr.mxu0 0.0
    %3385 = vmatpush1.msra.mxu0 0.0
    %3386 = vmatprep.subr.mxu0 0.0
    %3387 = vmatpush1.msra.mxu0 0.0
    %3388 = vmatprep.subr.mxu0 0.0
    %3389 = vmatpush1.msra.mxu0 0.0
    %3390 = vmatprep.subr.mxu0 0.0
    %3391 = vmatpush1.msra.mxu0 0.0
    %3392 = vmatprep.mubr.f32.mxu0 0.0
    %3393 = vmatmul.mubr.f32.gmra.mrb[0].mxu0 %v3326
    %v3394 = vpop.f32.mrb[0].mxu0
    %v3395 = vadd.f32 0.0, %v3394
    %v3396 = vpop.f32.mrb[0].mxu0
    %3397 = vdwg.mxu0
    %3398 = vrot.lane.b32.xlu0 %v2082, 32
    %v3399 = vpop.permute.xlu0 %3398
    %v3402 = vsel %vm299, %v3321, 0
    %3404 = vmatprep.subr.mxu0 0.0
    %3405 = vmatpush1.msra.mxu0 %v3399
    %3406 = vmatprep.subr.mxu0 0.0
    %3407 = vmatpush1.msra.mxu0 0.0
    %3408 = vmatprep.subr.mxu0 0.0
    %3409 = vmatpush1.msra.mxu0 0.0
    %3410 = vmatprep.subr.mxu0 0.0
    %3411 = vmatpush1.msra.mxu0 0.0
    %3412 = vmatprep.subr.mxu0 0.0
    %3413 = vmatpush1.msra.mxu0 0.0
    %3414 = vmatprep.subr.mxu0 0.0
    %3415 = vmatpush1.msra.mxu0 0.0
    %3416 = vmatprep.subr.mxu0 0.0
    %3417 = vmatpush1.msra.mxu0 0.0
    %3418 = vmatprep.subr.mxu0 0.0
    %3419 = vmatpush1.msra.mxu0 0.0
    %3420 = vmatprep.subr.mxu0 0.0
    %3421 = vmatpush1.msra.mxu0 0.0
    %3422 = vmatprep.subr.mxu0 0.0
    %3423 = vmatpush1.msra.mxu0 0.0
    %3424 = vmatprep.subr.mxu0 0.0
    %3425 = vmatpush1.msra.mxu0 0.0
    %3426 = vmatprep.subr.mxu0 0.0
    %3427 = vmatpush1.msra.mxu0 0.0
    %3428 = vmatprep.subr.mxu0 0.0
    %3429 = vmatpush1.msra.mxu0 0.0
    %3430 = vmatprep.subr.mxu0 0.0
    %3431 = vmatpush1.msra.mxu0 0.0
    %3432 = vmatprep.subr.mxu0 0.0
    %3433 = vmatpush1.msra.mxu0 0.0
    %3434 = vmatprep.subr.mxu0 0.0
    %3435 = vmatpush1.msra.mxu0 0.0
    %3436 = vmatprep.subr.mxu0 0.0
    %3437 = vmatpush1.msra.mxu0 0.0
    %3438 = vmatprep.subr.mxu0 0.0
    %3439 = vmatpush1.msra.mxu0 0.0
    %3440 = vmatprep.subr.mxu0 0.0
    %3441 = vmatpush1.msra.mxu0 0.0
    %3442 = vmatprep.subr.mxu0 0.0
    %3443 = vmatpush1.msra.mxu0 0.0
    %3444 = vmatprep.subr.mxu0 0.0
    %3445 = vmatpush1.msra.mxu0 0.0
    %3446 = vmatprep.subr.mxu0 0.0
    %3447 = vmatpush1.msra.mxu0 0.0
    %3448 = vmatprep.subr.mxu0 0.0
    %3449 = vmatpush1.msra.mxu0 0.0
    %3450 = vmatprep.subr.mxu0 0.0
    %3451 = vmatpush1.msra.mxu0 0.0
    %3452 = vmatprep.subr.mxu0 0.0
    %3453 = vmatpush1.msra.mxu0 0.0
    %3454 = vmatprep.subr.mxu0 0.0
    %3455 = vmatpush1.msra.mxu0 0.0
    %3456 = vmatprep.subr.mxu0 0.0
    %3457 = vmatpush1.msra.mxu0 0.0
    %3458 = vmatprep.subr.mxu0 0.0
    %3459 = vmatpush1.msra.mxu0 0.0
    %3460 = vmatprep.subr.mxu0 0.0
    %3461 = vmatpush1.msra.mxu0 0.0
    %3462 = vmatprep.subr.mxu0 0.0
    %3463 = vmatpush1.msra.mxu0 0.0
    %3464 = vmatprep.subr.mxu0 0.0
    %3465 = vmatpush1.msra.mxu0 0.0
    %3466 = vmatprep.subr.mxu0 0.0
    %3467 = vmatpush1.msra.mxu0 0.0
    %3468 = vmatprep.mubr.f32.mxu0 0.0
    %3469 = vmatmul.mubr.f32.gmra.mrb[0].mxu0 %v3402
    %v3470 = vpop.f32.mrb[0].mxu0
    %v3471 = vadd.f32 0.0, %v3470
    %v3472 = vpop.f32.mrb[0].mxu0
    %3473 = vdwg.mxu0
    %3476 = vrot.lane.b32.xlu0 %v2722, 32
    %v3477 = vpop.permute.xlu0 %3476
    %3478 = vrot.lane.b32.xlu0 %v2799, 32
    %v3479 = vpop.permute.xlu0 %3478
    %3484 = vrot.lane.b32.xlu0 %v3059, 64
    %v3485 = vpop.permute.xlu0 %3484
    %3486 = vrot.lane.b32.xlu0 %v3135, 64
    %v3487 = vpop.permute.xlu0 %3486
    %3492 = vrot.lane.b32.xlu0 %v3395, 96
    %v3493 = vpop.permute.xlu0 %3492
    %3494 = vrot.lane.b32.xlu0 %v3471, 96
    %v3495 = vpop.permute.xlu0 %3494
    %v3498 = vsel %vm949, %v2388, %v3477
    %v3499 = vsel %vm949, %v2461, %v3479
    %vm3500 = vcmask 523264
    %v3501 = vsel %vm3500, %v3498, %v3485
    %v3502 = vsel %vm3500, %v3499, %v3487
    %vm3503 = vcmask 785408
    %v3504 = vsel %vm3503, %v3501, %v3493
    %v3505 = vsel %vm3503, %v3502, %v3495
    %v3506 = vld [vmem:[%s16] sm:$0xff]
    %v3507 = vld [vmem:[%s16 + $0x8] sm:$0xff]
    %v3508 = vld [vmem:[%s16 + $0x10] sm:$0xff]
    %v3509 = vld [vmem:[%s16 + $0x18] sm:$0xff]
    %v3510 = vld [vmem:[%s16 + $0x20] sm:$0xff]
    %v3511 = vld [vmem:[%s16 + $0x28] sm:$0xff]
    %v3512 = vld [vmem:[%s16 + $0x30] sm:$0xff]
    %v3513 = vld [vmem:[%s16 + $0x38] sm:$0xff]
    %v3514 = vld [vmem:[%s16 + $0x40] sm:$0xff]
    %v3515 = vld [vmem:[%s16 + $0x48] sm:$0xff]
    %v3516 = vld [vmem:[%s16 + $0x50] sm:$0xff]
    %v3517 = vld [vmem:[%s16 + $0x58] sm:$0xff]
    %v3518 = vld [vmem:[%s16 + $0x60] sm:$0xff]
    %v3519 = vld [vmem:[%s16 + $0x68] sm:$0xff]
    %v3520 = vld [vmem:[%s16 + $0x70] sm:$0xff]
    %v3521 = vld [vmem:[%s16 + $0x78] sm:$0xff]
    %v3522 = vld [vmem:[#allocation21] sm:$0x1]
    %v3524 = vlaneseq
    %v3525 = vshrl.u32 %v3524, 7
    %v3526 = vsub.s32 0, %v3525
    %v3527 = vrot.slane %v3522, %v3526
    %3529 = vmatprep.subr.mxu0 0.0
    %3530 = vmatpush1.msra.mxu0 %v3506
    %3531 = vmatprep.subr.mxu0 0.0
    %3532 = vmatpush1.msra.mxu0 %v3507
    %3533 = vmatprep.subr.mxu0 0.0
    %3534 = vmatpush1.msra.mxu0 %v3508
    %3535 = vmatprep.subr.mxu0 0.0
    %3536 = vmatpush1.msra.mxu0 %v3509
    %3537 = vmatprep.subr.mxu0 0.0
    %3538 = vmatpush1.msra.mxu0 %v3510
    %3539 = vmatprep.subr.mxu0 0.0
    %3540 = vmatpush1.msra.mxu0 %v3511
    %3541 = vmatprep.subr.mxu0 0.0
    %3542 = vmatpush1.msra.mxu0 %v3512
    %3543 = vmatprep.subr.mxu0 0.0
    %3544 = vmatpush1.msra.mxu0 %v3513
    %3545 = vmatprep.subr.mxu0 0.0
    %3546 = vmatpush1.msra.mxu0 %v3514
    %3547 = vmatprep.subr.mxu0 0.0
    %3548 = vmatpush1.msra.mxu0 %v3515
    %3549 = vmatprep.subr.mxu0 0.0
    %3550 = vmatpush1.msra.mxu0 %v3516
    %3551 = vmatprep.subr.mxu0 0.0
    %3552 = vmatpush1.msra.mxu0 %v3517
    %3553 = vmatprep.subr.mxu0 0.0
    %3554 = vmatpush1.msra.mxu0 %v3518
    %3555 = vmatprep.subr.mxu0 0.0
    %3556 = vmatpush1.msra.mxu0 %v3519
    %3557 = vmatprep.subr.mxu0 0.0
    %3558 = vmatpush1.msra.mxu0 %v3520
    %3559 = vmatprep.subr.mxu0 0.0
    %3560 = vmatpush1.msra.mxu0 %v3521
    %3561 = vmatprep.subr.mxu0 0.0
    %3562 = vmatpush1.msra.mxu0 0.0
    %3563 = vmatprep.subr.mxu0 0.0
    %3564 = vmatpush1.msra.mxu0 0.0
    %3565 = vmatprep.subr.mxu0 0.0
    %3566 = vmatpush1.msra.mxu0 0.0
    %3567 = vmatprep.subr.mxu0 0.0
    %3568 = vmatpush1.msra.mxu0 0.0
    %3569 = vmatprep.subr.mxu0 0.0
    %3570 = vmatpush1.msra.mxu0 0.0
    %3571 = vmatprep.subr.mxu0 0.0
    %3572 = vmatpush1.msra.mxu0 0.0
    %3573 = vmatprep.subr.mxu0 0.0
    %3574 = vmatpush1.msra.mxu0 0.0
    %3575 = vmatprep.subr.mxu0 0.0
    %3576 = vmatpush1.msra.mxu0 0.0
    %3577 = vmatprep.subr.mxu0 0.0
    %3578 = vmatpush1.msra.mxu0 0.0
    %3579 = vmatprep.subr.mxu0 0.0
    %3580 = vmatpush1.msra.mxu0 0.0
    %3581 = vmatprep.subr.mxu0 0.0
    %3582 = vmatpush1.msra.mxu0 0.0
    %3583 = vmatprep.subr.mxu0 0.0
    %3584 = vmatpush1.msra.mxu0 0.0
    %3585 = vmatprep.subr.mxu0 0.0
    %3586 = vmatpush1.msra.mxu0 0.0
    %3587 = vmatprep.subr.mxu0 0.0
    %3588 = vmatpush1.msra.mxu0 0.0
    %3589 = vmatprep.subr.mxu0 0.0
    %3590 = vmatpush1.msra.mxu0 0.0
    %3591 = vmatprep.subr.mxu0 0.0
    %3592 = vmatpush1.msra.mxu0 0.0
    %3593 = vmatprep.mubr.f32.mxu0 0.0
    %3594 = vmatmul.mubr.f32.gmra.mrb[0].mxu0 %v3504
    %v3595 = vpop.f32.mrb[0].mxu0
    %v3596 = vadd.f32 %v3527, %v3595
    %v3597 = vpop.f32.mrb[0].mxu0
    %3598 = vmatprep.mubr.f32.mxu0 0.0
    %3599 = vmatmul.mubr.f32.gmra.mrb[0].mxu0 %v3505
    %v3600 = vpop.f32.mrb[0].mxu0
    %v3601 = vadd.f32 %v3527, %v3600
    %v3602 = vpop.f32.mrb[0].mxu0
    %3603 = vdwg.mxu0
    %v3604 = vld [vmem:[%s18] sm:$0xff]
    %v3605 = vld [vmem:[%s18 + $0x8] sm:$0xff]
    %v3606 = vld [vmem:[%s18 + $0x10] sm:$0xff]
    %v3607 = vld [vmem:[%s18 + $0x18] sm:$0xff]
    %v3608 = vld [vmem:[%s19] sm:$0x1]
    %v3610 = vlaneseq
    %v3611 = vshrl.u32 %v3610, 7
    %v3612 = vsub.s32 0, %v3611
    %v3613 = vrot.slane %v3608, %v3612
    %v3616 = vsel %vm949, %v3596, 0
    %v3619 = vsel %vm949, %v3601, 0
    %3621 = vmatprep.subr.mxu0 0.0
    %3622 = vmatpush1.msra.mxu0 %v3604
    %3623 = vmatprep.subr.mxu0 0.0
    %3624 = vmatpush1.msra.mxu0 %v3605
    %3625 = vmatprep.subr.mxu0 0.0
    %3626 = vmatpush1.msra.mxu0 %v3606
    %3627 = vmatprep.subr.mxu0 0.0
    %3628 = vmatpush1.msra.mxu0 %v3607
    %3629 = vmatprep.subr.mxu0 0.0
    %3630 = vmatpush1.msra.mxu0 0.0
    %3631 = vmatprep.subr.mxu0 0.0
    %3632 = vmatpush1.msra.mxu0 0.0
    %3633 = vmatprep.subr.mxu0 0.0
    %3634 = vmatpush1.msra.mxu0 0.0
    %3635 = vmatprep.subr.mxu0 0.0
    %3636 = vmatpush1.msra.mxu0 0.0
    %3637 = vmatprep.subr.mxu0 0.0
    %3638 = vmatpush1.msra.mxu0 0.0
    %3639 = vmatprep.subr.mxu0 0.0
    %3640 = vmatpush1.msra.mxu0 0.0
    %3641 = vmatprep.subr.mxu0 0.0
    %3642 = vmatpush1.msra.mxu0 0.0
    %3643 = vmatprep.subr.mxu0 0.0
    %3644 = vmatpush1.msra.mxu0 0.0
    %3645 = vmatprep.subr.mxu0 0.0
    %3646 = vmatpush1.msra.mxu0 0.0
    %3647 = vmatprep.subr.mxu0 0.0
    %3648 = vmatpush1.msra.mxu0 0.0
    %3649 = vmatprep.subr.mxu0 0.0
    %3650 = vmatpush1.msra.mxu0 0.0
    %3651 = vmatprep.subr.mxu0 0.0
    %3652 = vmatpush1.msra.mxu0 0.0
    %3653 = vmatprep.subr.mxu0 0.0
    %3654 = vmatpush1.msra.mxu0 0.0
    %3655 = vmatprep.subr.mxu0 0.0
    %3656 = vmatpush1.msra.mxu0 0.0
    %3657 = vmatprep.subr.mxu0 0.0
    %3658 = vmatpush1.msra.mxu0 0.0
    %3659 = vmatprep.subr.mxu0 0.0
    %3660 = vmatpush1.msra.mxu0 0.0
    %3661 = vmatprep.subr.mxu0 0.0
    %3662 = vmatpush1.msra.mxu0 0.0
    %3663 = vmatprep.subr.mxu0 0.0
    %3664 = vmatpush1.msra.mxu0 0.0
    %3665 = vmatprep.subr.mxu0 0.0
    %3666 = vmatpush1.msra.mxu0 0.0
    %3667 = vmatprep.subr.mxu0 0.0
    %3668 = vmatpush1.msra.mxu0 0.0
    %3669 = vmatprep.subr.mxu0 0.0
    %3670 = vmatpush1.msra.mxu0 0.0
    %3671 = vmatprep.subr.mxu0 0.0
    %3672 = vmatpush1.msra.mxu0 0.0
    %3673 = vmatprep.subr.mxu0 0.0
    %3674 = vmatpush1.msra.mxu0 0.0
    %3675 = vmatprep.subr.mxu0 0.0
    %3676 = vmatpush1.msra.mxu0 0.0
    %3677 = vmatprep.subr.mxu0 0.0
    %3678 = vmatpush1.msra.mxu0 0.0
    %3679 = vmatprep.subr.mxu0 0.0
    %3680 = vmatpush1.msra.mxu0 0.0
    %3681 = vmatprep.subr.mxu0 0.0
    %3682 = vmatpush1.msra.mxu0 0.0
    %3683 = vmatprep.subr.mxu0 0.0
    %3684 = vmatpush1.msra.mxu0 0.0
    %3685 = vmatprep.mubr.f32.mxu0 0.0
    %3686 = vmatmul.mubr.f32.gmra.mrb[0].mxu0 %v3616
    %v3687 = vpop.f32.mrb[0].mxu0
    %v3688 = vadd.f32 %v3613, %v3687
    %v3689 = vpop.f32.mrb[0].mxu0
    %3690 = vmatprep.mubr.f32.mxu0 0.0
    %3691 = vmatmul.mubr.f32.gmra.mrb[0].mxu0 %v3619
    %v3692 = vpop.f32.mrb[0].mxu0
    %v3693 = vadd.f32 %v3613, %v3692
    %v3694 = vpop.f32.mrb[0].mxu0
    %3695 = vdwg.mxu0
    %v3696 = vxor.u32 %v3688, 2147483648
    %v3697 = vxor.u32 %v3693, 2147483648
    %v3698 = vmul.f32 %v3696, 1.442695
    %v3699 = vpow.pop %v3698
    %v3700 = vmul.f32 %v3697, 1.442695
    %v3701 = vpow.pop %v3700
    %v3702 = vadd.f32 %v3699, 1.0
    %v3703 = vadd.f32 %v3701, 1.0
    %v3704 = vrcp.pop %v3702
    %v3705 = vmul.f32 1.0, %v3704
    %v3706 = vrcp.pop %v3703
    %v3707 = vmul.f32 1.0, %v3706
    %v3708 = vmul.f32 %v3688, %v3705
    %v3709 = vmul.f32 %v3693, %v3707
    %v3710 = vadd.f32 %v3708, %v1896
    %v3711 = vadd.f32 %v3709, %v1897
    %v3712 = vsel %vm299, %v2110, 0
    %3714 = vmatprep.subr.mxu0 0.0
    %3715 = vmatpush1.msra.mxu0 %v3710
    %3716 = vmatprep.subr.mxu0 0.0
    %3717 = vmatpush1.msra.mxu0 0.0
    %3718 = vmatprep.subr.mxu0 0.0
    %3719 = vmatpush1.msra.mxu0 0.0
    %3720 = vmatprep.subr.mxu0 0.0
    %3721 = vmatpush1.msra.mxu0 0.0
    %3722 = vmatprep.subr.mxu0 0.0
    %3723 = vmatpush1.msra.mxu0 0.0
    %3724 = vmatprep.subr.mxu0 0.0
    %3725 = vmatpush1.msra.mxu0 0.0
    %3726 = vmatprep.subr.mxu0 0.0
    %3727 = vmatpush1.msra.mxu0 0.0
    %3728 = vmatprep.subr.mxu0 0.0
    %3729 = vmatpush1.msra.mxu0 0.0
    %3730 = vmatprep.subr.mxu0 0.0
    %3731 = vmatpush1.msra.mxu0 0.0
    %3732 = vmatprep.subr.mxu0 0.0
    %3733 = vmatpush1.msra.mxu0 0.0
    %3734 = vmatprep.subr.mxu0 0.0
    %3735 = vmatpush1.msra.mxu0 0.0
    %3736 = vmatprep.subr.mxu0 0.0
    %3737 = vmatpush1.msra.mxu0 0.0
    %3738 = vmatprep.subr.mxu0 0.0
    %3739 = vmatpush1.msra.mxu0 0.0
    %3740 = vmatprep.subr.mxu0 0.0
    %3741 = vmatpush1.msra.mxu0 0.0
    %3742 = vmatprep.subr.mxu0 0.0
    %3743 = vmatpush1.msra.mxu0 0.0
    %3744 = vmatprep.subr.mxu0 0.0
    %3745 = vmatpush1.msra.mxu0 0.0
    %3746 = vmatprep.subr.mxu0 0.0
    %3747 = vmatpush1.msra.mxu0 0.0
    %3748 = vmatprep.subr.mxu0 0.0
    %3749 = vmatpush1.msra.mxu0 0.0
    %3750 = vmatprep.subr.mxu0 0.0
    %3751 = vmatpush1.msra.mxu0 0.0
    %3752 = vmatprep.subr.mxu0 0.0
    %3753 = vmatpush1.msra.mxu0 0.0
    %3754 = vmatprep.subr.mxu0 0.0
    %3755 = vmatpush1.msra.mxu0 0.0
    %3756 = vmatprep.subr.mxu0 0.0
    %3757 = vmatpush1.msra.mxu0 0.0
    %3758 = vmatprep.subr.mxu0 0.0
    %3759 = vmatpush1.msra.mxu0 0.0
    %3760 = vmatprep.subr.mxu0 0.0
    %3761 = vmatpush1.msra.mxu0 0.0
    %3762 = vmatprep.subr.mxu0 0.0
    %3763 = vmatpush1.msra.mxu0 0.0
    %3764 = vmatprep.subr.mxu0 0.0
    %3765 = vmatpush1.msra.mxu0 0.0
    %3766 = vmatprep.subr.mxu0 0.0
    %3767 = vmatpush1.msra.mxu0 0.0
    %3768 = vmatprep.subr.mxu0 0.0
    %3769 = vmatpush1.msra.mxu0 0.0
    %3770 = vmatprep.subr.mxu0 0.0
    %3771 = vmatpush1.msra.mxu0 0.0
    %3772 = vmatprep.subr.mxu0 0.0
    %3773 = vmatpush1.msra.mxu0 0.0
    %3774 = vmatprep.subr.mxu0 0.0
    %3775 = vmatpush1.msra.mxu0 0.0
    %3776 = vmatprep.subr.mxu0 0.0
    %3777 = vmatpush1.msra.mxu0 0.0
    %3778 = vmatprep.mubr.f32.mxu0 0.0
    %3779 = vmatmul.mubr.f32.gmra.mrb[0].mxu0 %v3712
    %v3780 = vpop.f32.mrb[0].mxu0
    %v3781 = vadd.f32 0.0, %v3780
    %v3782 = vpop.f32.mrb[0].mxu0
    %3783 = vdwg.mxu0
    %v3784 = vsel %vm299, %v2111, 0
    %3786 = vmatprep.subr.mxu0 0.0
    %3787 = vmatpush1.msra.mxu0 %v3711
    %3788 = vmatprep.subr.mxu0 0.0
    %3789 = vmatpush1.msra.mxu0 0.0
    %3790 = vmatprep.subr.mxu0 0.0
    %3791 = vmatpush1.msra.mxu0 0.0
    %3792 = vmatprep.subr.mxu0 0.0
    %3793 = vmatpush1.msra.mxu0 0.0
    %3794 = vmatprep.subr.mxu0 0.0
    %3795 = vmatpush1.msra.mxu0 0.0
    %3796 = vmatprep.subr.mxu0 0.0
    %3797 = vmatpush1.msra.mxu0 0.0
    %3798 = vmatprep.subr.mxu0 0.0
    %3799 = vmatpush1.msra.mxu0 0.0
    %3800 = vmatprep.subr.mxu0 0.0
    %3801 = vmatpush1.msra.mxu0 0.0
    %3802 = vmatprep.subr.mxu0 0.0
    %3803 = vmatpush1.msra.mxu0 0.0
    %3804 = vmatprep.subr.mxu0 0.0
    %3805 = vmatpush1.msra.mxu0 0.0
    %3806 = vmatprep.subr.mxu0 0.0
    %3807 = vmatpush1.msra.mxu0 0.0
    %3808 = vmatprep.subr.mxu0 0.0
    %3809 = vmatpush1.msra.mxu0 0.0
    %3810 = vmatprep.subr.mxu0 0.0
    %3811 = vmatpush1.msra.mxu0 0.0
    %3812 = vmatprep.subr.mxu0 0.0
    %3813 = vmatpush1.msra.mxu0 0.0
    %3814 = vmatprep.subr.mxu0 0.0
    %3815 = vmatpush1.msra.mxu0 0.0
    %3816 = vmatprep.subr.mxu0 0.0
    %3817 = vmatpush1.msra.mxu0 0.0
    %3818 = vmatprep.subr.mxu0 0.0
    %3819 = vmatpush1.msra.mxu0 0.0
    %3820 = vmatprep.subr.mxu0 0.0
    %3821 = vmatpush1.msra.mxu0 0.0
    %3822 = vmatprep.subr.mxu0 0.0
    %3823 = vmatpush1.msra.mxu0 0.0
    %3824 = vmatprep.subr.mxu0 0.0
    %3825 = vmatpush1.msra.mxu0 0.0
    %3826 = vmatprep.subr.mxu0 0.0
    %3827 = vmatpush1.msra.mxu0 0.0
    %3828 = vmatprep.subr.mxu0 0.0
    %3829 = vmatpush1.msra.mxu0 0.0
    %3830 = vmatprep.subr.mxu0 0.0
    %3831 = vmatpush1.msra.mxu0 0.0
    %3832 = vmatprep.subr.mxu0 0.0
    %3833 = vmatpush1.msra.mxu0 0.0
    %3834 = vmatprep.subr.mxu0 0.0
    %3835 = vmatpush1.msra.mxu0 0.0
    %3836 = vmatprep.subr.mxu0 0.0
    %3837 = vmatpush1.msra.mxu0 0.0
    %3838 = vmatprep.subr.mxu0 0.0
    %3839 = vmatpush1.msra.mxu0 0.0
    %3840 = vmatprep.subr.mxu0 0.0
    %3841 = vmatpush1.msra.mxu0 0.0
    %3842 = vmatprep.subr.mxu0 0.0
    %3843 = vmatpush1.msra.mxu0 0.0
    %3844 = vmatprep.subr.mxu0 0.0
    %3845 = vmatpush1.msra.mxu0 0.0
    %3846 = vmatprep.subr.mxu0 0.0
    %3847 = vmatpush1.msra.mxu0 0.0
    %3848 = vmatprep.subr.mxu0 0.0
    %3849 = vmatpush1.msra.mxu0 0.0
    %3850 = vmatprep.mubr.f32.mxu0 0.0
    %3851 = vmatmul.mubr.f32.gmra.mrb[0].mxu0 %v3784
    %v3852 = vpop.f32.mrb[0].mxu0
    %v3853 = vadd.f32 0.0, %v3852
    %v3854 = vpop.f32.mrb[0].mxu0
    %3855 = vdwg.mxu0
    %v3856 = vsub.f32 1.0, %v215
    %vm3857 = vcmask 58368
    %v3858 = vsel %vm3857, %v3856, 0.0
    %3859 = vadd.xlane.f32.xlu0 %v3858
    %v3860 = vpop.xlane.xlu0 %3859
    %v3861 = vadd.f32 %v3860, 1e-07
    %v3863 = vrot.slane %v3861, 1
    %v3866 = vrcp.pop %v3861
    %v3867 = vmul.f32 %v3781, %v3866
    %v3868 = vrcp.pop %v3863
    %v3869 = vmul.f32 %v3853, %v3868
    %v3870 = vld [vmem:[%s20] sm:$0xff]
    %v3871 = vld [vmem:[%s20 + $0x8] sm:$0xff]
    %v3872 = vld [vmem:[%s20 + $0x10] sm:$0xff]
    %v3873 = vld [vmem:[%s20 + $0x18] sm:$0xff]
    %v3874 = vld [vmem:[%s21] sm:$0xff]
    %3875 = vmatprep.subr.mxu0 0.0
    %3876 = vmatpush1.msra.mxu0 %v3874
    %3877 = vmatprep.subr.mxu0 0.0
    %3878 = vmatpush1.msra.mxu0 0.0
    %3879 = vmatprep.subr.mxu0 0.0
    %3880 = vmatpush1.msra.mxu0 0.0
    %3881 = vmatprep.subr.mxu0 0.0
    %3882 = vmatpush1.msra.mxu0 0.0
    %3883 = vmatprep.subr.mxu0 0.0
    %3884 = vmatpush1.msra.mxu0 0.0
    %3885 = vmatprep.subr.mxu0 0.0
    %3886 = vmatpush1.msra.mxu0 0.0
    %3887 = vmatprep.subr.mxu0 0.0
    %3888 = vmatpush1.msra.mxu0 0.0
    %3889 = vmatprep.subr.mxu0 0.0
    %3890 = vmatpush1.msra.mxu0 0.0
    %3891 = vmatprep.subr.mxu0 0.0
    %3892 = vmatpush1.msra.mxu0 0.0
    %3893 = vmatprep.subr.mxu0 0.0
    %3894 = vmatpush1.msra.mxu0 0.0
    %3895 = vmatprep.subr.mxu0 0.0
    %3896 = vmatpush1.msra.mxu0 0.0
    %3897 = vmatprep.subr.mxu0 0.0
    %3898 = vmatpush1.msra.mxu0 0.0
    %3899 = vmatprep.subr.mxu0 0.0
    %3900 = vmatpush1.msra.mxu0 0.0
    %3901 = vmatprep.subr.mxu0 0.0
    %3902 = vmatpush1.msra.mxu0 0.0
    %3903 = vmatprep.subr.mxu0 0.0
    %3904 = vmatpush1.msra.mxu0 0.0
    %3905 = vmatprep.subr.mxu0 0.0
    %3906 = vmatpush1.msra.mxu0 0.0
    %3907 = vmatprep.subr.mxu0 0.0
    %3908 = vmatpush1.msra.mxu0 0.0
    %3909 = vmatprep.subr.mxu0 0.0
    %3910 = vmatpush1.msra.mxu0 0.0
    %3911 = vmatprep.subr.mxu0 0.0
    %3912 = vmatpush1.msra.mxu0 0.0
    %3913 = vmatprep.subr.mxu0 0.0
    %3914 = vmatpush1.msra.mxu0 0.0
    %3915 = vmatprep.subr.mxu0 0.0
    %3916 = vmatpush1.msra.mxu0 0.0
    %3917 = vmatprep.subr.mxu0 0.0
    %3918 = vmatpush1.msra.mxu0 0.0
    %3919 = vmatprep.subr.mxu0 0.0
    %3920 = vmatpush1.msra.mxu0 0.0
    %3921 = vmatprep.subr.mxu0 0.0
    %3922 = vmatpush1.msra.mxu0 0.0
    %3923 = vmatprep.subr.mxu0 0.0
    %3924 = vmatpush1.msra.mxu0 0.0
    %3925 = vmatprep.subr.mxu0 0.0
    %3926 = vmatpush1.msra.mxu0 0.0
    %3927 = vmatprep.subr.mxu0 0.0
    %3928 = vmatpush1.msra.mxu0 0.0
    %3929 = vmatprep.subr.mxu0 0.0
    %3930 = vmatpush1.msra.mxu0 0.0
    %3931 = vmatprep.subr.mxu0 0.0
    %3932 = vmatpush1.msra.mxu0 0.0
    %3933 = vmatprep.subr.mxu0 0.0
    %3934 = vmatpush1.msra.mxu0 0.0
    %3935 = vmatprep.subr.mxu0 0.0
    %3936 = vmatpush1.msra.mxu0 0.0
    %3937 = vmatprep.subr.mxu0 0.0
    %3938 = vmatpush1.msra.mxu0 0.0
    %3939 = vmatprep.mubr.f32.mxu0 0.0
    %3940 = vmatmul.mubr.f32.gmra.mrb[0].mxu0 %v301
    %v3941 = vpop.f32.mrb[0].mxu0
    %v3942 = vadd.f32 0.0, %v3941
    %v3943 = vpop.f32.mrb[0].mxu0
    %3944 = vdwg.mxu0
    %v3947 = vrot.slane %v3869, 7
    %vm3948 = vcmask 1041409
    %v3949 = vsel %vm3948, %v3947, %v3867
    %v3950 = vsel %vm949, %v3949, 0
    %3952 = vmatprep.subr.mxu0 0.0
    %3953 = vmatpush1.msra.mxu0 %v3870
    %3954 = vmatprep.subr.mxu0 0.0
    %3955 = vmatpush1.msra.mxu0 %v3871
    %3956 = vmatprep.subr.mxu0 0.0
    %3957 = vmatpush1.msra.mxu0 %v3872
    %3958 = vmatprep.subr.mxu0 0.0
    %3959 = vmatpush1.msra.mxu0 %v3873
    %3960 = vmatprep.subr.mxu0 0.0
    %3961 = vmatpush1.msra.mxu0 0.0
    %3962 = vmatprep.subr.mxu0 0.0
    %3963 = vmatpush1.msra.mxu0 0.0
    %3964 = vmatprep.subr.mxu0 0.0
    %3965 = vmatpush1.msra.mxu0 0.0
    %3966 = vmatprep.subr.mxu0 0.0
    %3967 = vmatpush1.msra.mxu0 0.0
    %3968 = vmatprep.subr.mxu0 0.0
    %3969 = vmatpush1.msra.mxu0 0.0
    %3970 = vmatprep.subr.mxu0 0.0
    %3971 = vmatpush1.msra.mxu0 0.0
    %3972 = vmatprep.subr.mxu0 0.0
    %3973 = vmatpush1.msra.mxu0 0.0
    %3974 = vmatprep.subr.mxu0 0.0
    %3975 = vmatpush1.msra.mxu0 0.0
    %3976 = vmatprep.subr.mxu0 0.0
    %3977 = vmatpush1.msra.mxu0 0.0
    %3978 = vmatprep.subr.mxu0 0.0
    %3979 = vmatpush1.msra.mxu0 0.0
    %3980 = vmatprep.subr.mxu0 0.0
    %3981 = vmatpush1.msra.mxu0 0.0
    %3982 = vmatprep.subr.mxu0 0.0
    %3983 = vmatpush1.msra.mxu0 0.0
    %3984 = vmatprep.subr.mxu0 0.0
    %3985 = vmatpush1.msra.mxu0 0.0
    %3986 = vmatprep.subr.mxu0 0.0
    %3987 = vmatpush1.msra.mxu0 0.0
    %3988 = vmatprep.subr.mxu0 0.0
    %3989 = vmatpush1.msra.mxu0 0.0
    %3990 = vmatprep.subr.mxu0 0.0
    %3991 = vmatpush1.msra.mxu0 0.0
    %3992 = vmatprep.subr.mxu0 0.0
    %3993 = vmatpush1.msra.mxu0 0.0
    %3994 = vmatprep.subr.mxu0 0.0
    %3995 = vmatpush1.msra.mxu0 0.0
    %3996 = vmatprep.subr.mxu0 0.0
    %3997 = vmatpush1.msra.mxu0 0.0
    %3998 = vmatprep.subr.mxu0 0.0
    %3999 = vmatpush1.msra.mxu0 0.0
    %4000 = vmatprep.subr.mxu0 0.0
    %4001 = vmatpush1.msra.mxu0 0.0
    %4002 = vmatprep.subr.mxu0 0.0
    %4003 = vmatpush1.msra.mxu0 0.0
    %4004 = vmatprep.subr.mxu0 0.0
    %4005 = vmatpush1.msra.mxu0 0.0
    %4006 = vmatprep.subr.mxu0 0.0
    %4007 = vmatpush1.msra.mxu0 0.0
    %4008 = vmatprep.subr.mxu0 0.0
    %4009 = vmatpush1.msra.mxu0 0.0
    %4010 = vmatprep.subr.mxu0 0.0
    %4011 = vmatpush1.msra.mxu0 0.0
    %4012 = vmatprep.subr.mxu0 0.0
    %4013 = vmatpush1.msra.mxu0 0.0
    %4014 = vmatprep.subr.mxu0 0.0
    %4015 = vmatpush1.msra.mxu0 0.0
    %4016 = vmatprep.mubr.f32.mxu0 0.0
    %4017 = vmatmul.mubr.f32.gmra.mrb[0].mxu0 %v3950
    %v4018 = vpop.f32.mrb[0].mxu0
    %v4019 = vadd.f32 %v3942, %v4018
    %v4020 = vpop.f32.mrb[0].mxu0
    %4021 = vdwg.mxu0
    %v4022 = vld [vmem:[%s22] sm:$0x1]
    %v4024 = vlaneseq
    %v4025 = vshrl.u32 %v4024, 7
    %v4026 = vsub.s32 0, %v4025
    %v4027 = vrot.slane %v4022, %v4026
    %v4029 = vadd.f32 %v4019, %v4027
    %v4030 = vxor.u32 %v4029, 2147483648
    %v4031 = vmul.f32 %v4030, 1.442695
    %v4032 = vpow.pop %v4031
    %v4033 = vadd.f32 %v4032, 1.0
    %v4034 = vrcp.pop %v4033
    %v4035 = vmul.f32 1.0, %v4034
    %v4036 = vmul.f32 %v4029, %v4035
    %vm4037 = vcmask 254976
    %4038 = vst.msk [vmem:[#allocation23] sm:$0x3] %vm4037, %v4036
    // Predicated region
    $region142: #{tpu_custom_call.1} parent=1 // pred_check
      _
    $region143: #{tpu_custom_call.1} parent=1 // pred_check_branch
      %4040 = sbr.rel (0) target = $region145
    $region144: #{tpu_custom_call.1} parent=1 // pred_region
      %s4042 = ssub.s32 32, 32
      %4043 = vsyncadd [#allocation5], %s4042
      %s4045 = sshll.u32 [#allocation23], 4
      %s4046 = int_to_ptr.vmem [resolvable:$true] %s4045
      %4048 = dma.vmem_to_hbm [thread:$0]  %s4046, 32, %s23, [#allocation5]
    $region145: #{tpu_custom_call.1} parent=1 // pred_fallthru
      _
    // Predicated region
    $region146: #{tpu_custom_call.1} parent=1 // pred_check
      _
    $region147: #{tpu_custom_call.1} parent=1 // pred_check_branch
      %4050 = sbr.rel (0) target = $region149
    $region148: #{tpu_custom_call.1} parent=1 // pred_region
      %4051 = dma.done [#allocation5], 32
    $region149: #{tpu_custom_call.1} parent=1 // pred_fallthru
      _
    %4052 = vsyncpa [#allocation4], 1
    %4053 = vsyncpa [#allocation7], 1
    %4054 = vsyncpa [#allocation10], 1
    %4055 = vsyncpa [#allocation13], 1
    %4056 = vsyncpa [#allocation16], 1
    %4057 = vsyncpa [#allocation19], 1
    %4058 = vsyncpa [#allocation22], 1
    %4059 = vsyncpa [#allocation5], 1

</llo_original>
